<compile_context>
chip_gen: v7x
topology: tpu7x:2x2x1
jax: 0.10.0
libtpu: 0.0.40
codegen_flags: <defaults>
</compile_context>

<pallas_src>
import jax
import jax.numpy as jnp
import numpy as np
from jax.experimental import pallas as pl
from jax.experimental.pallas import tpu as pltpu

KSIZE = 5
TB_MAX = 512   # max batch-tile (lane) width per grid step; fits all chips' scoped VMEM
LANE = 128


def _round_up(x, m):
    return ((x + m - 1) // m) * m


def _pick_batch_tile(n, tb_max=TB_MAX):
    """Pick (tile_width, num_tiles): lane-aligned, <= tb_max, and >=2 tiles whenever
    there is more than one lane-group of work (keeps both v7x TensorCores busy)."""
    n_lanes = _round_up(max(n, 1), LANE)
    num_tiles = max(pl.cdiv(n_lanes, tb_max), 2 if n_lanes > LANE else 1)
    tb = _round_up(pl.cdiv(n_lanes, num_tiles), LANE)
    num_tiles = pl.cdiv(n_lanes, tb)
    return tb, num_tiles


def cnn_regressor_kernel(x_ref, w1_ref, w2_ref, fc1_ref, fc2_ref, out_ref):
    # x_ref: (Lp, TB) bf16 -- rows 0..L-1 = signal, row L = ones (drives all folded biases).
    x = x_ref[...]

    # conv1 (+bias) + ReLU: one MXU matmul, f32 accumulation.
    h1 = jnp.maximum(
        jnp.dot(w1_ref[...], x, preferred_element_type=jnp.float32), 0.0)    # (2*R1h, TB)

    # maxpool1(2): pool parity is the outermost row block -> aligned (x8) slice + max.
    half1 = h1.shape[0] // 2
    p1 = jnp.maximum(h1[:half1, :], h1[half1:, :])                           # (R1h, TB) f32
    # row C1*P1 of p1 is the carried constant 1 (feeds conv2/fc1/fc2 biases downstream).

    # conv2 (+bias) + ReLU: one fused MXU matmul over the unrolled (C1*P1) axis.
    h2 = jnp.maximum(
        jnp.dot(w2_ref[...], p1.astype(w2_ref.dtype),
                preferred_element_type=jnp.float32), 0.0)                    # (2*R2h, TB)

    # maxpool2(2)
    half2 = h2.shape[0] // 2
    p2 = jnp.maximum(h2[:half2, :], h2[half2:, :])                           # (R2h, TB) f32

    # fc1 (+bias) + ReLU (row order of p2 already equals PyTorch .view flatten order).
    h3 = jnp.maximum(
        jnp.dot(fc1_ref[...], p2.astype(fc1_ref.dtype),
                preferred_element_type=jnp.float32), 0.0)                    # (65, TB)

    # fc2 (+bias): single MXU matmul -> lane-dense (1, TB) row.
    y = jnp.dot(fc2_ref[...], h3, preferred_element_type=jnp.float32)        # (1, TB)
    out_ref[...] = y[None, :, :]


def _build_conv1_matrix(w1, b1, L, P1, R1h, Lp):
    """(2*R1h, Lp): rows (parity, channel, pooled-pos) compute pre-ReLU conv1 outputs at
    t = 2p + parity; column L (the ones-row of the input slab) carries conv1.bias; one
    extra constant-1 row per parity half survives ReLU+maxpool1 to feed later biases."""
    C1, _, K = w1.shape
    n1 = C1 * P1
    par, c, p, k = np.indices((2, C1, P1, K))
    rows = (par * R1h + c * P1 + p).ravel()
    cols = (2 * p + par + k).ravel()                      # input position t + k
    m = jnp.zeros((2 * R1h, Lp), jnp.float32)
    m = m.at[rows, cols].set(w1[c.ravel(), 0, k.ravel()].astype(jnp.float32))
    parb, cb, pb = np.indices((2, C1, P1))
    rows_b = (parb * R1h + cb * P1 + pb).ravel()
    m = m.at[rows_b, L].set(b1[cb.ravel()].astype(jnp.float32))
    m = m.at[np.array([n1, R1h + n1]), L].set(1.0)        # ones-carry rows
    return m


def _build_conv2_matrix(w2, b2, P1, P2, R1h, R2h):
    """(2*R2h, R1h): conv2 at t2 = 2p + parity over the pooled conv1 rows (ordered
    c*P1 + pos); column C1*P1 is the carried ones-row and supplies conv2.bias; one
    constant-1 row per parity half survives ReLU+maxpool2."""
    C2, C1, K = w2.shape
    n1 = C1 * P1
    n2 = C2 * P2
    par, o, p, c, k = np.indices((2, C2, P2, C1, K))
    rows = (par * R2h + o * P2 + p).ravel()
    cols = (c * P1 + 2 * p + par + k).ravel()
    m = jnp.zeros((2 * R2h, R1h), jnp.float32)
    m = m.at[rows, cols].set(w2[o.ravel(), c.ravel(), k.ravel()].astype(jnp.float32))
    parb, ob, pb = np.indices((2, C2, P2))
    rows_b = (parb * R2h + ob * P2 + pb).ravel()
    m = m.at[rows_b, n1].set(b2[ob.ravel()].astype(jnp.float32))
    m = m.at[np.array([n2, R2h + n2]), n1].set(1.0)       # ones-carry rows
    return m


def _build_fc1_matrix(fc1w, fc1b, n2, R2h):
    """(H+1, R2h): fc1 weights over the flattened pooled conv2 rows, fc1.bias in the
    ones column (n2), plus one constant-1 row carried through ReLU for fc2.bias."""
    H = fc1w.shape[0]
    m = jnp.zeros((H + 1, R2h), jnp.float32)
    m = m.at[:H, :n2].set(fc1w.astype(jnp.float32))
    m = m.at[:H, n2].set(fc1b.astype(jnp.float32))
    m = m.at[H, n2].set(1.0)
    return m


def cnn_regressor_forward(x, params, tb_max=TB_MAX):
    w1, b1, w2, b2, fc1w, fc1b, fc2w, fc2b = params
    N, Cin, L = x.shape
    assert Cin == 1
    C1, _, K = w1.shape
    C2 = w2.shape[0]
    L1 = L - K + 1
    P1 = L1 // 2
    L2 = P1 - K + 1
    P2 = L2 // 2
    n1, n2 = C1 * P1, C2 * P2
    assert fc1w.shape[1] == n2

    R1h = _round_up(n1 + 1, 8)       # conv1 parity half-height (+ ones-carry row), x8-aligned
    R2h = _round_up(n2 + 1, 8)       # conv2 parity half-height (+ ones-carry row), x8-aligned
    Lp = _round_up(L + 1, 8)         # signal rows + ones row, padded to x8

    tb, num_tiles = _pick_batch_tile(N, tb_max)
    npad = num_tiles * tb

    # ---- wrapper-side weight prep (one-time layout plumbing); bf16 MXU operands ----
    w1k = _build_conv1_matrix(w1, b1, L, P1, R1h, Lp).astype(jnp.bfloat16)    # (2*R1h, Lp)
    w2k = _build_conv2_matrix(w2, b2, P1, P2, R1h, R2h).astype(jnp.bfloat16)  # (2*R2h, R1h)
    fc1k = _build_fc1_matrix(fc1w, fc1b, n2, R2h).astype(jnp.bfloat16)        # (65, R2h)
    fc2k = jnp.concatenate(
        [fc2w.astype(jnp.float32).reshape(1, -1),
         fc2b.astype(jnp.float32).reshape(1, 1)], axis=1)                     # (1, 65) f32

    # ---- input: (N,1,L) -> (Lp, npad) bf16. Batch on lanes; ones-row on ALL lanes. ----
    xt = jnp.zeros((Lp, npad), jnp.bfloat16)
    xt = xt.at[:L, :N].set(x[:, 0, :].astype(jnp.bfloat16).T)
    xt = xt.at[L, :].set(1.0)

    out = pl.pallas_call(
        cnn_regressor_kernel,
        out_shape=jax.ShapeDtypeStruct((num_tiles, 1, tb), jnp.float32),
        grid=(num_tiles,),
        in_specs=[
            pl.BlockSpec((Lp, tb), lambda i: (0, i)),       # one batch tile per grid step
            pl.BlockSpec(w1k.shape, lambda i: (0, 0)),      # constant blocks: DMA'd once
            pl.BlockSpec(w2k.shape, lambda i: (0, 0)),
            pl.BlockSpec(fc1k.shape, lambda i: (0, 0)),
            pl.BlockSpec(fc2k.shape, lambda i: (0, 0)),
        ],
        out_specs=pl.BlockSpec((1, 1, tb), lambda i: (i, 0, 0)),  # lane-dense per-step slab
        compiler_params=pltpu.CompilerParams(
            dimension_semantics=("parallel",),              # shard batch tiles over v7x TCs
            vmem_limit_bytes=32 * 1024 * 1024),
    )(xt, w1k, w2k, fc1k, fc2k)

    return out.reshape(-1)[:N]   # matches .squeeze(1)


def reference_forward(x, params):
    """Pure-JAX f32 reference mirroring the PyTorch forward pass."""
    w1, b1, w2, b2, fc1w, fc1b, fc2w, fc2b = params
    N, _, L = x.shape
    K = w1.shape[2]
    L1 = L - K + 1
    h = jnp.zeros((N, w1.shape[0], L1), jnp.float32) + b1[None, :, None]
    for dk in range(K):
        h = h + w1[None, :, 0, dk, None] * x[:, :, dk:dk + L1]
    h = jnp.maximum(h, 0.0)
    P1 = L1 // 2
    h = jnp.max(h[:, :, :2 * P1].reshape(N, h.shape[1], P1, 2), axis=-1)

    L2 = P1 - K + 1
    g = jnp.zeros((N, w2.shape[0], L2), jnp.float32) + b2[None, :, None]
    for dk in range(K):
        g = g + jnp.einsum('oc,ncl->nol', w2[:, :, dk], h[:, :, dk:dk + L2])
    g = jnp.maximum(g, 0.0)
    P2 = L2 // 2
    g = jnp.max(g[:, :, :2 * P2].reshape(N, g.shape[1], P2, 2), axis=-1)

    flat = g.reshape(N, -1)
    f1 = jnp.maximum(flat @ fc1w.T + fc1b, 0.0)
    out = f1 @ fc2w.T + fc2b
    return out[:, 0]


if __name__ == "__main__":
    N, L = 2, 32                       # batch=2, seq length=32
    C1, C2, K = 32, 64, KSIZE
    L1 = L - K + 1
    P1 = L1 // 2
    L2 = P1 - K + 1
    P2 = L2 // 2
    flat_size = C2 * P2                # 320

    key = jax.random.PRNGKey(0)
    ks = jax.random.split(key, 10)
    x = jax.random.normal(ks[0], (N, 1, L), dtype=jnp.float32)
    params = (
        0.1 * jax.random.normal(ks[1], (C1, 1, K), dtype=jnp.float32),       # conv1.weight
        0.1 * jax.random.normal(ks[2], (C1,), dtype=jnp.float32),            # conv1.bias
        0.1 * jax.random.normal(ks[3], (C2, C1, K), dtype=jnp.float32),      # conv2.weight
        0.1 * jax.random.normal(ks[4], (C2,), dtype=jnp.float32),            # conv2.bias
        0.1 * jax.random.normal(ks[5], (64, flat_size), dtype=jnp.float32),  # fc1.weight
        0.1 * jax.random.normal(ks[6], (64,), dtype=jnp.float32),            # fc1.bias
        0.1 * jax.random.normal(ks[7], (1, 64), dtype=jnp.float32),          # fc2.weight
        0.1 * jax.random.normal(ks[8], (1,), dtype=jnp.float32),             # fc2.bias
    )

    out = jax.block_until_ready(cnn_regressor_forward(x, params))
    ref = jax.block_until_ready(reference_forward(x, params))
    assert out.shape == (N,)
    # bf16 MXU operands with f32 accumulation -> ~1e-3..1e-2 deviation vs the pure-f32 ref.
    np.testing.assert_allclose(np.asarray(out), np.asarray(ref), rtol=5e-2, atol=5e-2)

    # Multi-tile + padding path: 130 samples -> 2 grid steps of 128 lanes (parallel axis).
    N2 = 130
    x2 = jax.random.normal(ks[9], (N2, 1, L), dtype=jnp.float32)
    out2 = jax.block_until_ready(cnn_regressor_forward(x2, params))
    ref2 = jax.block_until_ready(reference_forward(x2, params))
    assert out2.shape == (N2,)
    np.testing.assert_allclose(np.asarray(out2), np.asarray(ref2), rtol=5e-2, atol=5e-2)

    print("KERNEL_OK")
</pallas_src>

<mosaic_0001>
module attributes {stable_mosaic.version = 11 : i64} {
  func.func @cnn_regressor_kernel(%arg0: i32, %arg1: memref<40x128xbf16, #tpu.memory_space<vmem>>, %arg2: memref<912x40xbf16, #tpu.memory_space<vmem>>, %arg3: memref<656x456xbf16, #tpu.memory_space<vmem>>, %arg4: memref<65x328xbf16, #tpu.memory_space<vmem>>, %arg5: memref<1x65xf32, #tpu.memory_space<vmem>>, %arg6: memref<1x1x128xf32, #tpu.memory_space<vmem>>) attributes {dimension_semantics = [#tpu.dimension_semantics<parallel>], iteration_bounds = array<i64: 1>, scalar_prefetch = 0 : i64, scratch_operands = 0 : i64, tpu.core_type = #tpu.core_type<tc>, window_params = [{transform_indices = @transform_0, window_bounds = array<i64: 40, 128>}, {pipeline_mode = #tpu.pipeline_mode<synchronous>, transform_indices = @transform_1, window_bounds = array<i64: 912, 40>}, {pipeline_mode = #tpu.pipeline_mode<synchronous>, transform_indices = @transform_2, window_bounds = array<i64: 656, 456>}, {pipeline_mode = #tpu.pipeline_mode<synchronous>, transform_indices = @transform_3, window_bounds = array<i64: 65, 328>}, {pipeline_mode = #tpu.pipeline_mode<synchronous>, transform_indices = @transform_4, window_bounds = array<i64: 1, 65>}, {transform_indices = @transform_5, window_bounds = array<i64: 1, 1, 128>}]} {
    %c0 = arith.constant 0 : index
    %c0_0 = arith.constant 0 : index
    %0 = vector.load %arg1[%c0, %c0_0] : memref<40x128xbf16, #tpu.memory_space<vmem>>, vector<40x128xbf16>
    %c0_1 = arith.constant 0 : index
    %c0_2 = arith.constant 0 : index
    %1 = vector.load %arg2[%c0_1, %c0_2] : memref<912x40xbf16, #tpu.memory_space<vmem>>, vector<912x40xbf16>
    %cst = arith.constant dense<0.000000e+00> : vector<912x128xf32>
    %2 = tpu.matmul %1, %0, %cst {dimension_numbers = #tpu.dot_dimension_numbers<[1], [0], [0], [1], [0, 0, 1, 1], [], []>} : vector<912x40xbf16>, vector<40x128xbf16>, vector<912x128xf32> -> vector<912x128xf32>
    %cst_3 = arith.constant 0.000000e+00 : f32
    %3 = vector.broadcast %cst_3 : f32 to vector<912x128xf32>
    %4 = arith.maximumf %2, %3 : vector<912x128xf32>
    %5 = vector.extract_strided_slice %4 {offsets = [0, 0], sizes = [456, 128], strides = [1, 1]} : vector<912x128xf32> to vector<456x128xf32>
    %6 = vector.extract_strided_slice %4 {offsets = [456, 0], sizes = [456, 128], strides = [1, 1]} : vector<912x128xf32> to vector<456x128xf32>
    %7 = arith.maximumf %5, %6 : vector<456x128xf32>
    %c0_4 = arith.constant 0 : index
    %c0_5 = arith.constant 0 : index
    %8 = vector.load %arg3[%c0_4, %c0_5] : memref<656x456xbf16, #tpu.memory_space<vmem>>, vector<656x456xbf16>
    %9 = arith.truncf %7 : vector<456x128xf32> to vector<456x128xbf16>
    %cst_6 = arith.constant dense<0.000000e+00> : vector<656x128xf32>
    %10 = tpu.matmul %8, %9, %cst_6 {dimension_numbers = #tpu.dot_dimension_numbers<[1], [0], [0], [1], [0, 0, 1, 1], [], []>} : vector<656x456xbf16>, vector<456x128xbf16>, vector<656x128xf32> -> vector<656x128xf32>
    %cst_7 = arith.constant 0.000000e+00 : f32
    %11 = vector.broadcast %cst_7 : f32 to vector<656x128xf32>
    %12 = arith.maximumf %10, %11 : vector<656x128xf32>
    %13 = vector.extract_strided_slice %12 {offsets = [0, 0], sizes = [328, 128], strides = [1, 1]} : vector<656x128xf32> to vector<328x128xf32>
    %14 = vector.extract_strided_slice %12 {offsets = [328, 0], sizes = [328, 128], strides = [1, 1]} : vector<656x128xf32> to vector<328x128xf32>
    %15 = arith.maximumf %13, %14 : vector<328x128xf32>
    %c0_8 = arith.constant 0 : index
    %c0_9 = arith.constant 0 : index
    %16 = vector.load %arg4[%c0_8, %c0_9] : memref<65x328xbf16, #tpu.memory_space<vmem>>, vector<65x328xbf16>
    %17 = arith.truncf %15 : vector<328x128xf32> to vector<328x128xbf16>
    %cst_10 = arith.constant dense<0.000000e+00> : vector<65x128xf32>
    %18 = tpu.matmul %16, %17, %cst_10 {dimension_numbers = #tpu.dot_dimension_numbers<[1], [0], [0], [1], [0, 0, 1, 1], [], []>} : vector<65x328xbf16>, vector<328x128xbf16>, vector<65x128xf32> -> vector<65x128xf32>
    %cst_11 = arith.constant 0.000000e+00 : f32
    %19 = vector.broadcast %cst_11 : f32 to vector<65x128xf32>
    %20 = arith.maximumf %18, %19 : vector<65x128xf32>
    %c0_12 = arith.constant 0 : index
    %c0_13 = arith.constant 0 : index
    %21 = vector.load %arg5[%c0_12, %c0_13] : memref<1x65xf32, #tpu.memory_space<vmem>>, vector<1x65xf32>
    %cst_14 = arith.constant dense<0.000000e+00> : vector<1x128xf32>
    %22 = tpu.matmul %21, %20, %cst_14 {dimension_numbers = #tpu.dot_dimension_numbers<[1], [0], [0], [1], [0, 0, 1, 1], [], []>} : vector<1x65xf32>, vector<65x128xf32>, vector<1x128xf32> -> vector<1x128xf32>
    %23 = vector.shape_cast %22 : vector<1x128xf32> to vector<1x1x128xf32>
    %c0_15 = arith.constant 0 : index
    %c0_16 = arith.constant 0 : index
    %c0_17 = arith.constant 0 : index
    %24 = vector.load %arg6[%c0_15, %c0_16, %c0_17] : memref<1x1x128xf32, #tpu.memory_space<vmem>>, vector<1x1x128xf32>
    tpu.vector_store %arg6[%c0_15, %c0_16, %c0_17], %23 {strides = array<i32>} : memref<1x1x128xf32, #tpu.memory_space<vmem>>, vector<1x1x128xf32>,
    return
  }
  func.func @transform_0(%arg0: i32) -> (i32, i32) {
    %c0_i32 = arith.constant 0 : i32
    %c0_i32_0 = arith.constant 0 : i32
    return %c0_i32, %arg0 : i32, i32
  }
  func.func @transform_1(%arg0: i32) -> (i32, i32) {
    %c0_i32 = arith.constant 0 : i32
    %c0_i32_0 = arith.constant 0 : i32
    %c0_i32_1 = arith.constant 0 : i32
    return %c0_i32, %c0_i32_0 : i32, i32
  }
  func.func @transform_2(%arg0: i32) -> (i32, i32) {
    %c0_i32 = arith.constant 0 : i32
    %c0_i32_0 = arith.constant 0 : i32
    %c0_i32_1 = arith.constant 0 : i32
    return %c0_i32, %c0_i32_0 : i32, i32
  }
  func.func @transform_3(%arg0: i32) -> (i32, i32) {
    %c0_i32 = arith.constant 0 : i32
    %c0_i32_0 = arith.constant 0 : i32
    %c0_i32_1 = arith.constant 0 : i32
    return %c0_i32, %c0_i32_0 : i32, i32
  }
  func.func @transform_4(%arg0: i32) -> (i32, i32) {
    %c0_i32 = arith.constant 0 : i32
    %c0_i32_0 = arith.constant 0 : i32
    %c0_i32_1 = arith.constant 0 : i32
    return %c0_i32, %c0_i32_0 : i32, i32
  }
  func.func @transform_5(%arg0: i32) -> (i32, i32, i32) {
    %c0_i32 = arith.constant 0 : i32
    %c0_i32_0 = arith.constant 0 : i32
    %c0_i32_1 = arith.constant 0 : i32
    return %arg0, %c0_i32, %c0_i32_0 : i32, i32, i32
  }
}

</mosaic_0001>

<llo_original>
// kernel: tpu_custom_call.1
$region0: #{tpu_custom_call.1}
  #allocation0 [shape = 'u32[]', space=smem, size = 0x4, offset = 0x4, fixed_abs, tag = 'smem constant byte address 0x4 - core index']
  #allocation1 [shape = 'u32[144,128]{1,0:T(1,128)}', space=vmem, size = 0x12000, scoped, tag = 'internal scratch']
  %s0 = inlined_call_operand.vmem [shape: bf16[40,128], index: 0, kind: input, shape index: {}]
  %s1 = inlined_call_operand.vmem [shape: bf16[912,40], index: 1, kind: input, shape index: {}]
  %s2 = inlined_call_operand.hbm [shape: bf16[656,456], index: 2, kind: input, shape index: {}]
  %s3 = inlined_call_operand.vmem [shape: bf16[65,328], index: 3, kind: input, shape index: {}]
  %s4 = inlined_call_operand.vmem [shape: f32[1,65], index: 4, kind: input, shape index: {}]
  %s5 = inlined_call_operand.hbm [shape: f32[1,1,128], index: 5, kind: output, shape index: {}]
  %s6 = sld [smem:[#allocation0]]
  $region34: #{tpu_custom_call.1} parent=0
    _
  %s8 = ssub.s32 1, %s6
  %s9 = scalar_select 0, %s8, %s6
  $region1: #{tpu_custom_call.1} parent=0
    #allocation2 [shape = 'u8[671744]{0}', space=vmem, size = 0xa4000, scoped, tag = 'input window, operand 2, single buffered']
    #allocation3 [shape = 's32[1]{0}', space=sflag, size = 0x4, scoped, tag = 'scoped memory for tpu_custom_call.1']
    #allocation4 [shape = 's32[1]{0}', space=sflag, size = 0x4, scoped, tag = 'scoped memory for tpu_custom_call.1']
    #allocation5 [shape = 'u8[512]{0}', space=vmem, size = 0x400, scoped, tag = 'output window, operand 0, single buffered']
    %10 = vsyncpa [#allocation3], 0
    %11 = vsyncpa [#allocation4], 0
    // Predicated region
    $region2: #{tpu_custom_call.1} parent=1 // pred_check
      _
    $region3: #{tpu_custom_call.1} parent=1 // pred_check_branch
      %13 = sbr.rel (0) target = $region5
    $region4: #{tpu_custom_call.1} parent=1 // pred_region
      _
    $region5: #{tpu_custom_call.1} parent=1 // pred_fallthru
      _
    // Predicated region
    $region6: #{tpu_custom_call.1} parent=1 // pred_check
      _
    $region7: #{tpu_custom_call.1} parent=1 // pred_check_branch
      %15 = sbr.rel (0) target = $region9
    $region8: #{tpu_custom_call.1} parent=1 // pred_region
      _
    $region9: #{tpu_custom_call.1} parent=1 // pred_fallthru
      _
    // Predicated region
    $region10: #{tpu_custom_call.1} parent=1 // pred_check
      _
    $region11: #{tpu_custom_call.1} parent=1 // pred_check_branch
      %17 = sbr.rel (0) target = $region13
    $region12: #{tpu_custom_call.1} parent=1 // pred_region
      %s19 = ssub.s32 20992, 20992
      %20 = vsyncadd [#allocation3], %s19
      %s21 = sshll.u32 [#allocation2], 4
      %s22 = int_to_ptr.vmem [resolvable:$true] %s21
      %27 = dma.hbm_to_vmem [thread:$0]  %s2, 20992, %s22, [#allocation3], 256, 256, 16
    $region13: #{tpu_custom_call.1} parent=1 // pred_fallthru
      _
    // Predicated region
    $region14: #{tpu_custom_call.1} parent=1 // pred_check
      _
    $region15: #{tpu_custom_call.1} parent=1 // pred_check_branch
      %29 = sbr.rel (0) target = $region17
    $region16: #{tpu_custom_call.1} parent=1 // pred_region
      _
    $region17: #{tpu_custom_call.1} parent=1 // pred_fallthru
      _
    // Predicated region
    $region18: #{tpu_custom_call.1} parent=1 // pred_check
      _
    $region19: #{tpu_custom_call.1} parent=1 // pred_check_branch
      %31 = sbr.rel (0) target = $region21
    $region20: #{tpu_custom_call.1} parent=1 // pred_region
      _
    $region21: #{tpu_custom_call.1} parent=1 // pred_fallthru
      _
    // Predicated region
    $region22: #{tpu_custom_call.1} parent=1 // pred_check
      _
    $region23: #{tpu_custom_call.1} parent=1 // pred_check_branch
      %33 = sbr.rel (0) target = $region25
    $region24: #{tpu_custom_call.1} parent=1 // pred_region
      %34 = dma.done [#allocation3], 20992
    $region25: #{tpu_custom_call.1} parent=1 // pred_fallthru
      _
    %v36 = vld [vmem:[%s0] sm:$0xf]
    %v37 = vld [vmem:[%s0 + $0x4] sm:$0xf]
    %v38 = vld [vmem:[%s0 + $0x8] sm:$0xf]
    %v39 = vld [vmem:[%s0 + $0xc] sm:$0xf]
    %v40 = vld [vmem:[%s0 + $0x10] sm:$0xf]
    %v41 = vld [vmem:[%s1] sm:$0xf]
    %v42 = vld [vmem:[%s1 + $0x4] sm:$0xf]
    %v43 = vld [vmem:[%s1 + $0x8] sm:$0xf]
    %v44 = vld [vmem:[%s1 + $0xc] sm:$0xf]
    %v45 = vld [vmem:[%s1 + $0x10] sm:$0xf]
    %v46 = vld [vmem:[%s1 + $0x14] sm:$0xf]
    %v47 = vld [vmem:[%s1 + $0x18] sm:$0xf]
    %v48 = vld [vmem:[%s1 + $0x1c] sm:$0xf]
    %v49 = vld [vmem:[%s1 + $0x20] sm:$0xf]
    %v50 = vld [vmem:[%s1 + $0x24] sm:$0xf]
    %v51 = vld [vmem:[%s1 + $0x28] sm:$0xf]
    %v52 = vld [vmem:[%s1 + $0x2c] sm:$0xf]
    %v53 = vld [vmem:[%s1 + $0x30] sm:$0xf]
    %v54 = vld [vmem:[%s1 + $0x34] sm:$0xf]
    %v55 = vld [vmem:[%s1 + $0x38] sm:$0xf]
    %v56 = vld [vmem:[%s1 + $0x3c] sm:$0xf]
    %v57 = vld [vmem:[%s1 + $0x40] sm:$0xf]
    %v58 = vld [vmem:[%s1 + $0x44] sm:$0xf]
    %v59 = vld [vmem:[%s1 + $0x48] sm:$0xf]
    %v60 = vld [vmem:[%s1 + $0x4c] sm:$0xf]
    %v61 = vld [vmem:[%s1 + $0x50] sm:$0xf]
    %v62 = vld [vmem:[%s1 + $0x54] sm:$0xf]
    %v63 = vld [vmem:[%s1 + $0x58] sm:$0xf]
    %v64 = vld [vmem:[%s1 + $0x5c] sm:$0xf]
    %v65 = vld [vmem:[%s1 + $0x60] sm:$0xf]
    %v66 = vld [vmem:[%s1 + $0x64] sm:$0xf]
    %v67 = vld [vmem:[%s1 + $0x68] sm:$0xf]
    %v68 = vld [vmem:[%s1 + $0x6c] sm:$0xf]
    %v69 = vld [vmem:[%s1 + $0x70] sm:$0xf]
    %v70 = vld [vmem:[%s1 + $0x74] sm:$0xf]
    %v71 = vld [vmem:[%s1 + $0x78] sm:$0xf]
    %v72 = vld [vmem:[%s1 + $0x7c] sm:$0xf]
    %v73 = vld [vmem:[%s1 + $0x80] sm:$0xf]
    %v74 = vld [vmem:[%s1 + $0x84] sm:$0xf]
    %v75 = vld [vmem:[%s1 + $0x88] sm:$0xf]
    %v76 = vld [vmem:[%s1 + $0x8c] sm:$0xf]
    %v77 = vld [vmem:[%s1 + $0x90] sm:$0xf]
    %v78 = vld [vmem:[%s1 + $0x94] sm:$0xf]
    %v79 = vld [vmem:[%s1 + $0x98] sm:$0xf]
    %v80 = vld [vmem:[%s1 + $0x9c] sm:$0xf]
    %v81 = vld [vmem:[%s1 + $0xa0] sm:$0xf]
    %v82 = vld [vmem:[%s1 + $0xa4] sm:$0xf]
    %v83 = vld [vmem:[%s1 + $0xa8] sm:$0xf]
    %v84 = vld [vmem:[%s1 + $0xac] sm:$0xf]
    %v85 = vld [vmem:[%s1 + $0xb0] sm:$0xf]
    %v86 = vld [vmem:[%s1 + $0xb4] sm:$0xf]
    %v87 = vld [vmem:[%s1 + $0xb8] sm:$0xf]
    %v88 = vld [vmem:[%s1 + $0xbc] sm:$0xf]
    %v89 = vld [vmem:[%s1 + $0xc0] sm:$0xf]
    %v90 = vld [vmem:[%s1 + $0xc4] sm:$0xf]
    %v91 = vld [vmem:[%s1 + $0xc8] sm:$0xf]
    %v92 = vld [vmem:[%s1 + $0xcc] sm:$0xf]
    %v93 = vld [vmem:[%s1 + $0xd0] sm:$0xf]
    %v94 = vld [vmem:[%s1 + $0xd4] sm:$0xf]
    %v95 = vld [vmem:[%s1 + $0xd8] sm:$0xf]
    %v96 = vld [vmem:[%s1 + $0xdc] sm:$0xf]
    %v97 = vld [vmem:[%s1 + $0xe0] sm:$0xf]
    %v98 = vld [vmem:[%s1 + $0xe4] sm:$0xf]
    %v99 = vld [vmem:[%s1 + $0xe8] sm:$0xf]
    %v100 = vld [vmem:[%s1 + $0xec] sm:$0xf]
    %v101 = vld [vmem:[%s1 + $0xf0] sm:$0xf]
    %v102 = vld [vmem:[%s1 + $0xf4] sm:$0xf]
    %v103 = vld [vmem:[%s1 + $0xf8] sm:$0xf]
    %v104 = vld [vmem:[%s1 + $0xfc] sm:$0xf]
    %v105 = vld [vmem:[%s1 + $0x100] sm:$0xf]
    %v106 = vld [vmem:[%s1 + $0x104] sm:$0xf]
    %v107 = vld [vmem:[%s1 + $0x108] sm:$0xf]
    %v108 = vld [vmem:[%s1 + $0x10c] sm:$0xf]
    %v109 = vld [vmem:[%s1 + $0x110] sm:$0xf]
    %v110 = vld [vmem:[%s1 + $0x114] sm:$0xf]
    %v111 = vld [vmem:[%s1 + $0x118] sm:$0xf]
    %v112 = vld [vmem:[%s1 + $0x11c] sm:$0xf]
    %v113 = vld [vmem:[%s1 + $0x120] sm:$0xf]
    %v114 = vld [vmem:[%s1 + $0x124] sm:$0xf]
    %v115 = vld [vmem:[%s1 + $0x128] sm:$0xf]
    %v116 = vld [vmem:[%s1 + $0x12c] sm:$0xf]
    %v117 = vld [vmem:[%s1 + $0x130] sm:$0xf]
    %v118 = vld [vmem:[%s1 + $0x134] sm:$0xf]
    %v119 = vld [vmem:[%s1 + $0x138] sm:$0xf]
    %v120 = vld [vmem:[%s1 + $0x13c] sm:$0xf]
    %v121 = vld [vmem:[%s1 + $0x140] sm:$0xf]
    %v122 = vld [vmem:[%s1 + $0x144] sm:$0xf]
    %v123 = vld [vmem:[%s1 + $0x148] sm:$0xf]
    %v124 = vld [vmem:[%s1 + $0x14c] sm:$0xf]
    %v125 = vld [vmem:[%s1 + $0x150] sm:$0xf]
    %v126 = vld [vmem:[%s1 + $0x154] sm:$0xf]
    %v127 = vld [vmem:[%s1 + $0x158] sm:$0xf]
    %v128 = vld [vmem:[%s1 + $0x15c] sm:$0xf]
    %v129 = vld [vmem:[%s1 + $0x160] sm:$0xf]
    %v130 = vld [vmem:[%s1 + $0x164] sm:$0xf]
    %v131 = vld [vmem:[%s1 + $0x168] sm:$0xf]
    %v132 = vld [vmem:[%s1 + $0x16c] sm:$0xf]
    %v133 = vld [vmem:[%s1 + $0x170] sm:$0xf]
    %v134 = vld [vmem:[%s1 + $0x174] sm:$0xf]
    %v135 = vld [vmem:[%s1 + $0x178] sm:$0xf]
    %v136 = vld [vmem:[%s1 + $0x17c] sm:$0xf]
    %v137 = vld [vmem:[%s1 + $0x180] sm:$0xf]
    %v138 = vld [vmem:[%s1 + $0x184] sm:$0xf]
    %v139 = vld [vmem:[%s1 + $0x188] sm:$0xf]
    %v140 = vld [vmem:[%s1 + $0x18c] sm:$0xf]
    %v141 = vld [vmem:[%s1 + $0x190] sm:$0xf]
    %v142 = vld [vmem:[%s1 + $0x194] sm:$0xf]
    %v143 = vld [vmem:[%s1 + $0x198] sm:$0xf]
    %v144 = vld [vmem:[%s1 + $0x19c] sm:$0xf]
    %v145 = vld [vmem:[%s1 + $0x1a0] sm:$0xf]
    %v146 = vld [vmem:[%s1 + $0x1a4] sm:$0xf]
    %v147 = vld [vmem:[%s1 + $0x1a8] sm:$0xf]
    %v148 = vld [vmem:[%s1 + $0x1ac] sm:$0xf]
    %v149 = vld [vmem:[%s1 + $0x1b0] sm:$0xf]
    %v150 = vld [vmem:[%s1 + $0x1b4] sm:$0xf]
    %v151 = vld [vmem:[%s1 + $0x1b8] sm:$0xf]
    %v152 = vld [vmem:[%s1 + $0x1bc] sm:$0xf]
    %v153 = vld [vmem:[%s1 + $0x1c0] sm:$0xf]
    %v154 = vld [vmem:[%s1 + $0x1c4] sm:$0xf]
    %v269 = vunpack.c.l.b16 %v41
    %v270 = vunpack.c.l.b16 %v42
    %v271 = vunpack.c.l.b16 %v43
    %v272 = vunpack.c.l.b16 %v44
    %v273 = vunpack.c.l.b16 %v45
    %v274 = vunpack.c.l.b16 %v46
    %v275 = vunpack.c.l.b16 %v47
    %v276 = vunpack.c.l.b16 %v48
    %v277 = vunpack.c.l.b16 %v49
    %v278 = vunpack.c.l.b16 %v50
    %v279 = vunpack.c.l.b16 %v51
    %v280 = vunpack.c.l.b16 %v52
    %v281 = vunpack.c.l.b16 %v53
    %v282 = vunpack.c.l.b16 %v54
    %v283 = vunpack.c.l.b16 %v55
    %v284 = vunpack.c.l.b16 %v56
    %v285 = vunpack.c.l.b16 %v57
    %v286 = vunpack.c.l.b16 %v58
    %v287 = vunpack.c.l.b16 %v59
    %v288 = vunpack.c.l.b16 %v60
    %v289 = vunpack.c.l.b16 %v61
    %v290 = vunpack.c.l.b16 %v62
    %v291 = vunpack.c.l.b16 %v63
    %v292 = vunpack.c.l.b16 %v64
    %v293 = vunpack.c.l.b16 %v65
    %v294 = vunpack.c.l.b16 %v66
    %v295 = vunpack.c.l.b16 %v67
    %v296 = vunpack.c.l.b16 %v68
    %v297 = vunpack.c.l.b16 %v69
    %v298 = vunpack.c.l.b16 %v70
    %v299 = vunpack.c.l.b16 %v71
    %v300 = vunpack.c.l.b16 %v72
    %v301 = vunpack.c.l.b16 %v73
    %v302 = vunpack.c.l.b16 %v74
    %v303 = vunpack.c.l.b16 %v75
    %v304 = vunpack.c.l.b16 %v76
    %v305 = vunpack.c.l.b16 %v77
    %v306 = vunpack.c.l.b16 %v78
    %v307 = vunpack.c.l.b16 %v79
    %v308 = vunpack.c.l.b16 %v80
    %v309 = vunpack.c.l.b16 %v81
    %v310 = vunpack.c.l.b16 %v82
    %v311 = vunpack.c.l.b16 %v83
    %v312 = vunpack.c.l.b16 %v84
    %v313 = vunpack.c.l.b16 %v85
    %v314 = vunpack.c.l.b16 %v86
    %v315 = vunpack.c.l.b16 %v87
    %v316 = vunpack.c.l.b16 %v88
    %v317 = vunpack.c.l.b16 %v89
    %v318 = vunpack.c.l.b16 %v90
    %v319 = vunpack.c.l.b16 %v91
    %v320 = vunpack.c.l.b16 %v92
    %v321 = vunpack.c.l.b16 %v93
    %v322 = vunpack.c.l.b16 %v94
    %v323 = vunpack.c.l.b16 %v95
    %v324 = vunpack.c.l.b16 %v96
    %v325 = vunpack.c.l.b16 %v97
    %v326 = vunpack.c.l.b16 %v98
    %v327 = vunpack.c.l.b16 %v99
    %v328 = vunpack.c.l.b16 %v100
    %v329 = vunpack.c.l.b16 %v101
    %v330 = vunpack.c.l.b16 %v102
    %v331 = vunpack.c.l.b16 %v103
    %v332 = vunpack.c.l.b16 %v104
    %v333 = vunpack.c.l.b16 %v105
    %v334 = vunpack.c.l.b16 %v106
    %v335 = vunpack.c.l.b16 %v107
    %v336 = vunpack.c.l.b16 %v108
    %v337 = vunpack.c.l.b16 %v109
    %v338 = vunpack.c.l.b16 %v110
    %v339 = vunpack.c.l.b16 %v111
    %v340 = vunpack.c.l.b16 %v112
    %v341 = vunpack.c.l.b16 %v113
    %v342 = vunpack.c.l.b16 %v114
    %v343 = vunpack.c.l.b16 %v115
    %v344 = vunpack.c.l.b16 %v116
    %v345 = vunpack.c.l.b16 %v117
    %v346 = vunpack.c.l.b16 %v118
    %v347 = vunpack.c.l.b16 %v119
    %v348 = vunpack.c.l.b16 %v120
    %v349 = vunpack.c.l.b16 %v121
    %v350 = vunpack.c.l.b16 %v122
    %v351 = vunpack.c.l.b16 %v123
    %v352 = vunpack.c.l.b16 %v124
    %v353 = vunpack.c.l.b16 %v125
    %v354 = vunpack.c.l.b16 %v126
    %v355 = vunpack.c.l.b16 %v127
    %v356 = vunpack.c.l.b16 %v128
    %v357 = vunpack.c.l.b16 %v129
    %v358 = vunpack.c.l.b16 %v130
    %v359 = vunpack.c.l.b16 %v131
    %v360 = vunpack.c.l.b16 %v132
    %v361 = vunpack.c.l.b16 %v133
    %v362 = vunpack.c.l.b16 %v134
    %v363 = vunpack.c.l.b16 %v135
    %v364 = vunpack.c.l.b16 %v136
    %v365 = vunpack.c.l.b16 %v137
    %v366 = vunpack.c.l.b16 %v138
    %v367 = vunpack.c.l.b16 %v139
    %v368 = vunpack.c.l.b16 %v140
    %v369 = vunpack.c.l.b16 %v141
    %v370 = vunpack.c.l.b16 %v142
    %v371 = vunpack.c.l.b16 %v143
    %v372 = vunpack.c.l.b16 %v144
    %v373 = vunpack.c.l.b16 %v145
    %v374 = vunpack.c.l.b16 %v146
    %v375 = vunpack.c.l.b16 %v147
    %v376 = vunpack.c.l.b16 %v148
    %v377 = vunpack.c.l.b16 %v149
    %v378 = vunpack.c.l.b16 %v150
    %v379 = vunpack.c.l.b16 %v151
    %v380 = vunpack.c.l.b16 %v152
    %v381 = vunpack.c.l.b16 %v153
    %v382 = vunpack.c.l.b16 %v154
    %v383 = vpack.c.b16 %v270, %v269
    %v384 = vpack.c.b16 %v272, %v271
    %v385 = vpack.c.b16 %v274, %v273
    %v386 = vpack.c.b16 %v276, %v275
    %v387 = vpack.c.b16 %v278, %v277
    %v388 = vpack.c.b16 %v280, %v279
    %v389 = vpack.c.b16 %v282, %v281
    %v390 = vpack.c.b16 %v284, %v283
    %v391 = vpack.c.b16 %v286, %v285
    %v392 = vpack.c.b16 %v288, %v287
    %v393 = vpack.c.b16 %v290, %v289
    %v394 = vpack.c.b16 %v292, %v291
    %v395 = vpack.c.b16 %v294, %v293
    %v396 = vpack.c.b16 %v296, %v295
    %v397 = vpack.c.b16 %v298, %v297
    %v398 = vpack.c.b16 %v300, %v299
    %v399 = vpack.c.b16 %v302, %v301
    %v400 = vpack.c.b16 %v304, %v303
    %v401 = vpack.c.b16 %v306, %v305
    %v402 = vpack.c.b16 %v308, %v307
    %v403 = vpack.c.b16 %v310, %v309
    %v404 = vpack.c.b16 %v312, %v311
    %v405 = vpack.c.b16 %v314, %v313
    %v406 = vpack.c.b16 %v316, %v315
    %v407 = vpack.c.b16 %v318, %v317
    %v408 = vpack.c.b16 %v320, %v319
    %v409 = vpack.c.b16 %v322, %v321
    %v410 = vpack.c.b16 %v324, %v323
    %v411 = vpack.c.b16 %v326, %v325
    %v412 = vpack.c.b16 %v328, %v327
    %v413 = vpack.c.b16 %v330, %v329
    %v414 = vpack.c.b16 %v332, %v331
    %v415 = vpack.c.b16 %v334, %v333
    %v416 = vpack.c.b16 %v336, %v335
    %v417 = vpack.c.b16 %v338, %v337
    %v418 = vpack.c.b16 %v340, %v339
    %v419 = vpack.c.b16 %v342, %v341
    %v420 = vpack.c.b16 %v344, %v343
    %v421 = vpack.c.b16 %v346, %v345
    %v422 = vpack.c.b16 %v348, %v347
    %v423 = vpack.c.b16 %v350, %v349
    %v424 = vpack.c.b16 %v352, %v351
    %v425 = vpack.c.b16 %v354, %v353
    %v426 = vpack.c.b16 %v356, %v355
    %v427 = vpack.c.b16 %v358, %v357
    %v428 = vpack.c.b16 %v360, %v359
    %v429 = vpack.c.b16 %v362, %v361
    %v430 = vpack.c.b16 %v364, %v363
    %v431 = vpack.c.b16 %v366, %v365
    %v432 = vpack.c.b16 %v368, %v367
    %v433 = vpack.c.b16 %v370, %v369
    %v434 = vpack.c.b16 %v372, %v371
    %v435 = vpack.c.b16 %v374, %v373
    %v436 = vpack.c.b16 %v376, %v375
    %v437 = vpack.c.b16 %v378, %v377
    %v438 = vpack.c.b16 %v380, %v379
    %v439 = vpack.c.b16 %v382, %v381
    %v445 = vunpack.c.l.b16 %v36
    %v446 = vunpack.c.l.b16 %v37
    %v447 = vunpack.c.l.b16 %v38
    %v448 = vunpack.c.l.b16 %v39
    %v449 = vunpack.c.l.b16 %v40
    %v450 = vpack.c.b16 %v446, %v445
    %v451 = vpack.c.b16 %v448, %v447
    %v452 = vpack.c.b16 %v449, %v449
    %vm455 = vcmask 326656
    %v457 = vsel %vm455, %v383, 0
    %v460 = vsel %vm455, %v384, 0
    %v463 = vsel %vm455, %v385, 0
    %v466 = vsel %vm455, %v386, 0
    %v469 = vsel %vm455, %v387, 0
    %v472 = vsel %vm455, %v388, 0
    %v475 = vsel %vm455, %v389, 0
    %v478 = vsel %vm455, %v390, 0
    %v481 = vsel %vm455, %v391, 0
    %v484 = vsel %vm455, %v392, 0
    %v487 = vsel %vm455, %v393, 0
    %v490 = vsel %vm455, %v394, 0
    %v493 = vsel %vm455, %v395, 0
    %v496 = vsel %vm455, %v396, 0
    %v499 = vsel %vm455, %v397, 0
    %v502 = vsel %vm455, %v398, 0
    %v505 = vsel %vm455, %v399, 0
    %v508 = vsel %vm455, %v400, 0
    %v511 = vsel %vm455, %v401, 0
    %v514 = vsel %vm455, %v402, 0
    %v517 = vsel %vm455, %v403, 0
    %v520 = vsel %vm455, %v404, 0
    %v523 = vsel %vm455, %v405, 0
    %v526 = vsel %vm455, %v406, 0
    %v529 = vsel %vm455, %v407, 0
    %v532 = vsel %vm455, %v408, 0
    %v535 = vsel %vm455, %v409, 0
    %v538 = vsel %vm455, %v410, 0
    %v541 = vsel %vm455, %v411, 0
    %v544 = vsel %vm455, %v412, 0
    %v547 = vsel %vm455, %v413, 0
    %v550 = vsel %vm455, %v414, 0
    %v553 = vsel %vm455, %v415, 0
    %v556 = vsel %vm455, %v416, 0
    %v559 = vsel %vm455, %v417, 0
    %v562 = vsel %vm455, %v418, 0
    %v565 = vsel %vm455, %v419, 0
    %v568 = vsel %vm455, %v420, 0
    %v571 = vsel %vm455, %v421, 0
    %v574 = vsel %vm455, %v422, 0
    %v577 = vsel %vm455, %v423, 0
    %v580 = vsel %vm455, %v424, 0
    %v583 = vsel %vm455, %v425, 0
    %v586 = vsel %vm455, %v426, 0
    %v589 = vsel %vm455, %v427, 0
    %v592 = vsel %vm455, %v428, 0
    %v595 = vsel %vm455, %v429, 0
    %v598 = vsel %vm455, %v430, 0
    %v601 = vsel %vm455, %v431, 0
    %v604 = vsel %vm455, %v432, 0
    %v607 = vsel %vm455, %v433, 0
    %v610 = vsel %vm455, %v434, 0
    %v613 = vsel %vm455, %v435, 0
    %v616 = vsel %vm455, %v436, 0
    %v619 = vsel %vm455, %v437, 0
    %v622 = vsel %vm455, %v438, 0
    %v625 = vsel %vm455, %v439, 0
    %vm627 = vcmask 1043456
    %v629 = vsel %vm627, %v452, 0
    %631 = vmatprep.subr.bf16.mxu0 0
    %632 = vmatpush1.bf16.msra.mxu0 %v450
    %633 = vmatprep.subr.bf16.mxu0 0
    %634 = vmatpush1.bf16.msra.mxu0 %v451
    %635 = vmatprep.subr.bf16.mxu0 0
    %636 = vmatpush1.bf16.msra.mxu0 %v629
    %637 = vmatprep.subr.bf16.mxu0 0
    %638 = vmatpush1.bf16.msra.mxu0 0
    %639 = vmatprep.subr.bf16.mxu0 0
    %640 = vmatpush1.bf16.msra.mxu0 0
    %641 = vmatprep.subr.bf16.mxu0 0
    %642 = vmatpush1.bf16.msra.mxu0 0
    %643 = vmatprep.subr.bf16.mxu0 0
    %644 = vmatpush1.bf16.msra.mxu0 0
    %645 = vmatprep.subr.bf16.mxu0 0
    %646 = vmatpush1.bf16.msra.mxu0 0
    %647 = vmatprep.subr.bf16.mxu0 0
    %648 = vmatpush1.bf16.msra.mxu0 0
    %649 = vmatprep.subr.bf16.mxu0 0
    %650 = vmatpush1.bf16.msra.mxu0 0
    %651 = vmatprep.subr.bf16.mxu0 0
    %652 = vmatpush1.bf16.msra.mxu0 0
    %653 = vmatprep.subr.bf16.mxu0 0
    %654 = vmatpush1.bf16.msra.mxu0 0
    %655 = vmatprep.subr.bf16.mxu0 0
    %656 = vmatpush1.bf16.msra.mxu0 0
    %657 = vmatprep.subr.bf16.mxu0 0
    %658 = vmatpush1.bf16.msra.mxu0 0
    %659 = vmatprep.subr.bf16.mxu0 0
    %660 = vmatpush1.bf16.msra.mxu0 0
    %661 = vmatprep.subr.bf16.mxu0 0
    %662 = vmatpush1.bf16.msra.mxu0 0
    %663 = vmatprep.mubr.bf16.mxu0 0
    %664 = vmatmul.mubr.bf16.gmra.mrb[0].mxu0 %v457
    %v665 = vpop.f32.mrb[0].mxu0
    %v666 = vadd.f32 0.0, %v665
    %v667 = vpop.f32.mrb[0].mxu0
    %v668 = vpop.f32.mrb[0].mxu0
    %v669 = vadd.f32 0.0, %v668
    %v670 = vpop.f32.mrb[0].mxu0
    %671 = vmatprep.mubr.bf16.mxu0 0
    %672 = vmatmul.mubr.bf16.gmra.mrb[0].mxu0 %v460
    %v673 = vpop.f32.mrb[0].mxu0
    %v674 = vadd.f32 0.0, %v673
    %v675 = vpop.f32.mrb[0].mxu0
    %v676 = vpop.f32.mrb[0].mxu0
    %v677 = vadd.f32 0.0, %v676
    %v678 = vpop.f32.mrb[0].mxu0
    %679 = vmatprep.mubr.bf16.mxu0 0
    %680 = vmatmul.mubr.bf16.gmra.mrb[0].mxu0 %v463
    %v681 = vpop.f32.mrb[0].mxu0
    %v682 = vadd.f32 0.0, %v681
    %v683 = vpop.f32.mrb[0].mxu0
    %v684 = vpop.f32.mrb[0].mxu0
    %v685 = vadd.f32 0.0, %v684
    %v686 = vpop.f32.mrb[0].mxu0
    %687 = vmatprep.mubr.bf16.mxu0 0
    %688 = vmatmul.mubr.bf16.gmra.mrb[0].mxu0 %v466
    %v689 = vpop.f32.mrb[0].mxu0
    %v690 = vadd.f32 0.0, %v689
    %v691 = vpop.f32.mrb[0].mxu0
    %v692 = vpop.f32.mrb[0].mxu0
    %v693 = vadd.f32 0.0, %v692
    %v694 = vpop.f32.mrb[0].mxu0
    %695 = vmatprep.mubr.bf16.mxu0 0
    %696 = vmatmul.mubr.bf16.gmra.mrb[0].mxu0 %v469
    %v697 = vpop.f32.mrb[0].mxu0
    %v698 = vadd.f32 0.0, %v697
    %v699 = vpop.f32.mrb[0].mxu0
    %v700 = vpop.f32.mrb[0].mxu0
    %v701 = vadd.f32 0.0, %v700
    %v702 = vpop.f32.mrb[0].mxu0
    %703 = vmatprep.mubr.bf16.mxu0 0
    %704 = vmatmul.mubr.bf16.gmra.mrb[0].mxu0 %v472
    %v705 = vpop.f32.mrb[0].mxu0
    %v706 = vadd.f32 0.0, %v705
    %v707 = vpop.f32.mrb[0].mxu0
    %v708 = vpop.f32.mrb[0].mxu0
    %v709 = vadd.f32 0.0, %v708
    %v710 = vpop.f32.mrb[0].mxu0
    %711 = vmatprep.mubr.bf16.mxu0 0
    %712 = vmatmul.mubr.bf16.gmra.mrb[0].mxu0 %v475
    %v713 = vpop.f32.mrb[0].mxu0
    %v714 = vadd.f32 0.0, %v713
    %v715 = vpop.f32.mrb[0].mxu0
    %v716 = vpop.f32.mrb[0].mxu0
    %v717 = vadd.f32 0.0, %v716
    %v718 = vpop.f32.mrb[0].mxu0
    %719 = vmatprep.mubr.bf16.mxu0 0
    %720 = vmatmul.mubr.bf16.gmra.mrb[0].mxu0 %v478
    %v721 = vpop.f32.mrb[0].mxu0
    %v722 = vadd.f32 0.0, %v721
    %v723 = vpop.f32.mrb[0].mxu0
    %v724 = vpop.f32.mrb[0].mxu0
    %v725 = vadd.f32 0.0, %v724
    %v726 = vpop.f32.mrb[0].mxu0
    %727 = vmatprep.mubr.bf16.mxu0 0
    %728 = vmatmul.mubr.bf16.gmra.mrb[0].mxu0 %v481
    %v729 = vpop.f32.mrb[0].mxu0
    %v730 = vadd.f32 0.0, %v729
    %v731 = vpop.f32.mrb[0].mxu0
    %v732 = vpop.f32.mrb[0].mxu0
    %v733 = vadd.f32 0.0, %v732
    %v734 = vpop.f32.mrb[0].mxu0
    %735 = vmatprep.mubr.bf16.mxu0 0
    %736 = vmatmul.mubr.bf16.gmra.mrb[0].mxu0 %v484
    %v737 = vpop.f32.mrb[0].mxu0
    %v738 = vadd.f32 0.0, %v737
    %v739 = vpop.f32.mrb[0].mxu0
    %v740 = vpop.f32.mrb[0].mxu0
    %v741 = vadd.f32 0.0, %v740
    %v742 = vpop.f32.mrb[0].mxu0
    %743 = vmatprep.mubr.bf16.mxu0 0
    %744 = vmatmul.mubr.bf16.gmra.mrb[0].mxu0 %v487
    %v745 = vpop.f32.mrb[0].mxu0
    %v746 = vadd.f32 0.0, %v745
    %v747 = vpop.f32.mrb[0].mxu0
    %v748 = vpop.f32.mrb[0].mxu0
    %v749 = vadd.f32 0.0, %v748
    %v750 = vpop.f32.mrb[0].mxu0
    %751 = vmatprep.mubr.bf16.mxu0 0
    %752 = vmatmul.mubr.bf16.gmra.mrb[0].mxu0 %v490
    %v753 = vpop.f32.mrb[0].mxu0
    %v754 = vadd.f32 0.0, %v753
    %v755 = vpop.f32.mrb[0].mxu0
    %v756 = vpop.f32.mrb[0].mxu0
    %v757 = vadd.f32 0.0, %v756
    %v758 = vpop.f32.mrb[0].mxu0
    %759 = vmatprep.mubr.bf16.mxu0 0
    %760 = vmatmul.mubr.bf16.gmra.mrb[0].mxu0 %v493
    %v761 = vpop.f32.mrb[0].mxu0
    %v762 = vadd.f32 0.0, %v761
    %v763 = vpop.f32.mrb[0].mxu0
    %v764 = vpop.f32.mrb[0].mxu0
    %v765 = vadd.f32 0.0, %v764
    %v766 = vpop.f32.mrb[0].mxu0
    %767 = vmatprep.mubr.bf16.mxu0 0
    %768 = vmatmul.mubr.bf16.gmra.mrb[0].mxu0 %v496
    %v769 = vpop.f32.mrb[0].mxu0
    %v770 = vadd.f32 0.0, %v769
    %v771 = vpop.f32.mrb[0].mxu0
    %v772 = vpop.f32.mrb[0].mxu0
    %v773 = vadd.f32 0.0, %v772
    %v774 = vpop.f32.mrb[0].mxu0
    %775 = vmatprep.mubr.bf16.mxu0 0
    %776 = vmatmul.mubr.bf16.gmra.mrb[0].mxu0 %v499
    %v777 = vpop.f32.mrb[0].mxu0
    %v778 = vadd.f32 0.0, %v777
    %v779 = vpop.f32.mrb[0].mxu0
    %v780 = vpop.f32.mrb[0].mxu0
    %v781 = vadd.f32 0.0, %v780
    %v782 = vpop.f32.mrb[0].mxu0
    %783 = vmatprep.mubr.bf16.mxu0 0
    %784 = vmatmul.mubr.bf16.gmra.mrb[0].mxu0 %v502
    %v785 = vpop.f32.mrb[0].mxu0
    %v786 = vadd.f32 0.0, %v785
    %v787 = vpop.f32.mrb[0].mxu0
    %v788 = vpop.f32.mrb[0].mxu0
    %v789 = vadd.f32 0.0, %v788
    %v790 = vpop.f32.mrb[0].mxu0
    %791 = vmatprep.mubr.bf16.mxu0 0
    %792 = vmatmul.mubr.bf16.gmra.mrb[0].mxu0 %v505
    %v793 = vpop.f32.mrb[0].mxu0
    %v794 = vadd.f32 0.0, %v793
    %v795 = vpop.f32.mrb[0].mxu0
    %v796 = vpop.f32.mrb[0].mxu0
    %v797 = vadd.f32 0.0, %v796
    %v798 = vpop.f32.mrb[0].mxu0
    %799 = vmatprep.mubr.bf16.mxu0 0
    %800 = vmatmul.mubr.bf16.gmra.mrb[0].mxu0 %v508
    %v801 = vpop.f32.mrb[0].mxu0
    %v802 = vadd.f32 0.0, %v801
    %v803 = vpop.f32.mrb[0].mxu0
    %v804 = vpop.f32.mrb[0].mxu0
    %v805 = vadd.f32 0.0, %v804
    %v806 = vpop.f32.mrb[0].mxu0
    %807 = vmatprep.mubr.bf16.mxu0 0
    %808 = vmatmul.mubr.bf16.gmra.mrb[0].mxu0 %v511
    %v809 = vpop.f32.mrb[0].mxu0
    %v810 = vadd.f32 0.0, %v809
    %v811 = vpop.f32.mrb[0].mxu0
    %v812 = vpop.f32.mrb[0].mxu0
    %v813 = vadd.f32 0.0, %v812
    %v814 = vpop.f32.mrb[0].mxu0
    %815 = vmatprep.mubr.bf16.mxu0 0
    %816 = vmatmul.mubr.bf16.gmra.mrb[0].mxu0 %v514
    %v817 = vpop.f32.mrb[0].mxu0
    %v818 = vadd.f32 0.0, %v817
    %v819 = vpop.f32.mrb[0].mxu0
    %v820 = vpop.f32.mrb[0].mxu0
    %v821 = vadd.f32 0.0, %v820
    %v822 = vpop.f32.mrb[0].mxu0
    %823 = vmatprep.mubr.bf16.mxu0 0
    %824 = vmatmul.mubr.bf16.gmra.mrb[0].mxu0 %v517
    %v825 = vpop.f32.mrb[0].mxu0
    %v826 = vadd.f32 0.0, %v825
    %v827 = vpop.f32.mrb[0].mxu0
    %v828 = vpop.f32.mrb[0].mxu0
    %v829 = vadd.f32 0.0, %v828
    %v830 = vpop.f32.mrb[0].mxu0
    %831 = vmatprep.mubr.bf16.mxu0 0
    %832 = vmatmul.mubr.bf16.gmra.mrb[0].mxu0 %v520
    %v833 = vpop.f32.mrb[0].mxu0
    %v834 = vadd.f32 0.0, %v833
    %v835 = vpop.f32.mrb[0].mxu0
    %v836 = vpop.f32.mrb[0].mxu0
    %v837 = vadd.f32 0.0, %v836
    %v838 = vpop.f32.mrb[0].mxu0
    %839 = vmatprep.mubr.bf16.mxu0 0
    %840 = vmatmul.mubr.bf16.gmra.mrb[0].mxu0 %v523
    %v841 = vpop.f32.mrb[0].mxu0
    %v842 = vadd.f32 0.0, %v841
    %v843 = vpop.f32.mrb[0].mxu0
    %v844 = vpop.f32.mrb[0].mxu0
    %v845 = vadd.f32 0.0, %v844
    %v846 = vpop.f32.mrb[0].mxu0
    %847 = vmatprep.mubr.bf16.mxu0 0
    %848 = vmatmul.mubr.bf16.gmra.mrb[0].mxu0 %v526
    %v849 = vpop.f32.mrb[0].mxu0
    %v850 = vadd.f32 0.0, %v849
    %v851 = vpop.f32.mrb[0].mxu0
    %v852 = vpop.f32.mrb[0].mxu0
    %v853 = vadd.f32 0.0, %v852
    %v854 = vpop.f32.mrb[0].mxu0
    %855 = vmatprep.mubr.bf16.mxu0 0
    %856 = vmatmul.mubr.bf16.gmra.mrb[0].mxu0 %v529
    %v857 = vpop.f32.mrb[0].mxu0
    %v858 = vadd.f32 0.0, %v857
    %v859 = vpop.f32.mrb[0].mxu0
    %v860 = vpop.f32.mrb[0].mxu0
    %v861 = vadd.f32 0.0, %v860
    %v862 = vpop.f32.mrb[0].mxu0
    %863 = vmatprep.mubr.bf16.mxu0 0
    %864 = vmatmul.mubr.bf16.gmra.mrb[0].mxu0 %v532
    %v865 = vpop.f32.mrb[0].mxu0
    %v866 = vadd.f32 0.0, %v865
    %v867 = vpop.f32.mrb[0].mxu0
    %v868 = vpop.f32.mrb[0].mxu0
    %v869 = vadd.f32 0.0, %v868
    %v870 = vpop.f32.mrb[0].mxu0
    %871 = vmatprep.mubr.bf16.mxu0 0
    %872 = vmatmul.mubr.bf16.gmra.mrb[0].mxu0 %v535
    %v873 = vpop.f32.mrb[0].mxu0
    %v874 = vadd.f32 0.0, %v873
    %v875 = vpop.f32.mrb[0].mxu0
    %v876 = vpop.f32.mrb[0].mxu0
    %v877 = vadd.f32 0.0, %v876
    %v878 = vpop.f32.mrb[0].mxu0
    %879 = vmatprep.mubr.bf16.mxu0 0
    %880 = vmatmul.mubr.bf16.gmra.mrb[0].mxu0 %v538
    %v881 = vpop.f32.mrb[0].mxu0
    %v882 = vadd.f32 0.0, %v881
    %v883 = vpop.f32.mrb[0].mxu0
    %v884 = vpop.f32.mrb[0].mxu0
    %v885 = vadd.f32 0.0, %v884
    %v886 = vpop.f32.mrb[0].mxu0
    %887 = vmatprep.mubr.bf16.mxu0 0
    %888 = vmatmul.mubr.bf16.gmra.mrb[0].mxu0 %v541
    %v889 = vpop.f32.mrb[0].mxu0
    %v890 = vadd.f32 0.0, %v889
    %v891 = vpop.f32.mrb[0].mxu0
    %v892 = vpop.f32.mrb[0].mxu0
    %v893 = vadd.f32 0.0, %v892
    %v894 = vpop.f32.mrb[0].mxu0
    %895 = vmatprep.mubr.bf16.mxu0 0
    %896 = vmatmul.mubr.bf16.gmra.mrb[0].mxu0 %v544
    %v897 = vpop.f32.mrb[0].mxu0
    %v898 = vadd.f32 0.0, %v897
    %v899 = vpop.f32.mrb[0].mxu0
    %v900 = vpop.f32.mrb[0].mxu0
    %v901 = vadd.f32 0.0, %v900
    %v902 = vpop.f32.mrb[0].mxu0
    %903 = vmatprep.mubr.bf16.mxu0 0
    %904 = vmatmul.mubr.bf16.gmra.mrb[0].mxu0 %v547
    %v905 = vpop.f32.mrb[0].mxu0
    %v906 = vadd.f32 0.0, %v905
    %v907 = vpop.f32.mrb[0].mxu0
    %v908 = vpop.f32.mrb[0].mxu0
    %v909 = vadd.f32 0.0, %v908
    %v910 = vpop.f32.mrb[0].mxu0
    %911 = vmatprep.mubr.bf16.mxu0 0
    %912 = vmatmul.mubr.bf16.gmra.mrb[0].mxu0 %v550
    %v913 = vpop.f32.mrb[0].mxu0
    %v914 = vadd.f32 0.0, %v913
    %v915 = vpop.f32.mrb[0].mxu0
    %v916 = vpop.f32.mrb[0].mxu0
    %v917 = vadd.f32 0.0, %v916
    %v918 = vpop.f32.mrb[0].mxu0
    %919 = vmatprep.mubr.bf16.mxu0 0
    %920 = vmatmul.mubr.bf16.gmra.mrb[0].mxu0 %v553
    %v921 = vpop.f32.mrb[0].mxu0
    %v922 = vadd.f32 0.0, %v921
    %v923 = vpop.f32.mrb[0].mxu0
    %v924 = vpop.f32.mrb[0].mxu0
    %v925 = vadd.f32 0.0, %v924
    %v926 = vpop.f32.mrb[0].mxu0
    %927 = vmatprep.mubr.bf16.mxu0 0
    %928 = vmatmul.mubr.bf16.gmra.mrb[0].mxu0 %v556
    %v929 = vpop.f32.mrb[0].mxu0
    %v930 = vadd.f32 0.0, %v929
    %v931 = vpop.f32.mrb[0].mxu0
    %v932 = vpop.f32.mrb[0].mxu0
    %v933 = vadd.f32 0.0, %v932
    %v934 = vpop.f32.mrb[0].mxu0
    %935 = vmatprep.mubr.bf16.mxu0 0
    %936 = vmatmul.mubr.bf16.gmra.mrb[0].mxu0 %v559
    %v937 = vpop.f32.mrb[0].mxu0
    %v938 = vadd.f32 0.0, %v937
    %v939 = vpop.f32.mrb[0].mxu0
    %v940 = vpop.f32.mrb[0].mxu0
    %v941 = vadd.f32 0.0, %v940
    %v942 = vpop.f32.mrb[0].mxu0
    %943 = vmatprep.mubr.bf16.mxu0 0
    %944 = vmatmul.mubr.bf16.gmra.mrb[0].mxu0 %v562
    %v945 = vpop.f32.mrb[0].mxu0
    %v946 = vadd.f32 0.0, %v945
    %v947 = vpop.f32.mrb[0].mxu0
    %v948 = vpop.f32.mrb[0].mxu0
    %v949 = vadd.f32 0.0, %v948
    %v950 = vpop.f32.mrb[0].mxu0
    %951 = vmatprep.mubr.bf16.mxu0 0
    %952 = vmatmul.mubr.bf16.gmra.mrb[0].mxu0 %v565
    %v953 = vpop.f32.mrb[0].mxu0
    %v954 = vadd.f32 0.0, %v953
    %v955 = vpop.f32.mrb[0].mxu0
    %v956 = vpop.f32.mrb[0].mxu0
    %v957 = vadd.f32 0.0, %v956
    %v958 = vpop.f32.mrb[0].mxu0
    %959 = vmatprep.mubr.bf16.mxu0 0
    %960 = vmatmul.mubr.bf16.gmra.mrb[0].mxu0 %v568
    %v961 = vpop.f32.mrb[0].mxu0
    %v962 = vadd.f32 0.0, %v961
    %v963 = vpop.f32.mrb[0].mxu0
    %v964 = vpop.f32.mrb[0].mxu0
    %v965 = vadd.f32 0.0, %v964
    %v966 = vpop.f32.mrb[0].mxu0
    %967 = vmatprep.mubr.bf16.mxu0 0
    %968 = vmatmul.mubr.bf16.gmra.mrb[0].mxu0 %v571
    %v969 = vpop.f32.mrb[0].mxu0
    %v970 = vadd.f32 0.0, %v969
    %v971 = vpop.f32.mrb[0].mxu0
    %v972 = vpop.f32.mrb[0].mxu0
    %v973 = vadd.f32 0.0, %v972
    %v974 = vpop.f32.mrb[0].mxu0
    %975 = vmatprep.mubr.bf16.mxu0 0
    %976 = vmatmul.mubr.bf16.gmra.mrb[0].mxu0 %v574
    %v977 = vpop.f32.mrb[0].mxu0
    %v978 = vadd.f32 0.0, %v977
    %v979 = vpop.f32.mrb[0].mxu0
    %v980 = vpop.f32.mrb[0].mxu0
    %v981 = vadd.f32 0.0, %v980
    %v982 = vpop.f32.mrb[0].mxu0
    %983 = vmatprep.mubr.bf16.mxu0 0
    %984 = vmatmul.mubr.bf16.gmra.mrb[0].mxu0 %v577
    %v985 = vpop.f32.mrb[0].mxu0
    %v986 = vadd.f32 0.0, %v985
    %v987 = vpop.f32.mrb[0].mxu0
    %v988 = vpop.f32.mrb[0].mxu0
    %v989 = vadd.f32 0.0, %v988
    %v990 = vpop.f32.mrb[0].mxu0
    %991 = vmatprep.mubr.bf16.mxu0 0
    %992 = vmatmul.mubr.bf16.gmra.mrb[0].mxu0 %v580
    %v993 = vpop.f32.mrb[0].mxu0
    %v994 = vadd.f32 0.0, %v993
    %v995 = vpop.f32.mrb[0].mxu0
    %v996 = vpop.f32.mrb[0].mxu0
    %v997 = vadd.f32 0.0, %v996
    %v998 = vpop.f32.mrb[0].mxu0
    %999 = vmatprep.mubr.bf16.mxu0 0
    %1000 = vmatmul.mubr.bf16.gmra.mrb[0].mxu0 %v583
    %v1001 = vpop.f32.mrb[0].mxu0
    %v1002 = vadd.f32 0.0, %v1001
    %v1003 = vpop.f32.mrb[0].mxu0
    %v1004 = vpop.f32.mrb[0].mxu0
    %v1005 = vadd.f32 0.0, %v1004
    %v1006 = vpop.f32.mrb[0].mxu0
    %1007 = vmatprep.mubr.bf16.mxu0 0
    %1008 = vmatmul.mubr.bf16.gmra.mrb[0].mxu0 %v586
    %v1009 = vpop.f32.mrb[0].mxu0
    %v1010 = vadd.f32 0.0, %v1009
    %v1011 = vpop.f32.mrb[0].mxu0
    %v1012 = vpop.f32.mrb[0].mxu0
    %v1013 = vadd.f32 0.0, %v1012
    %v1014 = vpop.f32.mrb[0].mxu0
    %1015 = vmatprep.mubr.bf16.mxu0 0
    %1016 = vmatmul.mubr.bf16.gmra.mrb[0].mxu0 %v589
    %v1017 = vpop.f32.mrb[0].mxu0
    %v1018 = vadd.f32 0.0, %v1017
    %v1019 = vpop.f32.mrb[0].mxu0
    %v1020 = vpop.f32.mrb[0].mxu0
    %v1021 = vadd.f32 0.0, %v1020
    %v1022 = vpop.f32.mrb[0].mxu0
    %1023 = vmatprep.mubr.bf16.mxu0 0
    %1024 = vmatmul.mubr.bf16.gmra.mrb[0].mxu0 %v592
    %v1025 = vpop.f32.mrb[0].mxu0
    %v1026 = vadd.f32 0.0, %v1025
    %v1027 = vpop.f32.mrb[0].mxu0
    %v1028 = vpop.f32.mrb[0].mxu0
    %v1029 = vadd.f32 0.0, %v1028
    %v1030 = vpop.f32.mrb[0].mxu0
    %1031 = vmatprep.mubr.bf16.mxu0 0
    %1032 = vmatmul.mubr.bf16.gmra.mrb[0].mxu0 %v595
    %v1033 = vpop.f32.mrb[0].mxu0
    %v1034 = vadd.f32 0.0, %v1033
    %v1035 = vpop.f32.mrb[0].mxu0
    %v1036 = vpop.f32.mrb[0].mxu0
    %v1037 = vadd.f32 0.0, %v1036
    %v1038 = vpop.f32.mrb[0].mxu0
    %1039 = vmatprep.mubr.bf16.mxu0 0
    %1040 = vmatmul.mubr.bf16.gmra.mrb[0].mxu0 %v598
    %v1041 = vpop.f32.mrb[0].mxu0
    %v1042 = vadd.f32 0.0, %v1041
    %v1043 = vpop.f32.mrb[0].mxu0
    %v1044 = vpop.f32.mrb[0].mxu0
    %v1045 = vadd.f32 0.0, %v1044
    %v1046 = vpop.f32.mrb[0].mxu0
    %1047 = vmatprep.mubr.bf16.mxu0 0
    %1048 = vmatmul.mubr.bf16.gmra.mrb[0].mxu0 %v601
    %v1049 = vpop.f32.mrb[0].mxu0
    %v1050 = vadd.f32 0.0, %v1049
    %v1051 = vpop.f32.mrb[0].mxu0
    %v1052 = vpop.f32.mrb[0].mxu0
    %v1053 = vadd.f32 0.0, %v1052
    %v1054 = vpop.f32.mrb[0].mxu0
    %1055 = vmatprep.mubr.bf16.mxu0 0
    %1056 = vmatmul.mubr.bf16.gmra.mrb[0].mxu0 %v604
    %v1057 = vpop.f32.mrb[0].mxu0
    %v1058 = vadd.f32 0.0, %v1057
    %v1059 = vpop.f32.mrb[0].mxu0
    %v1060 = vpop.f32.mrb[0].mxu0
    %v1061 = vadd.f32 0.0, %v1060
    %v1062 = vpop.f32.mrb[0].mxu0
    %1063 = vmatprep.mubr.bf16.mxu0 0
    %1064 = vmatmul.mubr.bf16.gmra.mrb[0].mxu0 %v607
    %v1065 = vpop.f32.mrb[0].mxu0
    %v1066 = vadd.f32 0.0, %v1065
    %v1067 = vpop.f32.mrb[0].mxu0
    %v1068 = vpop.f32.mrb[0].mxu0
    %v1069 = vadd.f32 0.0, %v1068
    %v1070 = vpop.f32.mrb[0].mxu0
    %1071 = vmatprep.mubr.bf16.mxu0 0
    %1072 = vmatmul.mubr.bf16.gmra.mrb[0].mxu0 %v610
    %v1073 = vpop.f32.mrb[0].mxu0
    %v1074 = vadd.f32 0.0, %v1073
    %v1075 = vpop.f32.mrb[0].mxu0
    %v1076 = vpop.f32.mrb[0].mxu0
    %v1077 = vadd.f32 0.0, %v1076
    %v1078 = vpop.f32.mrb[0].mxu0
    %1079 = vmatprep.mubr.bf16.mxu0 0
    %1080 = vmatmul.mubr.bf16.gmra.mrb[0].mxu0 %v613
    %v1081 = vpop.f32.mrb[0].mxu0
    %v1082 = vadd.f32 0.0, %v1081
    %v1083 = vpop.f32.mrb[0].mxu0
    %v1084 = vpop.f32.mrb[0].mxu0
    %v1085 = vadd.f32 0.0, %v1084
    %v1086 = vpop.f32.mrb[0].mxu0
    %1087 = vmatprep.mubr.bf16.mxu0 0
    %1088 = vmatmul.mubr.bf16.gmra.mrb[0].mxu0 %v616
    %v1089 = vpop.f32.mrb[0].mxu0
    %v1090 = vadd.f32 0.0, %v1089
    %v1091 = vpop.f32.mrb[0].mxu0
    %v1092 = vpop.f32.mrb[0].mxu0
    %v1093 = vadd.f32 0.0, %v1092
    %v1094 = vpop.f32.mrb[0].mxu0
    %1095 = vmatprep.mubr.bf16.mxu0 0
    %1096 = vmatmul.mubr.bf16.gmra.mrb[0].mxu0 %v619
    %v1097 = vpop.f32.mrb[0].mxu0
    %v1098 = vadd.f32 0.0, %v1097
    %v1099 = vpop.f32.mrb[0].mxu0
    %v1100 = vpop.f32.mrb[0].mxu0
    %v1101 = vadd.f32 0.0, %v1100
    %v1102 = vpop.f32.mrb[0].mxu0
    %1103 = vmatprep.mubr.bf16.mxu0 0
    %1104 = vmatmul.mubr.bf16.gmra.mrb[0].mxu0 %v622
    %v1105 = vpop.f32.mrb[0].mxu0
    %v1106 = vadd.f32 0.0, %v1105
    %v1107 = vpop.f32.mrb[0].mxu0
    %v1108 = vpop.f32.mrb[0].mxu0
    %v1109 = vadd.f32 0.0, %v1108
    %v1110 = vpop.f32.mrb[0].mxu0
    %1111 = vmatprep.mubr.bf16.mxu0 0
    %1112 = vmatmul.mubr.bf16.gmra.mrb[0].mxu0 %v625
    %v1113 = vpop.f32.mrb[0].mxu0
    %v1114 = vadd.f32 0.0, %v1113
    %v1115 = vpop.f32.mrb[0].mxu0
    %v1116 = vpop.f32.mrb[0].mxu0
    %v1117 = vadd.f32 0.0, %v1116
    %v1118 = vpop.f32.mrb[0].mxu0
    %1119 = vdwg.mxu0
    %v1120 = vmax.f32 %v666, 0.0
    %v1121 = vmax.f32 %v669, 0.0
    %v1122 = vmax.f32 %v674, 0.0
    %v1123 = vmax.f32 %v677, 0.0
    %v1124 = vmax.f32 %v682, 0.0
    %v1125 = vmax.f32 %v685, 0.0
    %v1126 = vmax.f32 %v690, 0.0
    %v1127 = vmax.f32 %v693, 0.0
    %v1128 = vmax.f32 %v698, 0.0
    %v1129 = vmax.f32 %v701, 0.0
    %v1130 = vmax.f32 %v706, 0.0
    %v1131 = vmax.f32 %v709, 0.0
    %v1132 = vmax.f32 %v714, 0.0
    %v1133 = vmax.f32 %v717, 0.0
    %v1134 = vmax.f32 %v722, 0.0
    %v1135 = vmax.f32 %v725, 0.0
    %v1136 = vmax.f32 %v730, 0.0
    %v1137 = vmax.f32 %v733, 0.0
    %v1138 = vmax.f32 %v738, 0.0
    %v1139 = vmax.f32 %v741, 0.0
    %v1140 = vmax.f32 %v746, 0.0
    %v1141 = vmax.f32 %v749, 0.0
    %v1142 = vmax.f32 %v754, 0.0
    %v1143 = vmax.f32 %v757, 0.0
    %v1144 = vmax.f32 %v762, 0.0
    %v1145 = vmax.f32 %v765, 0.0
    %v1146 = vmax.f32 %v770, 0.0
    %v1147 = vmax.f32 %v773, 0.0
    %v1148 = vmax.f32 %v778, 0.0
    %v1149 = vmax.f32 %v781, 0.0
    %v1150 = vmax.f32 %v786, 0.0
    %v1151 = vmax.f32 %v789, 0.0
    %v1152 = vmax.f32 %v794, 0.0
    %v1153 = vmax.f32 %v797, 0.0
    %v1154 = vmax.f32 %v802, 0.0
    %v1155 = vmax.f32 %v805, 0.0
    %v1156 = vmax.f32 %v810, 0.0
    %v1157 = vmax.f32 %v813, 0.0
    %v1158 = vmax.f32 %v818, 0.0
    %v1159 = vmax.f32 %v821, 0.0
    %v1160 = vmax.f32 %v826, 0.0
    %v1161 = vmax.f32 %v829, 0.0
    %v1162 = vmax.f32 %v834, 0.0
    %v1163 = vmax.f32 %v837, 0.0
    %v1164 = vmax.f32 %v842, 0.0
    %v1165 = vmax.f32 %v845, 0.0
    %v1166 = vmax.f32 %v850, 0.0
    %v1167 = vmax.f32 %v853, 0.0
    %v1168 = vmax.f32 %v858, 0.0
    %v1169 = vmax.f32 %v861, 0.0
    %v1170 = vmax.f32 %v866, 0.0
    %v1171 = vmax.f32 %v869, 0.0
    %v1172 = vmax.f32 %v874, 0.0
    %v1173 = vmax.f32 %v877, 0.0
    %v1174 = vmax.f32 %v882, 0.0
    %v1175 = vmax.f32 %v885, 0.0
    %v1176 = vmax.f32 %v890, 0.0
    %v1177 = vmax.f32 %v893, 0.0
    %v1178 = vmax.f32 %v898, 0.0
    %v1179 = vmax.f32 %v901, 0.0
    %v1180 = vmax.f32 %v906, 0.0
    %v1181 = vmax.f32 %v909, 0.0
    %v1182 = vmax.f32 %v914, 0.0
    %v1183 = vmax.f32 %v917, 0.0
    %v1184 = vmax.f32 %v922, 0.0
    %v1185 = vmax.f32 %v925, 0.0
    %v1186 = vmax.f32 %v930, 0.0
    %v1187 = vmax.f32 %v933, 0.0
    %v1188 = vmax.f32 %v938, 0.0
    %v1189 = vmax.f32 %v941, 0.0
    %v1190 = vmax.f32 %v946, 0.0
    %v1191 = vmax.f32 %v949, 0.0
    %v1192 = vmax.f32 %v954, 0.0
    %v1193 = vmax.f32 %v957, 0.0
    %v1194 = vmax.f32 %v962, 0.0
    %v1195 = vmax.f32 %v965, 0.0
    %v1196 = vmax.f32 %v970, 0.0
    %v1197 = vmax.f32 %v973, 0.0
    %v1198 = vmax.f32 %v978, 0.0
    %v1199 = vmax.f32 %v981, 0.0
    %v1200 = vmax.f32 %v986, 0.0
    %v1201 = vmax.f32 %v989, 0.0
    %v1202 = vmax.f32 %v994, 0.0
    %v1203 = vmax.f32 %v997, 0.0
    %v1204 = vmax.f32 %v1002, 0.0
    %v1205 = vmax.f32 %v1005, 0.0
    %v1206 = vmax.f32 %v1010, 0.0
    %v1207 = vmax.f32 %v1013, 0.0
    %v1208 = vmax.f32 %v1018, 0.0
    %v1209 = vmax.f32 %v1021, 0.0
    %v1210 = vmax.f32 %v1026, 0.0
    %v1211 = vmax.f32 %v1029, 0.0
    %v1212 = vmax.f32 %v1034, 0.0
    %v1213 = vmax.f32 %v1037, 0.0
    %v1214 = vmax.f32 %v1042, 0.0
    %v1215 = vmax.f32 %v1045, 0.0
    %v1216 = vmax.f32 %v1050, 0.0
    %v1217 = vmax.f32 %v1053, 0.0
    %v1218 = vmax.f32 %v1058, 0.0
    %v1219 = vmax.f32 %v1061, 0.0
    %v1220 = vmax.f32 %v1066, 0.0
    %v1221 = vmax.f32 %v1069, 0.0
    %v1222 = vmax.f32 %v1074, 0.0
    %v1223 = vmax.f32 %v1077, 0.0
    %v1224 = vmax.f32 %v1082, 0.0
    %v1225 = vmax.f32 %v1085, 0.0
    %v1226 = vmax.f32 %v1090, 0.0
    %v1227 = vmax.f32 %v1093, 0.0
    %v1228 = vmax.f32 %v1098, 0.0
    %v1229 = vmax.f32 %v1101, 0.0
    %v1230 = vmax.f32 %v1106, 0.0
    %v1231 = vmax.f32 %v1109, 0.0
    %v1232 = vmax.f32 %v1114, 0.0
    %v1233 = vmax.f32 %v1117, 0.0
    %v1234 = vmax.f32 %v1120, %v1177
    %v1235 = vmax.f32 %v1121, %v1178
    %v1236 = vmax.f32 %v1122, %v1179
    %v1237 = vmax.f32 %v1123, %v1180
    %v1238 = vmax.f32 %v1124, %v1181
    %v1239 = vmax.f32 %v1125, %v1182
    %v1240 = vmax.f32 %v1126, %v1183
    %v1241 = vmax.f32 %v1127, %v1184
    %v1242 = vmax.f32 %v1128, %v1185
    %v1243 = vmax.f32 %v1129, %v1186
    %v1244 = vmax.f32 %v1130, %v1187
    %v1245 = vmax.f32 %v1131, %v1188
    %v1246 = vmax.f32 %v1132, %v1189
    %v1247 = vmax.f32 %v1133, %v1190
    %v1248 = vmax.f32 %v1134, %v1191
    %v1249 = vmax.f32 %v1135, %v1192
    %v1250 = vmax.f32 %v1136, %v1193
    %v1251 = vmax.f32 %v1137, %v1194
    %v1252 = vmax.f32 %v1138, %v1195
    %v1253 = vmax.f32 %v1139, %v1196
    %v1254 = vmax.f32 %v1140, %v1197
    %v1255 = vmax.f32 %v1141, %v1198
    %v1256 = vmax.f32 %v1142, %v1199
    %v1257 = vmax.f32 %v1143, %v1200
    %v1258 = vmax.f32 %v1144, %v1201
    %v1259 = vmax.f32 %v1145, %v1202
    %v1260 = vmax.f32 %v1146, %v1203
    %v1261 = vmax.f32 %v1147, %v1204
    %v1262 = vmax.f32 %v1148, %v1205
    %v1263 = vmax.f32 %v1149, %v1206
    %v1264 = vmax.f32 %v1150, %v1207
    %v1265 = vmax.f32 %v1151, %v1208
    %v1266 = vmax.f32 %v1152, %v1209
    %v1267 = vmax.f32 %v1153, %v1210
    %v1268 = vmax.f32 %v1154, %v1211
    %v1269 = vmax.f32 %v1155, %v1212
    %v1270 = vmax.f32 %v1156, %v1213
    %v1271 = vmax.f32 %v1157, %v1214
    %v1272 = vmax.f32 %v1158, %v1215
    %v1273 = vmax.f32 %v1159, %v1216
    %v1274 = vmax.f32 %v1160, %v1217
    %v1275 = vmax.f32 %v1161, %v1218
    %v1276 = vmax.f32 %v1162, %v1219
    %v1277 = vmax.f32 %v1163, %v1220
    %v1278 = vmax.f32 %v1164, %v1221
    %v1279 = vmax.f32 %v1165, %v1222
    %v1280 = vmax.f32 %v1166, %v1223
    %v1281 = vmax.f32 %v1167, %v1224
    %v1282 = vmax.f32 %v1168, %v1225
    %v1283 = vmax.f32 %v1169, %v1226
    %v1284 = vmax.f32 %v1170, %v1227
    %v1285 = vmax.f32 %v1171, %v1228
    %v1286 = vmax.f32 %v1172, %v1229
    %v1287 = vmax.f32 %v1173, %v1230
    %v1288 = vmax.f32 %v1174, %v1231
    %v1289 = vmax.f32 %v1175, %v1232
    %v1290 = vmax.f32 %v1176, %v1233
    %v1291 = vld [vmem:[#allocation2] sm:$0xff]
    %v1292 = vld [vmem:[#allocation2 + $0x8] sm:$0xff]
    %v1293 = vld [vmem:[#allocation2 + $0x10] sm:$0xff]
    %v1294 = vld [vmem:[#allocation2 + $0x18] sm:$0xff]
    %v1295 = vld [vmem:[#allocation2 + $0x20] sm:$0xff]
    %v1296 = vld [vmem:[#allocation2 + $0x28] sm:$0xff]
    %v1297 = vld [vmem:[#allocation2 + $0x30] sm:$0xff]
    %v1298 = vld [vmem:[#allocation2 + $0x38] sm:$0xff]
    %v1299 = vld [vmem:[#allocation2 + $0x40] sm:$0xff]
    %v1300 = vld [vmem:[#allocation2 + $0x48] sm:$0xff]
    %v1301 = vld [vmem:[#allocation2 + $0x50] sm:$0xff]
    %v1302 = vld [vmem:[#allocation2 + $0x58] sm:$0xff]
    %v1303 = vld [vmem:[#allocation2 + $0x60] sm:$0xff]
    %v1304 = vld [vmem:[#allocation2 + $0x68] sm:$0xff]
    %v1305 = vld [vmem:[#allocation2 + $0x70] sm:$0xff]
    %v1306 = vld [vmem:[#allocation2 + $0x78] sm:$0xff]
    %v1307 = vld [vmem:[#allocation2 + $0x80] sm:$0xff]
    %v1308 = vld [vmem:[#allocation2 + $0x88] sm:$0xff]
    %v1309 = vld [vmem:[#allocation2 + $0x90] sm:$0xff]
    %v1310 = vld [vmem:[#allocation2 + $0x98] sm:$0xff]
    %v1311 = vld [vmem:[#allocation2 + $0xa0] sm:$0xff]
    %v1312 = vld [vmem:[#allocation2 + $0xa8] sm:$0xff]
    %v1313 = vld [vmem:[#allocation2 + $0xb0] sm:$0xff]
    %v1314 = vld [vmem:[#allocation2 + $0xb8] sm:$0xff]
    %v1315 = vld [vmem:[#allocation2 + $0xc0] sm:$0xff]
    %v1316 = vld [vmem:[#allocation2 + $0xc8] sm:$0xff]
    %v1317 = vld [vmem:[#allocation2 + $0xd0] sm:$0xff]
    %v1318 = vld [vmem:[#allocation2 + $0xd8] sm:$0xff]
    %v1319 = vld [vmem:[#allocation2 + $0xe0] sm:$0xff]
    %v1320 = vld [vmem:[#allocation2 + $0xe8] sm:$0xff]
    %v1321 = vld [vmem:[#allocation2 + $0xf0] sm:$0xff]
    %v1322 = vld [vmem:[#allocation2 + $0xf8] sm:$0xff]
    %v1323 = vld [vmem:[#allocation2 + $0x100] sm:$0xff]
    %v1324 = vld [vmem:[#allocation2 + $0x108] sm:$0xff]
    %v1325 = vld [vmem:[#allocation2 + $0x110] sm:$0xff]
    %v1326 = vld [vmem:[#allocation2 + $0x118] sm:$0xff]
    %v1327 = vld [vmem:[#allocation2 + $0x120] sm:$0xff]
    %v1328 = vld [vmem:[#allocation2 + $0x128] sm:$0xff]
    %v1329 = vld [vmem:[#allocation2 + $0x130] sm:$0xff]
    %v1330 = vld [vmem:[#allocation2 + $0x138] sm:$0xff]
    %v1331 = vld [vmem:[#allocation2 + $0x140] sm:$0xff]
    %v1332 = vld [vmem:[#allocation2 + $0x148] sm:$0xff]
    %v1333 = vld [vmem:[#allocation2 + $0x150] sm:$0xff]
    %v1334 = vld [vmem:[#allocation2 + $0x158] sm:$0xff]
    %v1335 = vld [vmem:[#allocation2 + $0x160] sm:$0xff]
    %v1336 = vld [vmem:[#allocation2 + $0x168] sm:$0xff]
    %v1337 = vld [vmem:[#allocation2 + $0x170] sm:$0xff]
    %v1338 = vld [vmem:[#allocation2 + $0x178] sm:$0xff]
    %v1339 = vld [vmem:[#allocation2 + $0x180] sm:$0xff]
    %v1340 = vld [vmem:[#allocation2 + $0x188] sm:$0xff]
    %v1341 = vld [vmem:[#allocation2 + $0x190] sm:$0xff]
    %v1342 = vld [vmem:[#allocation2 + $0x198] sm:$0xff]
    %v1343 = vld [vmem:[#allocation2 + $0x1a0] sm:$0xff]
    %v1344 = vld [vmem:[#allocation2 + $0x1a8] sm:$0xff]
    %v1345 = vld [vmem:[#allocation2 + $0x1b0] sm:$0xff]
    %v1346 = vld [vmem:[#allocation2 + $0x1b8] sm:$0xff]
    %v1347 = vld [vmem:[#allocation2 + $0x1c0] sm:$0xff]
    %v1348 = vld [vmem:[#allocation2 + $0x1c8] sm:$0xff]
    %v1349 = vld [vmem:[#allocation2 + $0x1d0] sm:$0xff]
    %v1350 = vld [vmem:[#allocation2 + $0x1d8] sm:$0xff]
    %v1351 = vld [vmem:[#allocation2 + $0x1e0] sm:$0xff]
    %v1352 = vld [vmem:[#allocation2 + $0x1e8] sm:$0xff]
    %v1353 = vld [vmem:[#allocation2 + $0x1f0] sm:$0xff]
    %v1354 = vld [vmem:[#allocation2 + $0x1f8] sm:$0xff]
    %v1355 = vld [vmem:[#allocation2 + $0x200] sm:$0xff]
    %v1356 = vld [vmem:[#allocation2 + $0x208] sm:$0xff]
    %v1357 = vld [vmem:[#allocation2 + $0x210] sm:$0xff]
    %v1358 = vld [vmem:[#allocation2 + $0x218] sm:$0xff]
    %v1359 = vld [vmem:[#allocation2 + $0x220] sm:$0xff]
    %v1360 = vld [vmem:[#allocation2 + $0x228] sm:$0xff]
    %v1361 = vld [vmem:[#allocation2 + $0x230] sm:$0xff]
    %v1362 = vld [vmem:[#allocation2 + $0x238] sm:$0xff]
    %v1363 = vld [vmem:[#allocation2 + $0x240] sm:$0xff]
    %v1364 = vld [vmem:[#allocation2 + $0x248] sm:$0xff]
    %v1365 = vld [vmem:[#allocation2 + $0x250] sm:$0xff]
    %v1366 = vld [vmem:[#allocation2 + $0x258] sm:$0xff]
    %v1367 = vld [vmem:[#allocation2 + $0x260] sm:$0xff]
    %v1368 = vld [vmem:[#allocation2 + $0x268] sm:$0xff]
    %v1369 = vld [vmem:[#allocation2 + $0x270] sm:$0xff]
    %v1370 = vld [vmem:[#allocation2 + $0x278] sm:$0xff]
    %v1371 = vld [vmem:[#allocation2 + $0x280] sm:$0xff]
    %v1372 = vld [vmem:[#allocation2 + $0x288] sm:$0xff]
    %v1373 = vld [vmem:[#allocation2 + $0x290] sm:$0xff]
    %v1374 = vld [vmem:[#allocation2 + $0x298] sm:$0xff]
    %v1375 = vld [vmem:[#allocation2 + $0x2a0] sm:$0xff]
    %v1376 = vld [vmem:[#allocation2 + $0x2a8] sm:$0xff]
    %v1377 = vld [vmem:[#allocation2 + $0x2b0] sm:$0xff]
    %v1378 = vld [vmem:[#allocation2 + $0x2b8] sm:$0xff]
    %v1379 = vld [vmem:[#allocation2 + $0x2c0] sm:$0xff]
    %v1380 = vld [vmem:[#allocation2 + $0x2c8] sm:$0xff]
    %v1381 = vld [vmem:[#allocation2 + $0x2d0] sm:$0xff]
    %v1382 = vld [vmem:[#allocation2 + $0x2d8] sm:$0xff]
    %v1383 = vld [vmem:[#allocation2 + $0x2e0] sm:$0xff]
    %v1384 = vld [vmem:[#allocation2 + $0x2e8] sm:$0xff]
    %v1385 = vld [vmem:[#allocation2 + $0x2f0] sm:$0xff]
    %v1386 = vld [vmem:[#allocation2 + $0x2f8] sm:$0xff]
    %v1387 = vld [vmem:[#allocation2 + $0x300] sm:$0xff]
    %v1388 = vld [vmem:[#allocation2 + $0x308] sm:$0xff]
    %v1389 = vld [vmem:[#allocation2 + $0x310] sm:$0xff]
    %v1390 = vld [vmem:[#allocation2 + $0x318] sm:$0xff]
    %v1391 = vld [vmem:[#allocation2 + $0x320] sm:$0xff]
    %v1392 = vld [vmem:[#allocation2 + $0x328] sm:$0xff]
    %v1393 = vld [vmem:[#allocation2 + $0x330] sm:$0xff]
    %v1394 = vld [vmem:[#allocation2 + $0x338] sm:$0xff]
    %v1395 = vld [vmem:[#allocation2 + $0x340] sm:$0xff]
    %v1396 = vld [vmem:[#allocation2 + $0x348] sm:$0xff]
    %v1397 = vld [vmem:[#allocation2 + $0x350] sm:$0xff]
    %v1398 = vld [vmem:[#allocation2 + $0x358] sm:$0xff]
    %v1399 = vld [vmem:[#allocation2 + $0x360] sm:$0xff]
    %v1400 = vld [vmem:[#allocation2 + $0x368] sm:$0xff]
    %v1401 = vld [vmem:[#allocation2 + $0x370] sm:$0xff]
    %v1402 = vld [vmem:[#allocation2 + $0x378] sm:$0xff]
    %v1403 = vld [vmem:[#allocation2 + $0x380] sm:$0xff]
    %v1404 = vld [vmem:[#allocation2 + $0x388] sm:$0xff]
    %v1405 = vld [vmem:[#allocation2 + $0x390] sm:$0xff]
    %v1406 = vld [vmem:[#allocation2 + $0x398] sm:$0xff]
    %v1407 = vld [vmem:[#allocation2 + $0x3a0] sm:$0xff]
    %v1408 = vld [vmem:[#allocation2 + $0x3a8] sm:$0xff]
    %v1409 = vld [vmem:[#allocation2 + $0x3b0] sm:$0xff]
    %v1410 = vld [vmem:[#allocation2 + $0x3b8] sm:$0xff]
    %v1411 = vld [vmem:[#allocation2 + $0x3c0] sm:$0xff]
    %v1412 = vld [vmem:[#allocation2 + $0x3c8] sm:$0xff]
    %v1413 = vld [vmem:[#allocation2 + $0x3d0] sm:$0xff]
    %v1414 = vld [vmem:[#allocation2 + $0x3d8] sm:$0xff]
    %v1415 = vld [vmem:[#allocation2 + $0x3e0] sm:$0xff]
    %v1416 = vld [vmem:[#allocation2 + $0x3e8] sm:$0xff]
    %v1417 = vld [vmem:[#allocation2 + $0x3f0] sm:$0xff]
    %v1418 = vld [vmem:[#allocation2 + $0x3f8] sm:$0xff]
    %v1419 = vld [vmem:[#allocation2 + $0x400] sm:$0xff]
    %v1420 = vld [vmem:[#allocation2 + $0x408] sm:$0xff]
    %v1421 = vld [vmem:[#allocation2 + $0x410] sm:$0xff]
    %v1422 = vld [vmem:[#allocation2 + $0x418] sm:$0xff]
    %v1423 = vld [vmem:[#allocation2 + $0x420] sm:$0xff]
    %v1424 = vld [vmem:[#allocation2 + $0x428] sm:$0xff]
    %v1425 = vld [vmem:[#allocation2 + $0x430] sm:$0xff]
    %v1426 = vld [vmem:[#allocation2 + $0x438] sm:$0xff]
    %v1427 = vld [vmem:[#allocation2 + $0x440] sm:$0xff]
    %v1428 = vld [vmem:[#allocation2 + $0x448] sm:$0xff]
    %v1429 = vld [vmem:[#allocation2 + $0x450] sm:$0xff]
    %v1430 = vld [vmem:[#allocation2 + $0x458] sm:$0xff]
    %v1431 = vld [vmem:[#allocation2 + $0x460] sm:$0xff]
    %v1432 = vld [vmem:[#allocation2 + $0x468] sm:$0xff]
    %v1433 = vld [vmem:[#allocation2 + $0x470] sm:$0xff]
    %v1434 = vld [vmem:[#allocation2 + $0x478] sm:$0xff]
    %v1435 = vld [vmem:[#allocation2 + $0x480] sm:$0xff]
    %v1436 = vld [vmem:[#allocation2 + $0x488] sm:$0xff]
    %v1437 = vld [vmem:[#allocation2 + $0x490] sm:$0xff]
    %v1438 = vld [vmem:[#allocation2 + $0x498] sm:$0xff]
    %v1439 = vld [vmem:[#allocation2 + $0x4a0] sm:$0xff]
    %v1440 = vld [vmem:[#allocation2 + $0x4a8] sm:$0xff]
    %v1441 = vld [vmem:[#allocation2 + $0x4b0] sm:$0xff]
    %v1442 = vld [vmem:[#allocation2 + $0x4b8] sm:$0xff]
    %v1443 = vld [vmem:[#allocation2 + $0x4c0] sm:$0xff]
    %v1444 = vld [vmem:[#allocation2 + $0x4c8] sm:$0xff]
    %v1445 = vld [vmem:[#allocation2 + $0x4d0] sm:$0xff]
    %v1446 = vld [vmem:[#allocation2 + $0x4d8] sm:$0xff]
    %v1447 = vld [vmem:[#allocation2 + $0x4e0] sm:$0xff]
    %v1448 = vld [vmem:[#allocation2 + $0x4e8] sm:$0xff]
    %v1449 = vld [vmem:[#allocation2 + $0x4f0] sm:$0xff]
    %v1450 = vld [vmem:[#allocation2 + $0x4f8] sm:$0xff]
    %v1451 = vld [vmem:[#allocation2 + $0x500] sm:$0xff]
    %v1452 = vld [vmem:[#allocation2 + $0x508] sm:$0xff]
    %v1453 = vld [vmem:[#allocation2 + $0x510] sm:$0xff]
    %v1454 = vld [vmem:[#allocation2 + $0x518] sm:$0xff]
    %v1455 = vpack.c.bf16 %v1235, %v1234
    %v1456 = vpack.c.bf16 %v1237, %v1236
    %v1457 = vpack.c.bf16 %v1239, %v1238
    %v1458 = vpack.c.bf16 %v1241, %v1240
    %v1459 = vpack.c.bf16 %v1243, %v1242
    %v1460 = vpack.c.bf16 %v1245, %v1244
    %v1461 = vpack.c.bf16 %v1247, %v1246
    %v1462 = vpack.c.bf16 %v1249, %v1248
    %v1463 = vpack.c.bf16 %v1251, %v1250
    %v1464 = vpack.c.bf16 %v1253, %v1252
    %v1465 = vpack.c.bf16 %v1255, %v1254
    %v1466 = vpack.c.bf16 %v1257, %v1256
    %v1467 = vpack.c.bf16 %v1259, %v1258
    %v1468 = vpack.c.bf16 %v1261, %v1260
    %v1469 = vpack.c.bf16 %v1263, %v1262
    %v1470 = vpack.c.bf16 %v1265, %v1264
    %v1471 = vpack.c.bf16 %v1267, %v1266
    %v1472 = vpack.c.bf16 %v1269, %v1268
    %v1473 = vpack.c.bf16 %v1271, %v1270
    %v1474 = vpack.c.bf16 %v1273, %v1272
    %v1475 = vpack.c.bf16 %v1275, %v1274
    %v1476 = vpack.c.bf16 %v1277, %v1276
    %v1477 = vpack.c.bf16 %v1279, %v1278
    %v1478 = vpack.c.bf16 %v1281, %v1280
    %v1479 = vpack.c.bf16 %v1283, %v1282
    %v1480 = vpack.c.bf16 %v1285, %v1284
    %v1481 = vpack.c.bf16 %v1287, %v1286
    %v1482 = vpack.c.bf16 %v1289, %v1288
    %v1483 = vpack.c.bf16 %v1290, %v1290
    %v1648 = vunpack.c.l.b16 %v1291
    %v1649 = vunpack.c.h.b16 %v1291
    %v1650 = vunpack.c.l.b16 %v1292
    %v1651 = vunpack.c.h.b16 %v1292
    %v1652 = vunpack.c.l.b16 %v1293
    %v1653 = vunpack.c.h.b16 %v1293
    %v1654 = vunpack.c.l.b16 %v1294
    %v1655 = vunpack.c.h.b16 %v1294
    %v1656 = vunpack.c.l.b16 %v1295
    %v1657 = vunpack.c.h.b16 %v1295
    %v1658 = vunpack.c.l.b16 %v1296
    %v1659 = vunpack.c.h.b16 %v1296
    %v1660 = vunpack.c.l.b16 %v1297
    %v1661 = vunpack.c.h.b16 %v1297
    %v1662 = vunpack.c.l.b16 %v1298
    %v1663 = vunpack.c.h.b16 %v1298
    %v1664 = vunpack.c.l.b16 %v1299
    %v1665 = vunpack.c.h.b16 %v1299
    %v1666 = vunpack.c.l.b16 %v1300
    %v1667 = vunpack.c.h.b16 %v1300
    %v1668 = vunpack.c.l.b16 %v1301
    %v1669 = vunpack.c.h.b16 %v1301
    %v1670 = vunpack.c.l.b16 %v1302
    %v1671 = vunpack.c.h.b16 %v1302
    %v1672 = vunpack.c.l.b16 %v1303
    %v1673 = vunpack.c.h.b16 %v1303
    %v1674 = vunpack.c.l.b16 %v1304
    %v1675 = vunpack.c.h.b16 %v1304
    %v1676 = vunpack.c.l.b16 %v1305
    %v1677 = vunpack.c.h.b16 %v1305
    %v1678 = vunpack.c.l.b16 %v1306
    %v1679 = vunpack.c.h.b16 %v1306
    %v1680 = vunpack.c.l.b16 %v1307
    %v1681 = vunpack.c.h.b16 %v1307
    %v1682 = vunpack.c.l.b16 %v1308
    %v1683 = vunpack.c.h.b16 %v1308
    %v1684 = vunpack.c.l.b16 %v1309
    %v1685 = vunpack.c.h.b16 %v1309
    %v1686 = vunpack.c.l.b16 %v1310
    %v1687 = vunpack.c.h.b16 %v1310
    %v1688 = vunpack.c.l.b16 %v1311
    %v1689 = vunpack.c.h.b16 %v1311
    %v1690 = vunpack.c.l.b16 %v1312
    %v1691 = vunpack.c.h.b16 %v1312
    %v1692 = vunpack.c.l.b16 %v1313
    %v1693 = vunpack.c.h.b16 %v1313
    %v1694 = vunpack.c.l.b16 %v1314
    %v1695 = vunpack.c.h.b16 %v1314
    %v1696 = vunpack.c.l.b16 %v1315
    %v1697 = vunpack.c.h.b16 %v1315
    %v1698 = vunpack.c.l.b16 %v1316
    %v1699 = vunpack.c.h.b16 %v1316
    %v1700 = vunpack.c.l.b16 %v1317
    %v1701 = vunpack.c.h.b16 %v1317
    %v1702 = vunpack.c.l.b16 %v1318
    %v1703 = vunpack.c.h.b16 %v1318
    %v1704 = vunpack.c.l.b16 %v1319
    %v1705 = vunpack.c.h.b16 %v1319
    %v1706 = vunpack.c.l.b16 %v1320
    %v1707 = vunpack.c.h.b16 %v1320
    %v1708 = vunpack.c.l.b16 %v1321
    %v1709 = vunpack.c.h.b16 %v1321
    %v1710 = vunpack.c.l.b16 %v1322
    %v1711 = vunpack.c.h.b16 %v1322
    %v1712 = vunpack.c.l.b16 %v1323
    %v1713 = vunpack.c.h.b16 %v1323
    %v1714 = vunpack.c.l.b16 %v1324
    %v1715 = vunpack.c.h.b16 %v1324
    %v1716 = vunpack.c.l.b16 %v1325
    %v1717 = vunpack.c.h.b16 %v1325
    %v1718 = vunpack.c.l.b16 %v1326
    %v1719 = vunpack.c.h.b16 %v1326
    %v1720 = vunpack.c.l.b16 %v1327
    %v1721 = vunpack.c.h.b16 %v1327
    %v1722 = vunpack.c.l.b16 %v1328
    %v1723 = vunpack.c.h.b16 %v1328
    %v1724 = vunpack.c.l.b16 %v1329
    %v1725 = vunpack.c.h.b16 %v1329
    %v1726 = vunpack.c.l.b16 %v1330
    %v1727 = vunpack.c.h.b16 %v1330
    %v1728 = vunpack.c.l.b16 %v1331
    %v1729 = vunpack.c.h.b16 %v1331
    %v1730 = vunpack.c.l.b16 %v1332
    %v1731 = vunpack.c.h.b16 %v1332
    %v1732 = vunpack.c.l.b16 %v1333
    %v1733 = vunpack.c.h.b16 %v1333
    %v1734 = vunpack.c.l.b16 %v1334
    %v1735 = vunpack.c.h.b16 %v1334
    %v1736 = vunpack.c.l.b16 %v1335
    %v1737 = vunpack.c.h.b16 %v1335
    %v1738 = vunpack.c.l.b16 %v1336
    %v1739 = vunpack.c.h.b16 %v1336
    %v1740 = vunpack.c.l.b16 %v1337
    %v1741 = vunpack.c.h.b16 %v1337
    %v1742 = vunpack.c.l.b16 %v1338
    %v1743 = vunpack.c.h.b16 %v1338
    %v1744 = vunpack.c.l.b16 %v1339
    %v1745 = vunpack.c.h.b16 %v1339
    %v1746 = vunpack.c.l.b16 %v1340
    %v1747 = vunpack.c.h.b16 %v1340
    %v1748 = vunpack.c.l.b16 %v1341
    %v1749 = vunpack.c.h.b16 %v1341
    %v1750 = vunpack.c.l.b16 %v1342
    %v1751 = vunpack.c.h.b16 %v1342
    %v1752 = vunpack.c.l.b16 %v1343
    %v1753 = vunpack.c.h.b16 %v1343
    %v1754 = vunpack.c.l.b16 %v1344
    %v1755 = vunpack.c.h.b16 %v1344
    %v1756 = vunpack.c.l.b16 %v1345
    %v1757 = vunpack.c.h.b16 %v1345
    %v1758 = vunpack.c.l.b16 %v1346
    %v1759 = vunpack.c.h.b16 %v1346
    %v1760 = vunpack.c.l.b16 %v1347
    %v1761 = vunpack.c.h.b16 %v1347
    %v1762 = vunpack.c.l.b16 %v1348
    %v1763 = vunpack.c.h.b16 %v1348
    %v1764 = vunpack.c.l.b16 %v1349
    %v1765 = vunpack.c.h.b16 %v1349
    %v1766 = vunpack.c.l.b16 %v1350
    %v1767 = vunpack.c.h.b16 %v1350
    %v1768 = vunpack.c.l.b16 %v1351
    %v1769 = vunpack.c.h.b16 %v1351
    %v1770 = vunpack.c.l.b16 %v1352
    %v1771 = vunpack.c.h.b16 %v1352
    %v1772 = vunpack.c.l.b16 %v1353
    %v1773 = vunpack.c.h.b16 %v1353
    %v1774 = vunpack.c.l.b16 %v1354
    %v1775 = vunpack.c.h.b16 %v1354
    %v1776 = vunpack.c.l.b16 %v1355
    %v1777 = vunpack.c.h.b16 %v1355
    %v1778 = vunpack.c.l.b16 %v1356
    %v1779 = vunpack.c.h.b16 %v1356
    %v1780 = vunpack.c.l.b16 %v1357
    %v1781 = vunpack.c.h.b16 %v1357
    %v1782 = vunpack.c.l.b16 %v1358
    %v1783 = vunpack.c.h.b16 %v1358
    %v1784 = vunpack.c.l.b16 %v1359
    %v1785 = vunpack.c.h.b16 %v1359
    %v1786 = vunpack.c.l.b16 %v1360
    %v1787 = vunpack.c.h.b16 %v1360
    %v1788 = vunpack.c.l.b16 %v1361
    %v1789 = vunpack.c.h.b16 %v1361
    %v1790 = vunpack.c.l.b16 %v1362
    %v1791 = vunpack.c.h.b16 %v1362
    %v1792 = vunpack.c.l.b16 %v1363
    %v1793 = vunpack.c.h.b16 %v1363
    %v1794 = vunpack.c.l.b16 %v1364
    %v1795 = vunpack.c.h.b16 %v1364
    %v1796 = vunpack.c.l.b16 %v1365
    %v1797 = vunpack.c.h.b16 %v1365
    %v1798 = vunpack.c.l.b16 %v1366
    %v1799 = vunpack.c.h.b16 %v1366
    %v1800 = vunpack.c.l.b16 %v1367
    %v1801 = vunpack.c.h.b16 %v1367
    %v1802 = vunpack.c.l.b16 %v1368
    %v1803 = vunpack.c.h.b16 %v1368
    %v1804 = vunpack.c.l.b16 %v1369
    %v1805 = vunpack.c.h.b16 %v1369
    %v1806 = vunpack.c.l.b16 %v1370
    %v1807 = vunpack.c.h.b16 %v1370
    %v1808 = vunpack.c.l.b16 %v1371
    %v1809 = vunpack.c.h.b16 %v1371
    %v1810 = vunpack.c.l.b16 %v1372
    %v1811 = vunpack.c.h.b16 %v1372
    %v1812 = vunpack.c.l.b16 %v1373
    %v1813 = vunpack.c.h.b16 %v1373
    %v1814 = vunpack.c.l.b16 %v1374
    %v1815 = vunpack.c.h.b16 %v1374
    %v1816 = vunpack.c.l.b16 %v1375
    %v1817 = vunpack.c.h.b16 %v1375
    %v1818 = vunpack.c.l.b16 %v1376
    %v1819 = vunpack.c.h.b16 %v1376
    %v1820 = vunpack.c.l.b16 %v1377
    %v1821 = vunpack.c.h.b16 %v1377
    %v1822 = vunpack.c.l.b16 %v1378
    %v1823 = vunpack.c.h.b16 %v1378
    %v1824 = vunpack.c.l.b16 %v1379
    %v1825 = vunpack.c.h.b16 %v1379
    %v1826 = vunpack.c.l.b16 %v1380
    %v1827 = vunpack.c.h.b16 %v1380
    %v1828 = vunpack.c.l.b16 %v1381
    %v1829 = vunpack.c.h.b16 %v1381
    %v1830 = vunpack.c.l.b16 %v1382
    %v1831 = vunpack.c.h.b16 %v1382
    %v1832 = vunpack.c.l.b16 %v1383
    %v1833 = vunpack.c.h.b16 %v1383
    %v1834 = vunpack.c.l.b16 %v1384
    %v1835 = vunpack.c.h.b16 %v1384
    %v1836 = vunpack.c.l.b16 %v1385
    %v1837 = vunpack.c.h.b16 %v1385
    %v1838 = vunpack.c.l.b16 %v1386
    %v1839 = vunpack.c.h.b16 %v1386
    %v1840 = vunpack.c.l.b16 %v1387
    %v1841 = vunpack.c.h.b16 %v1387
    %v1842 = vunpack.c.l.b16 %v1388
    %v1843 = vunpack.c.h.b16 %v1388
    %v1844 = vunpack.c.l.b16 %v1389
    %v1845 = vunpack.c.h.b16 %v1389
    %v1846 = vunpack.c.l.b16 %v1390
    %v1847 = vunpack.c.h.b16 %v1390
    %v1848 = vunpack.c.l.b16 %v1391
    %v1849 = vunpack.c.h.b16 %v1391
    %v1850 = vunpack.c.l.b16 %v1392
    %v1851 = vunpack.c.h.b16 %v1392
    %v1852 = vunpack.c.l.b16 %v1393
    %v1853 = vunpack.c.h.b16 %v1393
    %v1854 = vunpack.c.l.b16 %v1394
    %v1855 = vunpack.c.h.b16 %v1394
    %v1856 = vunpack.c.l.b16 %v1395
    %v1857 = vunpack.c.h.b16 %v1395
    %v1858 = vunpack.c.l.b16 %v1396
    %v1859 = vunpack.c.h.b16 %v1396
    %v1860 = vunpack.c.l.b16 %v1397
    %v1861 = vunpack.c.h.b16 %v1397
    %v1862 = vunpack.c.l.b16 %v1398
    %v1863 = vunpack.c.h.b16 %v1398
    %v1864 = vunpack.c.l.b16 %v1399
    %v1865 = vunpack.c.h.b16 %v1399
    %v1866 = vunpack.c.l.b16 %v1400
    %v1867 = vunpack.c.h.b16 %v1400
    %v1868 = vunpack.c.l.b16 %v1401
    %v1869 = vunpack.c.h.b16 %v1401
    %v1870 = vunpack.c.l.b16 %v1402
    %v1871 = vunpack.c.h.b16 %v1402
    %v1872 = vunpack.c.l.b16 %v1403
    %v1873 = vunpack.c.h.b16 %v1403
    %v1874 = vunpack.c.l.b16 %v1404
    %v1875 = vunpack.c.h.b16 %v1404
    %v1876 = vunpack.c.l.b16 %v1405
    %v1877 = vunpack.c.h.b16 %v1405
    %v1878 = vunpack.c.l.b16 %v1406
    %v1879 = vunpack.c.h.b16 %v1406
    %v1880 = vunpack.c.l.b16 %v1407
    %v1881 = vunpack.c.h.b16 %v1407
    %v1882 = vunpack.c.l.b16 %v1408
    %v1883 = vunpack.c.h.b16 %v1408
    %v1884 = vunpack.c.l.b16 %v1409
    %v1885 = vunpack.c.h.b16 %v1409
    %v1886 = vunpack.c.l.b16 %v1410
    %v1887 = vunpack.c.h.b16 %v1410
    %v1888 = vunpack.c.l.b16 %v1411
    %v1889 = vunpack.c.h.b16 %v1411
    %v1890 = vunpack.c.l.b16 %v1412
    %v1891 = vunpack.c.h.b16 %v1412
    %v1892 = vunpack.c.l.b16 %v1413
    %v1893 = vunpack.c.h.b16 %v1413
    %v1894 = vunpack.c.l.b16 %v1414
    %v1895 = vunpack.c.h.b16 %v1414
    %v1896 = vunpack.c.l.b16 %v1415
    %v1897 = vunpack.c.h.b16 %v1415
    %v1898 = vunpack.c.l.b16 %v1416
    %v1899 = vunpack.c.h.b16 %v1416
    %v1900 = vunpack.c.l.b16 %v1417
    %v1901 = vunpack.c.h.b16 %v1417
    %v1902 = vunpack.c.l.b16 %v1418
    %v1903 = vunpack.c.h.b16 %v1418
    %v1904 = vunpack.c.l.b16 %v1419
    %v1905 = vunpack.c.h.b16 %v1419
    %v1906 = vunpack.c.l.b16 %v1420
    %v1907 = vunpack.c.h.b16 %v1420
    %v1908 = vunpack.c.l.b16 %v1421
    %v1909 = vunpack.c.h.b16 %v1421
    %v1910 = vunpack.c.l.b16 %v1422
    %v1911 = vunpack.c.h.b16 %v1422
    %v1912 = vunpack.c.l.b16 %v1423
    %v1913 = vunpack.c.h.b16 %v1423
    %v1914 = vunpack.c.l.b16 %v1424
    %v1915 = vunpack.c.h.b16 %v1424
    %v1916 = vunpack.c.l.b16 %v1425
    %v1917 = vunpack.c.h.b16 %v1425
    %v1918 = vunpack.c.l.b16 %v1426
    %v1919 = vunpack.c.h.b16 %v1426
    %v1920 = vunpack.c.l.b16 %v1427
    %v1921 = vunpack.c.h.b16 %v1427
    %v1922 = vunpack.c.l.b16 %v1428
    %v1923 = vunpack.c.h.b16 %v1428
    %v1924 = vunpack.c.l.b16 %v1429
    %v1925 = vunpack.c.h.b16 %v1429
    %v1926 = vunpack.c.l.b16 %v1430
    %v1927 = vunpack.c.h.b16 %v1430
    %v1928 = vunpack.c.l.b16 %v1431
    %v1929 = vunpack.c.h.b16 %v1431
    %v1930 = vunpack.c.l.b16 %v1432
    %v1931 = vunpack.c.h.b16 %v1432
    %v1932 = vunpack.c.l.b16 %v1433
    %v1933 = vunpack.c.h.b16 %v1433
    %v1934 = vunpack.c.l.b16 %v1434
    %v1935 = vunpack.c.h.b16 %v1434
    %v1936 = vunpack.c.l.b16 %v1435
    %v1937 = vunpack.c.h.b16 %v1435
    %v1938 = vunpack.c.l.b16 %v1436
    %v1939 = vunpack.c.h.b16 %v1436
    %v1940 = vunpack.c.l.b16 %v1437
    %v1941 = vunpack.c.h.b16 %v1437
    %v1942 = vunpack.c.l.b16 %v1438
    %v1943 = vunpack.c.h.b16 %v1438
    %v1944 = vunpack.c.l.b16 %v1439
    %v1945 = vunpack.c.h.b16 %v1439
    %v1946 = vunpack.c.l.b16 %v1440
    %v1947 = vunpack.c.h.b16 %v1440
    %v1948 = vunpack.c.l.b16 %v1441
    %v1949 = vunpack.c.h.b16 %v1441
    %v1950 = vunpack.c.l.b16 %v1442
    %v1951 = vunpack.c.h.b16 %v1442
    %v1952 = vunpack.c.l.b16 %v1443
    %v1953 = vunpack.c.h.b16 %v1443
    %v1954 = vunpack.c.l.b16 %v1444
    %v1955 = vunpack.c.h.b16 %v1444
    %v1956 = vunpack.c.l.b16 %v1445
    %v1957 = vunpack.c.h.b16 %v1445
    %v1958 = vunpack.c.l.b16 %v1446
    %v1959 = vunpack.c.h.b16 %v1446
    %v1960 = vunpack.c.l.b16 %v1447
    %v1961 = vunpack.c.h.b16 %v1447
    %v1962 = vunpack.c.l.b16 %v1448
    %v1963 = vunpack.c.h.b16 %v1448
    %v1964 = vunpack.c.l.b16 %v1449
    %v1965 = vunpack.c.h.b16 %v1449
    %v1966 = vunpack.c.l.b16 %v1450
    %v1967 = vunpack.c.h.b16 %v1450
    %v1968 = vunpack.c.l.b16 %v1451
    %v1969 = vunpack.c.h.b16 %v1451
    %v1970 = vunpack.c.l.b16 %v1452
    %v1971 = vunpack.c.h.b16 %v1452
    %v1972 = vunpack.c.l.b16 %v1453
    %v1973 = vunpack.c.h.b16 %v1453
    %v1974 = vunpack.c.l.b16 %v1454
    %v1975 = vunpack.c.h.b16 %v1454
    %v1976 = vpack.c.b16 %v1652, %v1648
    %v1977 = vpack.c.b16 %v1653, %v1649
    %v1978 = vpack.c.b16 %v1654, %v1650
    %v1979 = vpack.c.b16 %v1655, %v1651
    %v1980 = vpack.c.b16 %v1660, %v1656
    %v1981 = vpack.c.b16 %v1661, %v1657
    %v1982 = vpack.c.b16 %v1662, %v1658
    %v1983 = vpack.c.b16 %v1663, %v1659
    %v1984 = vpack.c.b16 %v1668, %v1664
    %v1985 = vpack.c.b16 %v1669, %v1665
    %v1986 = vpack.c.b16 %v1670, %v1666
    %v1987 = vpack.c.b16 %v1671, %v1667
    %v1988 = vpack.c.b16 %v1676, %v1672
    %v1989 = vpack.c.b16 %v1677, %v1673
    %v1990 = vpack.c.b16 %v1678, %v1674
    %v1991 = vpack.c.b16 %v1679, %v1675
    %v1992 = vpack.c.b16 %v1684, %v1680
    %v1993 = vpack.c.b16 %v1685, %v1681
    %v1994 = vpack.c.b16 %v1686, %v1682
    %v1995 = vpack.c.b16 %v1687, %v1683
    %v1996 = vpack.c.b16 %v1692, %v1688
    %v1997 = vpack.c.b16 %v1693, %v1689
    %v1998 = vpack.c.b16 %v1694, %v1690
    %v1999 = vpack.c.b16 %v1695, %v1691
    %v2000 = vpack.c.b16 %v1700, %v1696
    %v2001 = vpack.c.b16 %v1701, %v1697
    %v2002 = vpack.c.b16 %v1702, %v1698
    %v2003 = vpack.c.b16 %v1703, %v1699
    %v2004 = vpack.c.b16 %v1708, %v1704
    %v2005 = vpack.c.b16 %v1709, %v1705
    %v2006 = vpack.c.b16 %v1710, %v1706
    %v2007 = vpack.c.b16 %v1711, %v1707
    %v2008 = vpack.c.b16 %v1716, %v1712
    %v2009 = vpack.c.b16 %v1717, %v1713
    %v2010 = vpack.c.b16 %v1718, %v1714
    %v2011 = vpack.c.b16 %v1719, %v1715
    %v2012 = vpack.c.b16 %v1724, %v1720
    %v2013 = vpack.c.b16 %v1725, %v1721
    %v2014 = vpack.c.b16 %v1726, %v1722
    %v2015 = vpack.c.b16 %v1727, %v1723
    %v2016 = vpack.c.b16 %v1732, %v1728
    %v2017 = vpack.c.b16 %v1733, %v1729
    %v2018 = vpack.c.b16 %v1734, %v1730
    %v2019 = vpack.c.b16 %v1735, %v1731
    %v2020 = vpack.c.b16 %v1740, %v1736
    %v2021 = vpack.c.b16 %v1741, %v1737
    %v2022 = vpack.c.b16 %v1742, %v1738
    %v2023 = vpack.c.b16 %v1743, %v1739
    %v2024 = vpack.c.b16 %v1748, %v1744
    %v2025 = vpack.c.b16 %v1749, %v1745
    %v2026 = vpack.c.b16 %v1750, %v1746
    %v2027 = vpack.c.b16 %v1751, %v1747
    %v2028 = vpack.c.b16 %v1756, %v1752
    %v2029 = vpack.c.b16 %v1757, %v1753
    %v2030 = vpack.c.b16 %v1758, %v1754
    %v2031 = vpack.c.b16 %v1759, %v1755
    %v2032 = vpack.c.b16 %v1764, %v1760
    %v2033 = vpack.c.b16 %v1765, %v1761
    %v2034 = vpack.c.b16 %v1766, %v1762
    %v2035 = vpack.c.b16 %v1767, %v1763
    %v2036 = vpack.c.b16 %v1772, %v1768
    %v2037 = vpack.c.b16 %v1773, %v1769
    %v2038 = vpack.c.b16 %v1774, %v1770
    %v2039 = vpack.c.b16 %v1775, %v1771
    %v2040 = vpack.c.b16 %v1780, %v1776
    %v2041 = vpack.c.b16 %v1781, %v1777
    %v2042 = vpack.c.b16 %v1782, %v1778
    %v2043 = vpack.c.b16 %v1783, %v1779
    %v2044 = vpack.c.b16 %v1788, %v1784
    %v2045 = vpack.c.b16 %v1789, %v1785
    %v2046 = vpack.c.b16 %v1790, %v1786
    %v2047 = vpack.c.b16 %v1791, %v1787
    %v2048 = vpack.c.b16 %v1796, %v1792
    %v2049 = vpack.c.b16 %v1797, %v1793
    %v2050 = vpack.c.b16 %v1798, %v1794
    %v2051 = vpack.c.b16 %v1799, %v1795
    %v2052 = vpack.c.b16 %v1804, %v1800
    %v2053 = vpack.c.b16 %v1805, %v1801
    %v2054 = vpack.c.b16 %v1806, %v1802
    %v2055 = vpack.c.b16 %v1807, %v1803
    %v2056 = vpack.c.b16 %v1812, %v1808
    %v2057 = vpack.c.b16 %v1813, %v1809
    %v2058 = vpack.c.b16 %v1814, %v1810
    %v2059 = vpack.c.b16 %v1815, %v1811
    %v2060 = vpack.c.b16 %v1820, %v1816
    %v2061 = vpack.c.b16 %v1821, %v1817
    %v2062 = vpack.c.b16 %v1822, %v1818
    %v2063 = vpack.c.b16 %v1823, %v1819
    %v2064 = vpack.c.b16 %v1828, %v1824
    %v2065 = vpack.c.b16 %v1829, %v1825
    %v2066 = vpack.c.b16 %v1830, %v1826
    %v2067 = vpack.c.b16 %v1831, %v1827
    %v2068 = vpack.c.b16 %v1836, %v1832
    %v2069 = vpack.c.b16 %v1837, %v1833
    %v2070 = vpack.c.b16 %v1838, %v1834
    %v2071 = vpack.c.b16 %v1839, %v1835
    %v2072 = vpack.c.b16 %v1844, %v1840
    %v2073 = vpack.c.b16 %v1845, %v1841
    %v2074 = vpack.c.b16 %v1846, %v1842
    %v2075 = vpack.c.b16 %v1847, %v1843
    %v2076 = vpack.c.b16 %v1852, %v1848
    %v2077 = vpack.c.b16 %v1853, %v1849
    %v2078 = vpack.c.b16 %v1854, %v1850
    %v2079 = vpack.c.b16 %v1855, %v1851
    %v2080 = vpack.c.b16 %v1860, %v1856
    %v2081 = vpack.c.b16 %v1861, %v1857
    %v2082 = vpack.c.b16 %v1862, %v1858
    %v2083 = vpack.c.b16 %v1863, %v1859
    %v2084 = vpack.c.b16 %v1868, %v1864
    %v2085 = vpack.c.b16 %v1869, %v1865
    %v2086 = vpack.c.b16 %v1870, %v1866
    %v2087 = vpack.c.b16 %v1871, %v1867
    %v2088 = vpack.c.b16 %v1876, %v1872
    %v2089 = vpack.c.b16 %v1877, %v1873
    %v2090 = vpack.c.b16 %v1878, %v1874
    %v2091 = vpack.c.b16 %v1879, %v1875
    %v2092 = vpack.c.b16 %v1884, %v1880
    %v2093 = vpack.c.b16 %v1885, %v1881
    %v2094 = vpack.c.b16 %v1886, %v1882
    %v2095 = vpack.c.b16 %v1887, %v1883
    %v2096 = vpack.c.b16 %v1892, %v1888
    %v2097 = vpack.c.b16 %v1893, %v1889
    %v2098 = vpack.c.b16 %v1894, %v1890
    %v2099 = vpack.c.b16 %v1895, %v1891
    %v2100 = vpack.c.b16 %v1900, %v1896
    %v2101 = vpack.c.b16 %v1901, %v1897
    %v2102 = vpack.c.b16 %v1902, %v1898
    %v2103 = vpack.c.b16 %v1903, %v1899
    %v2104 = vpack.c.b16 %v1908, %v1904
    %v2105 = vpack.c.b16 %v1909, %v1905
    %v2106 = vpack.c.b16 %v1910, %v1906
    %v2107 = vpack.c.b16 %v1911, %v1907
    %v2108 = vpack.c.b16 %v1916, %v1912
    %v2109 = vpack.c.b16 %v1917, %v1913
    %v2110 = vpack.c.b16 %v1918, %v1914
    %v2111 = vpack.c.b16 %v1919, %v1915
    %v2112 = vpack.c.b16 %v1924, %v1920
    %v2113 = vpack.c.b16 %v1925, %v1921
    %v2114 = vpack.c.b16 %v1926, %v1922
    %v2115 = vpack.c.b16 %v1927, %v1923
    %v2116 = vpack.c.b16 %v1932, %v1928
    %v2117 = vpack.c.b16 %v1933, %v1929
    %v2118 = vpack.c.b16 %v1934, %v1930
    %v2119 = vpack.c.b16 %v1935, %v1931
    %v2120 = vpack.c.b16 %v1940, %v1936
    %v2121 = vpack.c.b16 %v1941, %v1937
    %v2122 = vpack.c.b16 %v1942, %v1938
    %v2123 = vpack.c.b16 %v1943, %v1939
    %v2124 = vpack.c.b16 %v1948, %v1944
    %v2125 = vpack.c.b16 %v1949, %v1945
    %v2126 = vpack.c.b16 %v1950, %v1946
    %v2127 = vpack.c.b16 %v1951, %v1947
    %v2128 = vpack.c.b16 %v1956, %v1952
    %v2129 = vpack.c.b16 %v1957, %v1953
    %v2130 = vpack.c.b16 %v1958, %v1954
    %v2131 = vpack.c.b16 %v1959, %v1955
    %v2132 = vpack.c.b16 %v1964, %v1960
    %v2133 = vpack.c.b16 %v1965, %v1961
    %v2134 = vpack.c.b16 %v1966, %v1962
    %v2135 = vpack.c.b16 %v1967, %v1963
    %v2136 = vpack.c.b16 %v1972, %v1968
    %v2137 = vpack.c.b16 %v1973, %v1969
    %v2138 = vpack.c.b16 %v1974, %v1970
    %v2139 = vpack.c.b16 %v1975, %v1971
    %vm2263 = vcmask 588800
    %v2265 = vsel %vm2263, %v1979, 0
    %v2268 = vsel %vm2263, %v1983, 0
    %v2271 = vsel %vm2263, %v1987, 0
    %v2274 = vsel %vm2263, %v1991, 0
    %v2277 = vsel %vm2263, %v1995, 0
    %v2280 = vsel %vm2263, %v1999, 0
    %v2283 = vsel %vm2263, %v2003, 0
    %v2286 = vsel %vm2263, %v2007, 0
    %v2289 = vsel %vm2263, %v2011, 0
    %v2292 = vsel %vm2263, %v2015, 0
    %v2295 = vsel %vm2263, %v2019, 0
    %v2298 = vsel %vm2263, %v2023, 0
    %v2301 = vsel %vm2263, %v2027, 0
    %v2304 = vsel %vm2263, %v2031, 0
    %v2307 = vsel %vm2263, %v2035, 0
    %v2310 = vsel %vm2263, %v2039, 0
    %v2313 = vsel %vm2263, %v2043, 0
    %v2316 = vsel %vm2263, %v2047, 0
    %v2319 = vsel %vm2263, %v2051, 0
    %v2322 = vsel %vm2263, %v2055, 0
    %v2325 = vsel %vm2263, %v2059, 0
    %v2328 = vsel %vm2263, %v2063, 0
    %v2331 = vsel %vm2263, %v2067, 0
    %v2334 = vsel %vm2263, %v2071, 0
    %v2337 = vsel %vm2263, %v2075, 0
    %v2340 = vsel %vm2263, %v2079, 0
    %v2343 = vsel %vm2263, %v2083, 0
    %v2346 = vsel %vm2263, %v2087, 0
    %v2349 = vsel %vm2263, %v2091, 0
    %v2352 = vsel %vm2263, %v2095, 0
    %v2355 = vsel %vm2263, %v2099, 0
    %v2358 = vsel %vm2263, %v2103, 0
    %v2361 = vsel %vm2263, %v2107, 0
    %v2364 = vsel %vm2263, %v2111, 0
    %v2367 = vsel %vm2263, %v2115, 0
    %v2370 = vsel %vm2263, %v2119, 0
    %v2373 = vsel %vm2263, %v2123, 0
    %v2376 = vsel %vm2263, %v2127, 0
    %v2379 = vsel %vm2263, %v2131, 0
    %v2382 = vsel %vm2263, %v2135, 0
    %v2385 = vsel %vm2263, %v2139, 0
    %v2388 = vsel %vm627, %v1483, 0
    %2390 = vmatprep.subr.bf16.mxu0 0
    %2391 = vmatpush1.bf16.msra.mxu0 %v1455
    %2392 = vmatprep.subr.bf16.mxu0 0
    %2393 = vmatpush1.bf16.msra.mxu0 %v1456
    %2394 = vmatprep.subr.bf16.mxu0 0
    %2395 = vmatpush1.bf16.msra.mxu0 %v1457
    %2396 = vmatprep.subr.bf16.mxu0 0
    %2397 = vmatpush1.bf16.msra.mxu0 %v1458
    %2398 = vmatprep.subr.bf16.mxu0 0
    %2399 = vmatpush1.bf16.msra.mxu0 %v1459
    %2400 = vmatprep.subr.bf16.mxu0 0
    %2401 = vmatpush1.bf16.msra.mxu0 %v1460
    %2402 = vmatprep.subr.bf16.mxu0 0
    %2403 = vmatpush1.bf16.msra.mxu0 %v1461
    %2404 = vmatprep.subr.bf16.mxu0 0
    %2405 = vmatpush1.bf16.msra.mxu0 %v1462
    %2406 = vmatprep.subr.bf16.mxu0 0
    %2407 = vmatpush1.bf16.msra.mxu0 %v1463
    %2408 = vmatprep.subr.bf16.mxu0 0
    %2409 = vmatpush1.bf16.msra.mxu0 %v1464
    %2410 = vmatprep.subr.bf16.mxu0 0
    %2411 = vmatpush1.bf16.msra.mxu0 %v1465
    %2412 = vmatprep.subr.bf16.mxu0 0
    %2413 = vmatpush1.bf16.msra.mxu0 %v1466
    %2414 = vmatprep.subr.bf16.mxu0 0
    %2415 = vmatpush1.bf16.msra.mxu0 %v1467
    %2416 = vmatprep.subr.bf16.mxu0 0
    %2417 = vmatpush1.bf16.msra.mxu0 %v1468
    %2418 = vmatprep.subr.bf16.mxu0 0
    %2419 = vmatpush1.bf16.msra.mxu0 %v1469
    %2420 = vmatprep.subr.bf16.mxu0 0
    %2421 = vmatpush1.bf16.msra.mxu0 %v1470
    %2422 = vmatprep.mubr.bf16.mxu0 %v1977
    %2423 = vmatmul.mubr.bf16.gmra.mrb[0].mxu0 %v1976
    %v2424 = vpop.f32.mrb[0].mxu0
    %v2425 = vadd.f32 0.0, %v2424
    %v2426 = vpop.f32.mrb[0].mxu0
    %v2427 = vpop.f32.mrb[0].mxu0
    %v2428 = vadd.f32 0.0, %v2427
    %v2429 = vpop.f32.mrb[0].mxu0
    %2430 = vmatprep.mubr.bf16.mxu0 %v1981
    %2431 = vmatmul.mubr.bf16.gmra.mrb[0].mxu0 %v1980
    %v2432 = vpop.f32.mrb[0].mxu0
    %v2433 = vadd.f32 0.0, %v2432
    %v2434 = vpop.f32.mrb[0].mxu0
    %v2435 = vpop.f32.mrb[0].mxu0
    %v2436 = vadd.f32 0.0, %v2435
    %v2437 = vpop.f32.mrb[0].mxu0
    %2438 = vmatprep.mubr.bf16.mxu0 %v1985
    %2439 = vmatmul.mubr.bf16.gmra.mrb[0].mxu0 %v1984
    %v2440 = vpop.f32.mrb[0].mxu0
    %v2441 = vadd.f32 0.0, %v2440
    %v2442 = vpop.f32.mrb[0].mxu0
    %v2443 = vpop.f32.mrb[0].mxu0
    %v2444 = vadd.f32 0.0, %v2443
    %v2445 = vpop.f32.mrb[0].mxu0
    %2446 = vmatprep.mubr.bf16.mxu0 %v1989
    %2447 = vmatmul.mubr.bf16.gmra.mrb[0].mxu0 %v1988
    %v2448 = vpop.f32.mrb[0].mxu0
    %v2449 = vadd.f32 0.0, %v2448
    %v2450 = vpop.f32.mrb[0].mxu0
    %v2451 = vpop.f32.mrb[0].mxu0
    %v2452 = vadd.f32 0.0, %v2451
    %v2453 = vpop.f32.mrb[0].mxu0
    %2454 = vmatprep.mubr.bf16.mxu0 %v1993
    %2455 = vmatmul.mubr.bf16.gmra.mrb[0].mxu0 %v1992
    %v2456 = vpop.f32.mrb[0].mxu0
    %v2457 = vadd.f32 0.0, %v2456
    %v2458 = vpop.f32.mrb[0].mxu0
    %v2459 = vpop.f32.mrb[0].mxu0
    %v2460 = vadd.f32 0.0, %v2459
    %v2461 = vpop.f32.mrb[0].mxu0
    %2462 = vmatprep.mubr.bf16.mxu0 %v1997
    %2463 = vmatmul.mubr.bf16.gmra.mrb[0].mxu0 %v1996
    %v2464 = vpop.f32.mrb[0].mxu0
    %v2465 = vadd.f32 0.0, %v2464
    %v2466 = vpop.f32.mrb[0].mxu0
    %v2467 = vpop.f32.mrb[0].mxu0
    %v2468 = vadd.f32 0.0, %v2467
    %v2469 = vpop.f32.mrb[0].mxu0
    %2470 = vmatprep.mubr.bf16.mxu0 %v2001
    %2471 = vmatmul.mubr.bf16.gmra.mrb[0].mxu0 %v2000
    %v2472 = vpop.f32.mrb[0].mxu0
    %v2473 = vadd.f32 0.0, %v2472
    %v2474 = vpop.f32.mrb[0].mxu0
    %v2475 = vpop.f32.mrb[0].mxu0
    %v2476 = vadd.f32 0.0, %v2475
    %v2477 = vpop.f32.mrb[0].mxu0
    %2478 = vmatprep.mubr.bf16.mxu0 %v2005
    %2479 = vmatmul.mubr.bf16.gmra.mrb[0].mxu0 %v2004
    %v2480 = vpop.f32.mrb[0].mxu0
    %v2481 = vadd.f32 0.0, %v2480
    %v2482 = vpop.f32.mrb[0].mxu0
    %v2483 = vpop.f32.mrb[0].mxu0
    %v2484 = vadd.f32 0.0, %v2483
    %v2485 = vpop.f32.mrb[0].mxu0
    %2486 = vmatprep.mubr.bf16.mxu0 %v2009
    %2487 = vmatmul.mubr.bf16.gmra.mrb[0].mxu0 %v2008
    %v2488 = vpop.f32.mrb[0].mxu0
    %v2489 = vadd.f32 0.0, %v2488
    %v2490 = vpop.f32.mrb[0].mxu0
    %v2491 = vpop.f32.mrb[0].mxu0
    %v2492 = vadd.f32 0.0, %v2491
    %v2493 = vpop.f32.mrb[0].mxu0
    %2494 = vmatprep.mubr.bf16.mxu0 %v2013
    %2495 = vmatmul.mubr.bf16.gmra.mrb[0].mxu0 %v2012
    %v2496 = vpop.f32.mrb[0].mxu0
    %v2497 = vadd.f32 0.0, %v2496
    %v2498 = vpop.f32.mrb[0].mxu0
    %v2499 = vpop.f32.mrb[0].mxu0
    %v2500 = vadd.f32 0.0, %v2499
    %v2501 = vpop.f32.mrb[0].mxu0
    %2502 = vmatprep.mubr.bf16.mxu0 %v2017
    %2503 = vmatmul.mubr.bf16.gmra.mrb[0].mxu0 %v2016
    %v2504 = vpop.f32.mrb[0].mxu0
    %v2505 = vadd.f32 0.0, %v2504
    %v2506 = vpop.f32.mrb[0].mxu0
    %v2507 = vpop.f32.mrb[0].mxu0
    %v2508 = vadd.f32 0.0, %v2507
    %v2509 = vpop.f32.mrb[0].mxu0
    %2510 = vmatprep.mubr.bf16.mxu0 %v2021
    %2511 = vmatmul.mubr.bf16.gmra.mrb[0].mxu0 %v2020
    %v2512 = vpop.f32.mrb[0].mxu0
    %v2513 = vadd.f32 0.0, %v2512
    %v2514 = vpop.f32.mrb[0].mxu0
    %v2515 = vpop.f32.mrb[0].mxu0
    %v2516 = vadd.f32 0.0, %v2515
    %v2517 = vpop.f32.mrb[0].mxu0
    %2518 = vmatprep.mubr.bf16.mxu0 %v2025
    %2519 = vmatmul.mubr.bf16.gmra.mrb[0].mxu0 %v2024
    %v2520 = vpop.f32.mrb[0].mxu0
    %v2521 = vadd.f32 0.0, %v2520
    %v2522 = vpop.f32.mrb[0].mxu0
    %v2523 = vpop.f32.mrb[0].mxu0
    %v2524 = vadd.f32 0.0, %v2523
    %v2525 = vpop.f32.mrb[0].mxu0
    %2526 = vmatprep.mubr.bf16.mxu0 %v2029
    %2527 = vmatmul.mubr.bf16.gmra.mrb[0].mxu0 %v2028
    %v2528 = vpop.f32.mrb[0].mxu0
    %v2529 = vadd.f32 0.0, %v2528
    %v2530 = vpop.f32.mrb[0].mxu0
    %v2531 = vpop.f32.mrb[0].mxu0
    %v2532 = vadd.f32 0.0, %v2531
    %v2533 = vpop.f32.mrb[0].mxu0
    %2534 = vmatprep.mubr.bf16.mxu0 %v2033
    %2535 = vmatmul.mubr.bf16.gmra.mrb[0].mxu0 %v2032
    %v2536 = vpop.f32.mrb[0].mxu0
    %v2537 = vadd.f32 0.0, %v2536
    %v2538 = vpop.f32.mrb[0].mxu0
    %v2539 = vpop.f32.mrb[0].mxu0
    %v2540 = vadd.f32 0.0, %v2539
    %v2541 = vpop.f32.mrb[0].mxu0
    %2542 = vmatprep.mubr.bf16.mxu0 %v2037
    %2543 = vmatmul.mubr.bf16.gmra.mrb[0].mxu0 %v2036
    %v2544 = vpop.f32.mrb[0].mxu0
    %v2545 = vadd.f32 0.0, %v2544
    %v2546 = vpop.f32.mrb[0].mxu0
    %v2547 = vpop.f32.mrb[0].mxu0
    %v2548 = vadd.f32 0.0, %v2547
    %v2549 = vpop.f32.mrb[0].mxu0
    %2550 = vmatprep.mubr.bf16.mxu0 %v2041
    %2551 = vmatmul.mubr.bf16.gmra.mrb[0].mxu0 %v2040
    %v2552 = vpop.f32.mrb[0].mxu0
    %v2553 = vadd.f32 0.0, %v2552
    %v2554 = vpop.f32.mrb[0].mxu0
    %v2555 = vpop.f32.mrb[0].mxu0
    %v2556 = vadd.f32 0.0, %v2555
    %v2557 = vpop.f32.mrb[0].mxu0
    %2558 = vmatprep.mubr.bf16.mxu0 %v2045
    %2559 = vmatmul.mubr.bf16.gmra.mrb[0].mxu0 %v2044
    %v2560 = vpop.f32.mrb[0].mxu0
    %v2561 = vadd.f32 0.0, %v2560
    %v2562 = vpop.f32.mrb[0].mxu0
    %v2563 = vpop.f32.mrb[0].mxu0
    %v2564 = vadd.f32 0.0, %v2563
    %v2565 = vpop.f32.mrb[0].mxu0
    %2566 = vmatprep.mubr.bf16.mxu0 %v2049
    %2567 = vmatmul.mubr.bf16.gmra.mrb[0].mxu0 %v2048
    %v2568 = vpop.f32.mrb[0].mxu0
    %v2569 = vadd.f32 0.0, %v2568
    %v2570 = vpop.f32.mrb[0].mxu0
    %v2571 = vpop.f32.mrb[0].mxu0
    %v2572 = vadd.f32 0.0, %v2571
    %v2573 = vpop.f32.mrb[0].mxu0
    %2574 = vmatprep.mubr.bf16.mxu0 %v2053
    %2575 = vmatmul.mubr.bf16.gmra.mrb[0].mxu0 %v2052
    %v2576 = vpop.f32.mrb[0].mxu0
    %v2577 = vadd.f32 0.0, %v2576
    %v2578 = vpop.f32.mrb[0].mxu0
    %v2579 = vpop.f32.mrb[0].mxu0
    %v2580 = vadd.f32 0.0, %v2579
    %v2581 = vpop.f32.mrb[0].mxu0
    %2582 = vmatprep.mubr.bf16.mxu0 %v2057
    %2583 = vmatmul.mubr.bf16.gmra.mrb[0].mxu0 %v2056
    %v2584 = vpop.f32.mrb[0].mxu0
    %v2585 = vadd.f32 0.0, %v2584
    %v2586 = vpop.f32.mrb[0].mxu0
    %v2587 = vpop.f32.mrb[0].mxu0
    %v2588 = vadd.f32 0.0, %v2587
    %v2589 = vpop.f32.mrb[0].mxu0
    %2590 = vmatprep.mubr.bf16.mxu0 %v2061
    %2591 = vmatmul.mubr.bf16.gmra.mrb[0].mxu0 %v2060
    %v2592 = vpop.f32.mrb[0].mxu0
    %v2593 = vadd.f32 0.0, %v2592
    %v2594 = vpop.f32.mrb[0].mxu0
    %v2595 = vpop.f32.mrb[0].mxu0
    %v2596 = vadd.f32 0.0, %v2595
    %v2597 = vpop.f32.mrb[0].mxu0
    %2598 = vmatprep.mubr.bf16.mxu0 %v2065
    %2599 = vmatmul.mubr.bf16.gmra.mrb[0].mxu0 %v2064
    %v2600 = vpop.f32.mrb[0].mxu0
    %v2601 = vadd.f32 0.0, %v2600
    %v2602 = vpop.f32.mrb[0].mxu0
    %v2603 = vpop.f32.mrb[0].mxu0
    %v2604 = vadd.f32 0.0, %v2603
    %v2605 = vpop.f32.mrb[0].mxu0
    %2606 = vmatprep.mubr.bf16.mxu0 %v2069
    %2607 = vmatmul.mubr.bf16.gmra.mrb[0].mxu0 %v2068
    %v2608 = vpop.f32.mrb[0].mxu0
    %v2609 = vadd.f32 0.0, %v2608
    %v2610 = vpop.f32.mrb[0].mxu0
    %v2611 = vpop.f32.mrb[0].mxu0
    %v2612 = vadd.f32 0.0, %v2611
    %v2613 = vpop.f32.mrb[0].mxu0
    %2614 = vmatprep.mubr.bf16.mxu0 %v2073
    %2615 = vmatmul.mubr.bf16.gmra.mrb[0].mxu0 %v2072
    %v2616 = vpop.f32.mrb[0].mxu0
    %v2617 = vadd.f32 0.0, %v2616
    %v2618 = vpop.f32.mrb[0].mxu0
    %v2619 = vpop.f32.mrb[0].mxu0
    %v2620 = vadd.f32 0.0, %v2619
    %v2621 = vpop.f32.mrb[0].mxu0
    %2622 = vmatprep.mubr.bf16.mxu0 %v2077
    %2623 = vmatmul.mubr.bf16.gmra.mrb[0].mxu0 %v2076
    %v2624 = vpop.f32.mrb[0].mxu0
    %v2625 = vadd.f32 0.0, %v2624
    %v2626 = vpop.f32.mrb[0].mxu0
    %v2627 = vpop.f32.mrb[0].mxu0
    %v2628 = vadd.f32 0.0, %v2627
    %v2629 = vpop.f32.mrb[0].mxu0
    %2630 = vmatprep.mubr.bf16.mxu0 %v2081
    %2631 = vmatmul.mubr.bf16.gmra.mrb[0].mxu0 %v2080
    %v2632 = vpop.f32.mrb[0].mxu0
    %v2633 = vadd.f32 0.0, %v2632
    %v2634 = vpop.f32.mrb[0].mxu0
    %v2635 = vpop.f32.mrb[0].mxu0
    %v2636 = vadd.f32 0.0, %v2635
    %v2637 = vpop.f32.mrb[0].mxu0
    %2638 = vmatprep.mubr.bf16.mxu0 %v2085
    %2639 = vmatmul.mubr.bf16.gmra.mrb[0].mxu0 %v2084
    %v2640 = vpop.f32.mrb[0].mxu0
    %v2641 = vadd.f32 0.0, %v2640
    %v2642 = vpop.f32.mrb[0].mxu0
    %v2643 = vpop.f32.mrb[0].mxu0
    %v2644 = vadd.f32 0.0, %v2643
    %v2645 = vpop.f32.mrb[0].mxu0
    %2646 = vmatprep.mubr.bf16.mxu0 %v2089
    %2647 = vmatmul.mubr.bf16.gmra.mrb[0].mxu0 %v2088
    %v2648 = vpop.f32.mrb[0].mxu0
    %v2649 = vadd.f32 0.0, %v2648
    %v2650 = vpop.f32.mrb[0].mxu0
    %v2651 = vpop.f32.mrb[0].mxu0
    %v2652 = vadd.f32 0.0, %v2651
    %v2653 = vpop.f32.mrb[0].mxu0
    %2654 = vmatprep.mubr.bf16.mxu0 %v2093
    %2655 = vmatmul.mubr.bf16.gmra.mrb[0].mxu0 %v2092
    %v2656 = vpop.f32.mrb[0].mxu0
    %v2657 = vadd.f32 0.0, %v2656
    %v2658 = vpop.f32.mrb[0].mxu0
    %v2659 = vpop.f32.mrb[0].mxu0
    %v2660 = vadd.f32 0.0, %v2659
    %v2661 = vpop.f32.mrb[0].mxu0
    %2662 = vmatprep.mubr.bf16.mxu0 %v2097
    %2663 = vmatmul.mubr.bf16.gmra.mrb[0].mxu0 %v2096
    %v2664 = vpop.f32.mrb[0].mxu0
    %v2665 = vadd.f32 0.0, %v2664
    %v2666 = vpop.f32.mrb[0].mxu0
    %v2667 = vpop.f32.mrb[0].mxu0
    %v2668 = vadd.f32 0.0, %v2667
    %v2669 = vpop.f32.mrb[0].mxu0
    %2670 = vmatprep.mubr.bf16.mxu0 %v2101
    %2671 = vmatmul.mubr.bf16.gmra.mrb[0].mxu0 %v2100
    %v2672 = vpop.f32.mrb[0].mxu0
    %v2673 = vadd.f32 0.0, %v2672
    %v2674 = vpop.f32.mrb[0].mxu0
    %v2675 = vpop.f32.mrb[0].mxu0
    %v2676 = vadd.f32 0.0, %v2675
    %v2677 = vpop.f32.mrb[0].mxu0
    %2678 = vmatprep.mubr.bf16.mxu0 %v2105
    %2679 = vmatmul.mubr.bf16.gmra.mrb[0].mxu0 %v2104
    %v2680 = vpop.f32.mrb[0].mxu0
    %v2681 = vadd.f32 0.0, %v2680
    %v2682 = vpop.f32.mrb[0].mxu0
    %v2683 = vpop.f32.mrb[0].mxu0
    %v2684 = vadd.f32 0.0, %v2683
    %v2685 = vpop.f32.mrb[0].mxu0
    %2686 = vmatprep.mubr.bf16.mxu0 %v2109
    %2687 = vmatmul.mubr.bf16.gmra.mrb[0].mxu0 %v2108
    %v2688 = vpop.f32.mrb[0].mxu0
    %v2689 = vadd.f32 0.0, %v2688
    %v2690 = vpop.f32.mrb[0].mxu0
    %v2691 = vpop.f32.mrb[0].mxu0
    %v2692 = vadd.f32 0.0, %v2691
    %v2693 = vpop.f32.mrb[0].mxu0
    %2694 = vmatprep.mubr.bf16.mxu0 %v2113
    %2695 = vmatmul.mubr.bf16.gmra.mrb[0].mxu0 %v2112
    %v2696 = vpop.f32.mrb[0].mxu0
    %v2697 = vadd.f32 0.0, %v2696
    %v2698 = vpop.f32.mrb[0].mxu0
    %v2699 = vpop.f32.mrb[0].mxu0
    %v2700 = vadd.f32 0.0, %v2699
    %v2701 = vpop.f32.mrb[0].mxu0
    %2702 = vmatprep.mubr.bf16.mxu0 %v2117
    %2703 = vmatmul.mubr.bf16.gmra.mrb[0].mxu0 %v2116
    %v2704 = vpop.f32.mrb[0].mxu0
    %v2705 = vadd.f32 0.0, %v2704
    %v2706 = vpop.f32.mrb[0].mxu0
    %v2707 = vpop.f32.mrb[0].mxu0
    %v2708 = vadd.f32 0.0, %v2707
    %v2709 = vpop.f32.mrb[0].mxu0
    %2710 = vmatprep.mubr.bf16.mxu0 %v2121
    %2711 = vmatmul.mubr.bf16.gmra.mrb[0].mxu0 %v2120
    %v2712 = vpop.f32.mrb[0].mxu0
    %v2713 = vadd.f32 0.0, %v2712
    %v2714 = vpop.f32.mrb[0].mxu0
    %v2715 = vpop.f32.mrb[0].mxu0
    %v2716 = vadd.f32 0.0, %v2715
    %v2717 = vpop.f32.mrb[0].mxu0
    %2718 = vmatprep.mubr.bf16.mxu0 %v2125
    %2719 = vmatmul.mubr.bf16.gmra.mrb[0].mxu0 %v2124
    %v2720 = vpop.f32.mrb[0].mxu0
    %v2721 = vadd.f32 0.0, %v2720
    %v2722 = vpop.f32.mrb[0].mxu0
    %v2723 = vpop.f32.mrb[0].mxu0
    %v2724 = vadd.f32 0.0, %v2723
    %v2725 = vpop.f32.mrb[0].mxu0
    %2726 = vmatprep.mubr.bf16.mxu0 %v2129
    %2727 = vmatmul.mubr.bf16.gmra.mrb[0].mxu0 %v2128
    %v2728 = vpop.f32.mrb[0].mxu0
    %v2729 = vadd.f32 0.0, %v2728
    %v2730 = vpop.f32.mrb[0].mxu0
    %v2731 = vpop.f32.mrb[0].mxu0
    %v2732 = vadd.f32 0.0, %v2731
    %v2733 = vpop.f32.mrb[0].mxu0
    %2734 = vmatprep.mubr.bf16.mxu0 %v2133
    %2735 = vmatmul.mubr.bf16.gmra.mrb[0].mxu0 %v2132
    %v2736 = vpop.f32.mrb[0].mxu0
    %v2737 = vadd.f32 0.0, %v2736
    %v2738 = vpop.f32.mrb[0].mxu0
    %v2739 = vpop.f32.mrb[0].mxu0
    %v2740 = vadd.f32 0.0, %v2739
    %v2741 = vpop.f32.mrb[0].mxu0
    %2742 = vmatprep.mubr.bf16.mxu0 %v2137
    %2743 = vmatmul.mubr.bf16.gmra.mrb[0].mxu0 %v2136
    %v2744 = vpop.f32.mrb[0].mxu0
    %v2745 = vadd.f32 0.0, %v2744
    %v2746 = vpop.f32.mrb[0].mxu0
    %v2747 = vpop.f32.mrb[0].mxu0
    %v2748 = vadd.f32 0.0, %v2747
    %v2749 = vpop.f32.mrb[0].mxu0
    %2750 = vdwg.mxu0
    %2751 = vmatprep.subr.bf16.mxu0 0
    %2752 = vmatpush1.bf16.msra.mxu0 %v1471
    %2753 = vmatprep.subr.bf16.mxu0 0
    %2754 = vmatpush1.bf16.msra.mxu0 %v1472
    %2755 = vmatprep.subr.bf16.mxu0 0
    %2756 = vmatpush1.bf16.msra.mxu0 %v1473
    %2757 = vmatprep.subr.bf16.mxu0 0
    %2758 = vmatpush1.bf16.msra.mxu0 %v1474
    %2759 = vmatprep.subr.bf16.mxu0 0
    %2760 = vmatpush1.bf16.msra.mxu0 %v1475
    %2761 = vmatprep.subr.bf16.mxu0 0
    %2762 = vmatpush1.bf16.msra.mxu0 %v1476
    %2763 = vmatprep.subr.bf16.mxu0 0
    %2764 = vmatpush1.bf16.msra.mxu0 %v1477
    %2765 = vmatprep.subr.bf16.mxu0 0
    %2766 = vmatpush1.bf16.msra.mxu0 %v1478
    %2767 = vmatprep.subr.bf16.mxu0 0
    %2768 = vmatpush1.bf16.msra.mxu0 %v1479
    %2769 = vmatprep.subr.bf16.mxu0 0
    %2770 = vmatpush1.bf16.msra.mxu0 %v1480
    %2771 = vmatprep.subr.bf16.mxu0 0
    %2772 = vmatpush1.bf16.msra.mxu0 %v1481
    %2773 = vmatprep.subr.bf16.mxu0 0
    %2774 = vmatpush1.bf16.msra.mxu0 %v1482
    %2775 = vmatprep.subr.bf16.mxu0 0
    %2776 = vmatpush1.bf16.msra.mxu0 %v2388
    %2777 = vmatprep.subr.bf16.mxu0 0
    %2778 = vmatpush1.bf16.msra.mxu0 0
    %2779 = vmatprep.subr.bf16.mxu0 0
    %2780 = vmatpush1.bf16.msra.mxu0 0
    %2781 = vmatprep.subr.bf16.mxu0 0
    %2782 = vmatpush1.bf16.msra.mxu0 0
    %2783 = vmatprep.mubr.bf16.mxu0 %v2265
    %2784 = vmatmul.mubr.bf16.gmra.mrb[0].mxu0 %v1978
    %v2785 = vpop.f32.mrb[0].mxu0
    %v2786 = vadd.f32 %v2425, %v2785
    %v2787 = vpop.f32.mrb[0].mxu0
    %v2788 = vpop.f32.mrb[0].mxu0
    %v2789 = vadd.f32 %v2428, %v2788
    %v2790 = vpop.f32.mrb[0].mxu0
    %2791 = vmatprep.mubr.bf16.mxu0 %v2268
    %2792 = vmatmul.mubr.bf16.gmra.mrb[0].mxu0 %v1982
    %v2793 = vpop.f32.mrb[0].mxu0
    %v2794 = vadd.f32 %v2433, %v2793
    %v2795 = vpop.f32.mrb[0].mxu0
    %v2796 = vpop.f32.mrb[0].mxu0
    %v2797 = vadd.f32 %v2436, %v2796
    %v2798 = vpop.f32.mrb[0].mxu0
    %2799 = vmatprep.mubr.bf16.mxu0 %v2271
    %2800 = vmatmul.mubr.bf16.gmra.mrb[0].mxu0 %v1986
    %v2801 = vpop.f32.mrb[0].mxu0
    %v2802 = vadd.f32 %v2441, %v2801
    %v2803 = vpop.f32.mrb[0].mxu0
    %v2804 = vpop.f32.mrb[0].mxu0
    %v2805 = vadd.f32 %v2444, %v2804
    %v2806 = vpop.f32.mrb[0].mxu0
    %2807 = vmatprep.mubr.bf16.mxu0 %v2274
    %2808 = vmatmul.mubr.bf16.gmra.mrb[0].mxu0 %v1990
    %v2809 = vpop.f32.mrb[0].mxu0
    %v2810 = vadd.f32 %v2449, %v2809
    %v2811 = vpop.f32.mrb[0].mxu0
    %v2812 = vpop.f32.mrb[0].mxu0
    %v2813 = vadd.f32 %v2452, %v2812
    %v2814 = vpop.f32.mrb[0].mxu0
    %2815 = vmatprep.mubr.bf16.mxu0 %v2277
    %2816 = vmatmul.mubr.bf16.gmra.mrb[0].mxu0 %v1994
    %v2817 = vpop.f32.mrb[0].mxu0
    %v2818 = vadd.f32 %v2457, %v2817
    %v2819 = vpop.f32.mrb[0].mxu0
    %v2820 = vpop.f32.mrb[0].mxu0
    %v2821 = vadd.f32 %v2460, %v2820
    %v2822 = vpop.f32.mrb[0].mxu0
    %2823 = vmatprep.mubr.bf16.mxu0 %v2280
    %2824 = vmatmul.mubr.bf16.gmra.mrb[0].mxu0 %v1998
    %v2825 = vpop.f32.mrb[0].mxu0
    %v2826 = vadd.f32 %v2465, %v2825
    %v2827 = vpop.f32.mrb[0].mxu0
    %v2828 = vpop.f32.mrb[0].mxu0
    %v2829 = vadd.f32 %v2468, %v2828
    %v2830 = vpop.f32.mrb[0].mxu0
    %2831 = vmatprep.mubr.bf16.mxu0 %v2283
    %2832 = vmatmul.mubr.bf16.gmra.mrb[0].mxu0 %v2002
    %v2833 = vpop.f32.mrb[0].mxu0
    %v2834 = vadd.f32 %v2473, %v2833
    %v2835 = vpop.f32.mrb[0].mxu0
    %v2836 = vpop.f32.mrb[0].mxu0
    %v2837 = vadd.f32 %v2476, %v2836
    %v2838 = vpop.f32.mrb[0].mxu0
    %2839 = vmatprep.mubr.bf16.mxu0 %v2286
    %2840 = vmatmul.mubr.bf16.gmra.mrb[0].mxu0 %v2006
    %v2841 = vpop.f32.mrb[0].mxu0
    %v2842 = vadd.f32 %v2481, %v2841
    %v2843 = vpop.f32.mrb[0].mxu0
    %v2844 = vpop.f32.mrb[0].mxu0
    %v2845 = vadd.f32 %v2484, %v2844
    %v2846 = vpop.f32.mrb[0].mxu0
    %2847 = vmatprep.mubr.bf16.mxu0 %v2289
    %2848 = vmatmul.mubr.bf16.gmra.mrb[0].mxu0 %v2010
    %v2849 = vpop.f32.mrb[0].mxu0
    %v2850 = vadd.f32 %v2489, %v2849
    %v2851 = vpop.f32.mrb[0].mxu0
    %v2852 = vpop.f32.mrb[0].mxu0
    %v2853 = vadd.f32 %v2492, %v2852
    %v2854 = vpop.f32.mrb[0].mxu0
    %2855 = vmatprep.mubr.bf16.mxu0 %v2292
    %2856 = vmatmul.mubr.bf16.gmra.mrb[0].mxu0 %v2014
    %v2857 = vpop.f32.mrb[0].mxu0
    %v2858 = vadd.f32 %v2497, %v2857
    %v2859 = vpop.f32.mrb[0].mxu0
    %v2860 = vpop.f32.mrb[0].mxu0
    %v2861 = vadd.f32 %v2500, %v2860
    %v2862 = vpop.f32.mrb[0].mxu0
    %2863 = vmatprep.mubr.bf16.mxu0 %v2295
    %2864 = vmatmul.mubr.bf16.gmra.mrb[0].mxu0 %v2018
    %v2865 = vpop.f32.mrb[0].mxu0
    %v2866 = vadd.f32 %v2505, %v2865
    %v2867 = vpop.f32.mrb[0].mxu0
    %v2868 = vpop.f32.mrb[0].mxu0
    %v2869 = vadd.f32 %v2508, %v2868
    %v2870 = vpop.f32.mrb[0].mxu0
    %2871 = vmatprep.mubr.bf16.mxu0 %v2298
    %2872 = vmatmul.mubr.bf16.gmra.mrb[0].mxu0 %v2022
    %v2873 = vpop.f32.mrb[0].mxu0
    %v2874 = vadd.f32 %v2513, %v2873
    %v2875 = vpop.f32.mrb[0].mxu0
    %v2876 = vpop.f32.mrb[0].mxu0
    %v2877 = vadd.f32 %v2516, %v2876
    %v2878 = vpop.f32.mrb[0].mxu0
    %2879 = vmatprep.mubr.bf16.mxu0 %v2301
    %2880 = vmatmul.mubr.bf16.gmra.mrb[0].mxu0 %v2026
    %v2881 = vpop.f32.mrb[0].mxu0
    %v2882 = vadd.f32 %v2521, %v2881
    %v2883 = vpop.f32.mrb[0].mxu0
    %v2884 = vpop.f32.mrb[0].mxu0
    %v2885 = vadd.f32 %v2524, %v2884
    %v2886 = vpop.f32.mrb[0].mxu0
    %2887 = vmatprep.mubr.bf16.mxu0 %v2304
    %2888 = vmatmul.mubr.bf16.gmra.mrb[0].mxu0 %v2030
    %v2889 = vpop.f32.mrb[0].mxu0
    %v2890 = vadd.f32 %v2529, %v2889
    %v2891 = vpop.f32.mrb[0].mxu0
    %v2892 = vpop.f32.mrb[0].mxu0
    %v2893 = vadd.f32 %v2532, %v2892
    %v2894 = vpop.f32.mrb[0].mxu0
    %2895 = vmatprep.mubr.bf16.mxu0 %v2307
    %2896 = vmatmul.mubr.bf16.gmra.mrb[0].mxu0 %v2034
    %v2897 = vpop.f32.mrb[0].mxu0
    %v2898 = vadd.f32 %v2537, %v2897
    %v2899 = vpop.f32.mrb[0].mxu0
    %v2900 = vpop.f32.mrb[0].mxu0
    %v2901 = vadd.f32 %v2540, %v2900
    %v2902 = vpop.f32.mrb[0].mxu0
    %2903 = vmatprep.mubr.bf16.mxu0 %v2310
    %2904 = vmatmul.mubr.bf16.gmra.mrb[0].mxu0 %v2038
    %v2905 = vpop.f32.mrb[0].mxu0
    %v2906 = vadd.f32 %v2545, %v2905
    %v2907 = vpop.f32.mrb[0].mxu0
    %v2908 = vpop.f32.mrb[0].mxu0
    %v2909 = vadd.f32 %v2548, %v2908
    %v2910 = vpop.f32.mrb[0].mxu0
    %2911 = vmatprep.mubr.bf16.mxu0 %v2313
    %2912 = vmatmul.mubr.bf16.gmra.mrb[0].mxu0 %v2042
    %v2913 = vpop.f32.mrb[0].mxu0
    %v2914 = vadd.f32 %v2553, %v2913
    %v2915 = vpop.f32.mrb[0].mxu0
    %v2916 = vpop.f32.mrb[0].mxu0
    %v2917 = vadd.f32 %v2556, %v2916
    %v2918 = vpop.f32.mrb[0].mxu0
    %2919 = vmatprep.mubr.bf16.mxu0 %v2316
    %2920 = vmatmul.mubr.bf16.gmra.mrb[0].mxu0 %v2046
    %v2921 = vpop.f32.mrb[0].mxu0
    %v2922 = vadd.f32 %v2561, %v2921
    %v2923 = vpop.f32.mrb[0].mxu0
    %v2924 = vpop.f32.mrb[0].mxu0
    %v2925 = vadd.f32 %v2564, %v2924
    %v2926 = vpop.f32.mrb[0].mxu0
    %2927 = vmatprep.mubr.bf16.mxu0 %v2319
    %2928 = vmatmul.mubr.bf16.gmra.mrb[0].mxu0 %v2050
    %v2929 = vpop.f32.mrb[0].mxu0
    %v2930 = vadd.f32 %v2569, %v2929
    %v2931 = vpop.f32.mrb[0].mxu0
    %v2932 = vpop.f32.mrb[0].mxu0
    %v2933 = vadd.f32 %v2572, %v2932
    %v2934 = vpop.f32.mrb[0].mxu0
    %2935 = vmatprep.mubr.bf16.mxu0 %v2322
    %2936 = vmatmul.mubr.bf16.gmra.mrb[0].mxu0 %v2054
    %v2937 = vpop.f32.mrb[0].mxu0
    %v2938 = vadd.f32 %v2577, %v2937
    %v2939 = vpop.f32.mrb[0].mxu0
    %v2940 = vpop.f32.mrb[0].mxu0
    %v2941 = vadd.f32 %v2580, %v2940
    %v2942 = vpop.f32.mrb[0].mxu0
    %2943 = vmatprep.mubr.bf16.mxu0 %v2325
    %2944 = vmatmul.mubr.bf16.gmra.mrb[0].mxu0 %v2058
    %v2945 = vpop.f32.mrb[0].mxu0
    %v2946 = vadd.f32 %v2585, %v2945
    %v2947 = vpop.f32.mrb[0].mxu0
    %v2948 = vpop.f32.mrb[0].mxu0
    %v2949 = vadd.f32 %v2588, %v2948
    %v2950 = vpop.f32.mrb[0].mxu0
    %2951 = vmatprep.mubr.bf16.mxu0 %v2328
    %2952 = vmatmul.mubr.bf16.gmra.mrb[0].mxu0 %v2062
    %v2953 = vpop.f32.mrb[0].mxu0
    %v2954 = vadd.f32 %v2593, %v2953
    %v2955 = vpop.f32.mrb[0].mxu0
    %v2956 = vpop.f32.mrb[0].mxu0
    %v2957 = vadd.f32 %v2596, %v2956
    %v2958 = vpop.f32.mrb[0].mxu0
    %2959 = vmatprep.mubr.bf16.mxu0 %v2331
    %2960 = vmatmul.mubr.bf16.gmra.mrb[0].mxu0 %v2066
    %v2961 = vpop.f32.mrb[0].mxu0
    %v2962 = vadd.f32 %v2601, %v2961
    %v2963 = vpop.f32.mrb[0].mxu0
    %v2964 = vpop.f32.mrb[0].mxu0
    %v2965 = vadd.f32 %v2604, %v2964
    %v2966 = vpop.f32.mrb[0].mxu0
    %2967 = vmatprep.mubr.bf16.mxu0 %v2334
    %2968 = vmatmul.mubr.bf16.gmra.mrb[0].mxu0 %v2070
    %v2969 = vpop.f32.mrb[0].mxu0
    %v2970 = vadd.f32 %v2609, %v2969
    %v2971 = vpop.f32.mrb[0].mxu0
    %v2972 = vpop.f32.mrb[0].mxu0
    %v2973 = vadd.f32 %v2612, %v2972
    %v2974 = vpop.f32.mrb[0].mxu0
    %2975 = vmatprep.mubr.bf16.mxu0 %v2337
    %2976 = vmatmul.mubr.bf16.gmra.mrb[0].mxu0 %v2074
    %v2977 = vpop.f32.mrb[0].mxu0
    %v2978 = vadd.f32 %v2617, %v2977
    %v2979 = vpop.f32.mrb[0].mxu0
    %v2980 = vpop.f32.mrb[0].mxu0
    %v2981 = vadd.f32 %v2620, %v2980
    %v2982 = vpop.f32.mrb[0].mxu0
    %2983 = vmatprep.mubr.bf16.mxu0 %v2340
    %2984 = vmatmul.mubr.bf16.gmra.mrb[0].mxu0 %v2078
    %v2985 = vpop.f32.mrb[0].mxu0
    %v2986 = vadd.f32 %v2625, %v2985
    %v2987 = vpop.f32.mrb[0].mxu0
    %v2988 = vpop.f32.mrb[0].mxu0
    %v2989 = vadd.f32 %v2628, %v2988
    %v2990 = vpop.f32.mrb[0].mxu0
    %2991 = vmatprep.mubr.bf16.mxu0 %v2343
    %2992 = vmatmul.mubr.bf16.gmra.mrb[0].mxu0 %v2082
    %v2993 = vpop.f32.mrb[0].mxu0
    %v2994 = vadd.f32 %v2633, %v2993
    %v2995 = vpop.f32.mrb[0].mxu0
    %v2996 = vpop.f32.mrb[0].mxu0
    %v2997 = vadd.f32 %v2636, %v2996
    %v2998 = vpop.f32.mrb[0].mxu0
    %2999 = vmatprep.mubr.bf16.mxu0 %v2346
    %3000 = vmatmul.mubr.bf16.gmra.mrb[0].mxu0 %v2086
    %v3001 = vpop.f32.mrb[0].mxu0
    %v3002 = vadd.f32 %v2641, %v3001
    %v3003 = vpop.f32.mrb[0].mxu0
    %v3004 = vpop.f32.mrb[0].mxu0
    %v3005 = vadd.f32 %v2644, %v3004
    %v3006 = vpop.f32.mrb[0].mxu0
    %3007 = vmatprep.mubr.bf16.mxu0 %v2349
    %3008 = vmatmul.mubr.bf16.gmra.mrb[0].mxu0 %v2090
    %v3009 = vpop.f32.mrb[0].mxu0
    %v3010 = vadd.f32 %v2649, %v3009
    %v3011 = vpop.f32.mrb[0].mxu0
    %v3012 = vpop.f32.mrb[0].mxu0
    %v3013 = vadd.f32 %v2652, %v3012
    %v3014 = vpop.f32.mrb[0].mxu0
    %3015 = vmatprep.mubr.bf16.mxu0 %v2352
    %3016 = vmatmul.mubr.bf16.gmra.mrb[0].mxu0 %v2094
    %v3017 = vpop.f32.mrb[0].mxu0
    %v3018 = vadd.f32 %v2657, %v3017
    %v3019 = vpop.f32.mrb[0].mxu0
    %v3020 = vpop.f32.mrb[0].mxu0
    %v3021 = vadd.f32 %v2660, %v3020
    %v3022 = vpop.f32.mrb[0].mxu0
    %3023 = vmatprep.mubr.bf16.mxu0 %v2355
    %3024 = vmatmul.mubr.bf16.gmra.mrb[0].mxu0 %v2098
    %v3025 = vpop.f32.mrb[0].mxu0
    %v3026 = vadd.f32 %v2665, %v3025
    %v3027 = vpop.f32.mrb[0].mxu0
    %v3028 = vpop.f32.mrb[0].mxu0
    %v3029 = vadd.f32 %v2668, %v3028
    %v3030 = vpop.f32.mrb[0].mxu0
    %3031 = vmatprep.mubr.bf16.mxu0 %v2358
    %3032 = vmatmul.mubr.bf16.gmra.mrb[0].mxu0 %v2102
    %v3033 = vpop.f32.mrb[0].mxu0
    %v3034 = vadd.f32 %v2673, %v3033
    %v3035 = vpop.f32.mrb[0].mxu0
    %v3036 = vpop.f32.mrb[0].mxu0
    %v3037 = vadd.f32 %v2676, %v3036
    %v3038 = vpop.f32.mrb[0].mxu0
    %3039 = vmatprep.mubr.bf16.mxu0 %v2361
    %3040 = vmatmul.mubr.bf16.gmra.mrb[0].mxu0 %v2106
    %v3041 = vpop.f32.mrb[0].mxu0
    %v3042 = vadd.f32 %v2681, %v3041
    %v3043 = vpop.f32.mrb[0].mxu0
    %v3044 = vpop.f32.mrb[0].mxu0
    %v3045 = vadd.f32 %v2684, %v3044
    %v3046 = vpop.f32.mrb[0].mxu0
    %3047 = vmatprep.mubr.bf16.mxu0 %v2364
    %3048 = vmatmul.mubr.bf16.gmra.mrb[0].mxu0 %v2110
    %v3049 = vpop.f32.mrb[0].mxu0
    %v3050 = vadd.f32 %v2689, %v3049
    %v3051 = vpop.f32.mrb[0].mxu0
    %v3052 = vpop.f32.mrb[0].mxu0
    %v3053 = vadd.f32 %v2692, %v3052
    %v3054 = vpop.f32.mrb[0].mxu0
    %3055 = vmatprep.mubr.bf16.mxu0 %v2367
    %3056 = vmatmul.mubr.bf16.gmra.mrb[0].mxu0 %v2114
    %v3057 = vpop.f32.mrb[0].mxu0
    %v3058 = vadd.f32 %v2697, %v3057
    %v3059 = vpop.f32.mrb[0].mxu0
    %v3060 = vpop.f32.mrb[0].mxu0
    %v3061 = vadd.f32 %v2700, %v3060
    %v3062 = vpop.f32.mrb[0].mxu0
    %3063 = vmatprep.mubr.bf16.mxu0 %v2370
    %3064 = vmatmul.mubr.bf16.gmra.mrb[0].mxu0 %v2118
    %v3065 = vpop.f32.mrb[0].mxu0
    %v3066 = vadd.f32 %v2705, %v3065
    %v3067 = vpop.f32.mrb[0].mxu0
    %v3068 = vpop.f32.mrb[0].mxu0
    %v3069 = vadd.f32 %v2708, %v3068
    %v3070 = vpop.f32.mrb[0].mxu0
    %3071 = vmatprep.mubr.bf16.mxu0 %v2373
    %3072 = vmatmul.mubr.bf16.gmra.mrb[0].mxu0 %v2122
    %v3073 = vpop.f32.mrb[0].mxu0
    %v3074 = vadd.f32 %v2713, %v3073
    %v3075 = vpop.f32.mrb[0].mxu0
    %v3076 = vpop.f32.mrb[0].mxu0
    %v3077 = vadd.f32 %v2716, %v3076
    %v3078 = vpop.f32.mrb[0].mxu0
    %3079 = vmatprep.mubr.bf16.mxu0 %v2376
    %3080 = vmatmul.mubr.bf16.gmra.mrb[0].mxu0 %v2126
    %v3081 = vpop.f32.mrb[0].mxu0
    %v3082 = vadd.f32 %v2721, %v3081
    %v3083 = vpop.f32.mrb[0].mxu0
    %v3084 = vpop.f32.mrb[0].mxu0
    %v3085 = vadd.f32 %v2724, %v3084
    %v3086 = vpop.f32.mrb[0].mxu0
    %3087 = vmatprep.mubr.bf16.mxu0 %v2379
    %3088 = vmatmul.mubr.bf16.gmra.mrb[0].mxu0 %v2130
    %v3089 = vpop.f32.mrb[0].mxu0
    %v3090 = vadd.f32 %v2729, %v3089
    %v3091 = vpop.f32.mrb[0].mxu0
    %v3092 = vpop.f32.mrb[0].mxu0
    %v3093 = vadd.f32 %v2732, %v3092
    %v3094 = vpop.f32.mrb[0].mxu0
    %3095 = vmatprep.mubr.bf16.mxu0 %v2382
    %3096 = vmatmul.mubr.bf16.gmra.mrb[0].mxu0 %v2134
    %v3097 = vpop.f32.mrb[0].mxu0
    %v3098 = vadd.f32 %v2737, %v3097
    %v3099 = vpop.f32.mrb[0].mxu0
    %v3100 = vpop.f32.mrb[0].mxu0
    %v3101 = vadd.f32 %v2740, %v3100
    %v3102 = vpop.f32.mrb[0].mxu0
    %3103 = vmatprep.mubr.bf16.mxu0 %v2385
    %3104 = vmatmul.mubr.bf16.gmra.mrb[0].mxu0 %v2138
    %v3105 = vpop.f32.mrb[0].mxu0
    %v3106 = vadd.f32 %v2745, %v3105
    %v3107 = vpop.f32.mrb[0].mxu0
    %v3108 = vpop.f32.mrb[0].mxu0
    %v3109 = vadd.f32 %v2748, %v3108
    %v3110 = vpop.f32.mrb[0].mxu0
    %3111 = vdwg.mxu0
    %v3112 = vmax.f32 %v2786, 0.0
    %v3113 = vmax.f32 %v2789, 0.0
    %v3114 = vmax.f32 %v2794, 0.0
    %v3115 = vmax.f32 %v2797, 0.0
    %v3116 = vmax.f32 %v2802, 0.0
    %v3117 = vmax.f32 %v2805, 0.0
    %v3118 = vmax.f32 %v2810, 0.0
    %v3119 = vmax.f32 %v2813, 0.0
    %v3120 = vmax.f32 %v2818, 0.0
    %v3121 = vmax.f32 %v2821, 0.0
    %v3122 = vmax.f32 %v2826, 0.0
    %v3123 = vmax.f32 %v2829, 0.0
    %v3124 = vmax.f32 %v2834, 0.0
    %v3125 = vmax.f32 %v2837, 0.0
    %v3126 = vmax.f32 %v2842, 0.0
    %v3127 = vmax.f32 %v2845, 0.0
    %v3128 = vmax.f32 %v2850, 0.0
    %v3129 = vmax.f32 %v2853, 0.0
    %v3130 = vmax.f32 %v2858, 0.0
    %v3131 = vmax.f32 %v2861, 0.0
    %v3132 = vmax.f32 %v2866, 0.0
    %v3133 = vmax.f32 %v2869, 0.0
    %v3134 = vmax.f32 %v2874, 0.0
    %v3135 = vmax.f32 %v2877, 0.0
    %v3136 = vmax.f32 %v2882, 0.0
    %v3137 = vmax.f32 %v2885, 0.0
    %v3138 = vmax.f32 %v2890, 0.0
    %v3139 = vmax.f32 %v2893, 0.0
    %v3140 = vmax.f32 %v2898, 0.0
    %v3141 = vmax.f32 %v2901, 0.0
    %v3142 = vmax.f32 %v2906, 0.0
    %v3143 = vmax.f32 %v2909, 0.0
    %v3144 = vmax.f32 %v2914, 0.0
    %v3145 = vmax.f32 %v2917, 0.0
    %v3146 = vmax.f32 %v2922, 0.0
    %v3147 = vmax.f32 %v2925, 0.0
    %v3148 = vmax.f32 %v2930, 0.0
    %v3149 = vmax.f32 %v2933, 0.0
    %v3150 = vmax.f32 %v2938, 0.0
    %v3151 = vmax.f32 %v2941, 0.0
    %v3152 = vmax.f32 %v2946, 0.0
    %v3153 = vmax.f32 %v2949, 0.0
    %v3154 = vmax.f32 %v2954, 0.0
    %v3155 = vmax.f32 %v2957, 0.0
    %v3156 = vmax.f32 %v2962, 0.0
    %v3157 = vmax.f32 %v2965, 0.0
    %v3158 = vmax.f32 %v2970, 0.0
    %v3159 = vmax.f32 %v2973, 0.0
    %v3160 = vmax.f32 %v2978, 0.0
    %v3161 = vmax.f32 %v2981, 0.0
    %v3162 = vmax.f32 %v2986, 0.0
    %v3163 = vmax.f32 %v2989, 0.0
    %v3164 = vmax.f32 %v2994, 0.0
    %v3165 = vmax.f32 %v2997, 0.0
    %v3166 = vmax.f32 %v3002, 0.0
    %v3167 = vmax.f32 %v3005, 0.0
    %v3168 = vmax.f32 %v3010, 0.0
    %v3169 = vmax.f32 %v3013, 0.0
    %v3170 = vmax.f32 %v3018, 0.0
    %v3171 = vmax.f32 %v3021, 0.0
    %v3172 = vmax.f32 %v3026, 0.0
    %v3173 = vmax.f32 %v3029, 0.0
    %v3174 = vmax.f32 %v3034, 0.0
    %v3175 = vmax.f32 %v3037, 0.0
    %v3176 = vmax.f32 %v3042, 0.0
    %v3177 = vmax.f32 %v3045, 0.0
    %v3178 = vmax.f32 %v3050, 0.0
    %v3179 = vmax.f32 %v3053, 0.0
    %v3180 = vmax.f32 %v3058, 0.0
    %v3181 = vmax.f32 %v3061, 0.0
    %v3182 = vmax.f32 %v3066, 0.0
    %v3183 = vmax.f32 %v3069, 0.0
    %v3184 = vmax.f32 %v3074, 0.0
    %v3185 = vmax.f32 %v3077, 0.0
    %v3186 = vmax.f32 %v3082, 0.0
    %v3187 = vmax.f32 %v3085, 0.0
    %v3188 = vmax.f32 %v3090, 0.0
    %v3189 = vmax.f32 %v3093, 0.0
    %v3190 = vmax.f32 %v3098, 0.0
    %v3191 = vmax.f32 %v3101, 0.0
    %v3192 = vmax.f32 %v3106, 0.0
    %v3193 = vmax.f32 %v3109, 0.0
    %v3194 = vmax.f32 %v3112, %v3153
    %v3195 = vmax.f32 %v3113, %v3154
    %v3196 = vmax.f32 %v3114, %v3155
    %v3197 = vmax.f32 %v3115, %v3156
    %v3198 = vmax.f32 %v3116, %v3157
    %v3199 = vmax.f32 %v3117, %v3158
    %v3200 = vmax.f32 %v3118, %v3159
    %v3201 = vmax.f32 %v3119, %v3160
    %v3202 = vmax.f32 %v3120, %v3161
    %v3203 = vmax.f32 %v3121, %v3162
    %v3204 = vmax.f32 %v3122, %v3163
    %v3205 = vmax.f32 %v3123, %v3164
    %v3206 = vmax.f32 %v3124, %v3165
    %v3207 = vmax.f32 %v3125, %v3166
    %v3208 = vmax.f32 %v3126, %v3167
    %v3209 = vmax.f32 %v3127, %v3168
    %v3210 = vmax.f32 %v3128, %v3169
    %v3211 = vmax.f32 %v3129, %v3170
    %v3212 = vmax.f32 %v3130, %v3171
    %v3213 = vmax.f32 %v3131, %v3172
    %v3214 = vmax.f32 %v3132, %v3173
    %v3215 = vmax.f32 %v3133, %v3174
    %v3216 = vmax.f32 %v3134, %v3175
    %v3217 = vmax.f32 %v3135, %v3176
    %v3218 = vmax.f32 %v3136, %v3177
    %v3219 = vmax.f32 %v3137, %v3178
    %v3220 = vmax.f32 %v3138, %v3179
    %v3221 = vmax.f32 %v3139, %v3180
    %v3222 = vmax.f32 %v3140, %v3181
    %v3223 = vmax.f32 %v3141, %v3182
    %v3224 = vmax.f32 %v3142, %v3183
    %v3225 = vmax.f32 %v3143, %v3184
    %v3226 = vmax.f32 %v3144, %v3185
    %v3227 = vmax.f32 %v3145, %v3186
    %v3228 = vmax.f32 %v3146, %v3187
    %v3229 = vmax.f32 %v3147, %v3188
    %v3230 = vmax.f32 %v3148, %v3189
    %v3231 = vmax.f32 %v3149, %v3190
    %v3232 = vmax.f32 %v3150, %v3191
    %v3233 = vmax.f32 %v3151, %v3192
    %v3234 = vmax.f32 %v3152, %v3193
    %v3235 = vld [vmem:[%s3] sm:$0xff]
    %v3236 = vld [vmem:[%s3 + $0x8] sm:$0xf]
    %v3237 = vld [vmem:[%s3 + $0xc] sm:$0xff]
    %v3238 = vld [vmem:[%s3 + $0x14] sm:$0xf]
    %v3239 = vld [vmem:[%s3 + $0x18] sm:$0xff]
    %v3240 = vld [vmem:[%s3 + $0x20] sm:$0xf]
    %v3241 = vld [vmem:[%s3 + $0x24] sm:$0xff]
    %v3242 = vld [vmem:[%s3 + $0x2c] sm:$0xf]
    %v3243 = vld [vmem:[%s3 + $0x30] sm:$0xff]
    %v3244 = vld [vmem:[%s3 + $0x38] sm:$0xf]
    %v3245 = vld [vmem:[%s3 + $0x3c] sm:$0xff]
    %v3246 = vld [vmem:[%s3 + $0x44] sm:$0xf]
    %v3247 = vld [vmem:[%s3 + $0x48] sm:$0xff]
    %v3248 = vld [vmem:[%s3 + $0x50] sm:$0xf]
    %v3249 = vld [vmem:[%s3 + $0x54] sm:$0xff]
    %v3250 = vld [vmem:[%s3 + $0x5c] sm:$0xf]
    %v3251 = vld [vmem:[%s3 + $0x60] sm:$0x11]
    %v3252 = vld [vmem:[%s3 + $0x68] sm:$0x1]
    %v3253 = vpack.c.bf16 %v3195, %v3194
    %v3254 = vpack.c.bf16 %v3197, %v3196
    %v3255 = vpack.c.bf16 %v3199, %v3198
    %v3256 = vpack.c.bf16 %v3201, %v3200
    %v3257 = vpack.c.bf16 %v3203, %v3202
    %v3258 = vpack.c.bf16 %v3205, %v3204
    %v3259 = vpack.c.bf16 %v3207, %v3206
    %v3260 = vpack.c.bf16 %v3209, %v3208
    %v3261 = vpack.c.bf16 %v3211, %v3210
    %v3262 = vpack.c.bf16 %v3213, %v3212
    %v3263 = vpack.c.bf16 %v3215, %v3214
    %v3264 = vpack.c.bf16 %v3217, %v3216
    %v3265 = vpack.c.bf16 %v3219, %v3218
    %v3266 = vpack.c.bf16 %v3221, %v3220
    %v3267 = vpack.c.bf16 %v3223, %v3222
    %v3268 = vpack.c.bf16 %v3225, %v3224
    %v3269 = vpack.c.bf16 %v3227, %v3226
    %v3270 = vpack.c.bf16 %v3229, %v3228
    %v3271 = vpack.c.bf16 %v3231, %v3230
    %v3272 = vpack.c.bf16 %v3233, %v3232
    %v3273 = vpack.c.bf16 %v3234, %v3234
    %v3292 = vunpack.c.l.b16 %v3235
    %v3293 = vunpack.c.h.b16 %v3235
    %v3294 = vunpack.c.l.b16 %v3236
    %v3295 = vunpack.c.l.b16 %v3237
    %v3296 = vunpack.c.h.b16 %v3237
    %v3297 = vunpack.c.l.b16 %v3238
    %v3298 = vunpack.c.l.b16 %v3239
    %v3299 = vunpack.c.h.b16 %v3239
    %v3300 = vunpack.c.l.b16 %v3240
    %v3301 = vunpack.c.l.b16 %v3241
    %v3302 = vunpack.c.h.b16 %v3241
    %v3303 = vunpack.c.l.b16 %v3242
    %v3304 = vunpack.c.l.b16 %v3243
    %v3305 = vunpack.c.h.b16 %v3243
    %v3306 = vunpack.c.l.b16 %v3244
    %v3307 = vunpack.c.l.b16 %v3245
    %v3308 = vunpack.c.h.b16 %v3245
    %v3309 = vunpack.c.l.b16 %v3246
    %v3310 = vunpack.c.l.b16 %v3247
    %v3311 = vunpack.c.h.b16 %v3247
    %v3312 = vunpack.c.l.b16 %v3248
    %v3313 = vunpack.c.l.b16 %v3249
    %v3314 = vunpack.c.h.b16 %v3249
    %v3315 = vunpack.c.l.b16 %v3250
    %v3316 = vunpack.c.l.b16 %v3251
    %v3317 = vunpack.c.h.b16 %v3251
    %v3318 = vunpack.c.l.b16 %v3252
    %v3319 = vpack.c.b16 %v3295, %v3292
    %v3320 = vpack.c.b16 %v3296, %v3293
    %v3321 = vpack.c.b16 %v3297, %v3294
    %v3322 = vpack.c.b16 %v3301, %v3298
    %v3323 = vpack.c.b16 %v3302, %v3299
    %v3324 = vpack.c.b16 %v3303, %v3300
    %v3325 = vpack.c.b16 %v3307, %v3304
    %v3326 = vpack.c.b16 %v3308, %v3305
    %v3327 = vpack.c.b16 %v3309, %v3306
    %v3328 = vpack.c.b16 %v3313, %v3310
    %v3329 = vpack.c.b16 %v3314, %v3311
    %v3330 = vpack.c.b16 %v3315, %v3312
    %v3331 = vpack.c.b16 %v3316, %v3316
    %v3332 = vpack.c.b16 %v3317, %v3317
    %v3333 = vpack.c.b16 %v3318, %v3318
    %v3345 = vsel %vm2263, %v3321, 0
    %v3348 = vsel %vm2263, %v3324, 0
    %v3351 = vsel %vm2263, %v3327, 0
    %v3354 = vsel %vm2263, %v3330, 0
    %v3357 = vsel %vm2263, %v3333, 0
    %v3360 = vsel %vm627, %v3273, 0
    %3362 = vmatprep.subr.bf16.mxu0 0
    %3363 = vmatpush1.bf16.msra.mxu0 %v3253
    %3364 = vmatprep.subr.bf16.mxu0 0
    %3365 = vmatpush1.bf16.msra.mxu0 %v3254
    %3366 = vmatprep.subr.bf16.mxu0 0
    %3367 = vmatpush1.bf16.msra.mxu0 %v3255
    %3368 = vmatprep.subr.bf16.mxu0 0
    %3369 = vmatpush1.bf16.msra.mxu0 %v3256
    %3370 = vmatprep.subr.bf16.mxu0 0
    %3371 = vmatpush1.bf16.msra.mxu0 %v3257
    %3372 = vmatprep.subr.bf16.mxu0 0
    %3373 = vmatpush1.bf16.msra.mxu0 %v3258
    %3374 = vmatprep.subr.bf16.mxu0 0
    %3375 = vmatpush1.bf16.msra.mxu0 %v3259
    %3376 = vmatprep.subr.bf16.mxu0 0
    %3377 = vmatpush1.bf16.msra.mxu0 %v3260
    %3378 = vmatprep.subr.bf16.mxu0 0
    %3379 = vmatpush1.bf16.msra.mxu0 %v3261
    %3380 = vmatprep.subr.bf16.mxu0 0
    %3381 = vmatpush1.bf16.msra.mxu0 %v3262
    %3382 = vmatprep.subr.bf16.mxu0 0
    %3383 = vmatpush1.bf16.msra.mxu0 %v3263
    %3384 = vmatprep.subr.bf16.mxu0 0
    %3385 = vmatpush1.bf16.msra.mxu0 %v3264
    %3386 = vmatprep.subr.bf16.mxu0 0
    %3387 = vmatpush1.bf16.msra.mxu0 %v3265
    %3388 = vmatprep.subr.bf16.mxu0 0
    %3389 = vmatpush1.bf16.msra.mxu0 %v3266
    %3390 = vmatprep.subr.bf16.mxu0 0
    %3391 = vmatpush1.bf16.msra.mxu0 %v3267
    %3392 = vmatprep.subr.bf16.mxu0 0
    %3393 = vmatpush1.bf16.msra.mxu0 %v3268
    %3394 = vmatprep.mubr.bf16.mxu0 %v3320
    %3395 = vmatmul.mubr.bf16.gmra.mrb[0].mxu0 %v3319
    %v3396 = vpop.f32.mrb[0].mxu0
    %v3397 = vadd.f32 0.0, %v3396
    %v3398 = vpop.f32.mrb[0].mxu0
    %v3399 = vpop.f32.mrb[0].mxu0
    %v3400 = vadd.f32 0.0, %v3399
    %v3401 = vpop.f32.mrb[0].mxu0
    %3402 = vmatprep.mubr.bf16.mxu0 %v3323
    %3403 = vmatmul.mubr.bf16.gmra.mrb[0].mxu0 %v3322
    %v3404 = vpop.f32.mrb[0].mxu0
    %v3405 = vadd.f32 0.0, %v3404
    %v3406 = vpop.f32.mrb[0].mxu0
    %v3407 = vpop.f32.mrb[0].mxu0
    %v3408 = vadd.f32 0.0, %v3407
    %v3409 = vpop.f32.mrb[0].mxu0
    %3410 = vmatprep.mubr.bf16.mxu0 %v3326
    %3411 = vmatmul.mubr.bf16.gmra.mrb[0].mxu0 %v3325
    %v3412 = vpop.f32.mrb[0].mxu0
    %v3413 = vadd.f32 0.0, %v3412
    %v3414 = vpop.f32.mrb[0].mxu0
    %v3415 = vpop.f32.mrb[0].mxu0
    %v3416 = vadd.f32 0.0, %v3415
    %v3417 = vpop.f32.mrb[0].mxu0
    %3418 = vmatprep.mubr.bf16.mxu0 %v3329
    %3419 = vmatmul.mubr.bf16.gmra.mrb[0].mxu0 %v3328
    %v3420 = vpop.f32.mrb[0].mxu0
    %v3421 = vadd.f32 0.0, %v3420
    %v3422 = vpop.f32.mrb[0].mxu0
    %v3423 = vpop.f32.mrb[0].mxu0
    %v3424 = vadd.f32 0.0, %v3423
    %v3425 = vpop.f32.mrb[0].mxu0
    %3426 = vmatprep.mubr.bf16.mxu0 %v3332
    %3427 = vmatmul.mubr.bf16.gmra.mrb[0].mxu0 %v3331
    %v3428 = vpop.f32.mrb[0].mxu0
    %v3429 = vadd.f32 0.0, %v3428
    %v3430 = vpop.f32.mrb[0].mxu0
    %v3431 = vpop.f32.mrb[0].mxu0
    %v3432 = vpop.f32.mrb[0].mxu0
    %3433 = vdwg.mxu0
    %3434 = vmatprep.subr.bf16.mxu0 0
    %3435 = vmatpush1.bf16.msra.mxu0 %v3269
    %3436 = vmatprep.subr.bf16.mxu0 0
    %3437 = vmatpush1.bf16.msra.mxu0 %v3270
    %3438 = vmatprep.subr.bf16.mxu0 0
    %3439 = vmatpush1.bf16.msra.mxu0 %v3271
    %3440 = vmatprep.subr.bf16.mxu0 0
    %3441 = vmatpush1.bf16.msra.mxu0 %v3272
    %3442 = vmatprep.subr.bf16.mxu0 0
    %3443 = vmatpush1.bf16.msra.mxu0 %v3360
    %3444 = vmatprep.subr.bf16.mxu0 0
    %3445 = vmatpush1.bf16.msra.mxu0 0
    %3446 = vmatprep.subr.bf16.mxu0 0
    %3447 = vmatpush1.bf16.msra.mxu0 0
    %3448 = vmatprep.subr.bf16.mxu0 0
    %3449 = vmatpush1.bf16.msra.mxu0 0
    %3450 = vmatprep.subr.bf16.mxu0 0
    %3451 = vmatpush1.bf16.msra.mxu0 0
    %3452 = vmatprep.subr.bf16.mxu0 0
    %3453 = vmatpush1.bf16.msra.mxu0 0
    %3454 = vmatprep.subr.bf16.mxu0 0
    %3455 = vmatpush1.bf16.msra.mxu0 0
    %3456 = vmatprep.subr.bf16.mxu0 0
    %3457 = vmatpush1.bf16.msra.mxu0 0
    %3458 = vmatprep.subr.bf16.mxu0 0
    %3459 = vmatpush1.bf16.msra.mxu0 0
    %3460 = vmatprep.subr.bf16.mxu0 0
    %3461 = vmatpush1.bf16.msra.mxu0 0
    %3462 = vmatprep.subr.bf16.mxu0 0
    %3463 = vmatpush1.bf16.msra.mxu0 0
    %3464 = vmatprep.subr.bf16.mxu0 0
    %3465 = vmatpush1.bf16.msra.mxu0 0
    %3466 = vmatprep.mubr.bf16.mxu0 0
    %3467 = vmatmul.mubr.bf16.gmra.mrb[0].mxu0 %v3345
    %v3468 = vpop.f32.mrb[0].mxu0
    %v3469 = vadd.f32 %v3397, %v3468
    %v3470 = vpop.f32.mrb[0].mxu0
    %v3471 = vpop.f32.mrb[0].mxu0
    %v3472 = vadd.f32 %v3400, %v3471
    %v3473 = vpop.f32.mrb[0].mxu0
    %3474 = vmatprep.mubr.bf16.mxu0 0
    %3475 = vmatmul.mubr.bf16.gmra.mrb[0].mxu0 %v3348
    %v3476 = vpop.f32.mrb[0].mxu0
    %v3477 = vadd.f32 %v3405, %v3476
    %v3478 = vpop.f32.mrb[0].mxu0
    %v3479 = vpop.f32.mrb[0].mxu0
    %v3480 = vadd.f32 %v3408, %v3479
    %v3481 = vpop.f32.mrb[0].mxu0
    %3482 = vmatprep.mubr.bf16.mxu0 0
    %3483 = vmatmul.mubr.bf16.gmra.mrb[0].mxu0 %v3351
    %v3484 = vpop.f32.mrb[0].mxu0
    %v3485 = vadd.f32 %v3413, %v3484
    %v3486 = vpop.f32.mrb[0].mxu0
    %v3487 = vpop.f32.mrb[0].mxu0
    %v3488 = vadd.f32 %v3416, %v3487
    %v3489 = vpop.f32.mrb[0].mxu0
    %3490 = vmatprep.mubr.bf16.mxu0 0
    %3491 = vmatmul.mubr.bf16.gmra.mrb[0].mxu0 %v3354
    %v3492 = vpop.f32.mrb[0].mxu0
    %v3493 = vadd.f32 %v3421, %v3492
    %v3494 = vpop.f32.mrb[0].mxu0
    %v3495 = vpop.f32.mrb[0].mxu0
    %v3496 = vadd.f32 %v3424, %v3495
    %v3497 = vpop.f32.mrb[0].mxu0
    %3498 = vmatprep.mubr.bf16.mxu0 0
    %3499 = vmatmul.mubr.bf16.gmra.mrb[0].mxu0 %v3357
    %v3500 = vpop.f32.mrb[0].mxu0
    %v3501 = vadd.f32 %v3429, %v3500
    %v3502 = vpop.f32.mrb[0].mxu0
    %v3503 = vpop.f32.mrb[0].mxu0
    %v3504 = vpop.f32.mrb[0].mxu0
    %3505 = vdwg.mxu0
    %v3506 = vmax.f32 %v3469, 0.0
    %v3507 = vmax.f32 %v3472, 0.0
    %v3508 = vmax.f32 %v3477, 0.0
    %v3509 = vmax.f32 %v3480, 0.0
    %v3510 = vmax.f32 %v3485, 0.0
    %v3511 = vmax.f32 %v3488, 0.0
    %v3512 = vmax.f32 %v3493, 0.0
    %v3513 = vmax.f32 %v3496, 0.0
    %v3514 = vmax.f32 %v3501, 0.0
    %v3515 = vld [vmem:[%s4] sm:$0x1]
    %vm3516 = vcmask 531456
    %v3518 = vsel %vm3516, %v3515, 0
    %vm3520 = vcmask 1040384
    %v3522 = vsel %vm3520, %v3514, 0
    %3524 = vmatprep.subr.mxu0 0.0
    %3525 = vmatpush1.msra.mxu0 %v3506
    %3526 = vmatprep.subr.mxu0 0.0
    %3527 = vmatpush1.msra.mxu0 %v3507
    %3528 = vmatprep.subr.mxu0 0.0
    %3529 = vmatpush1.msra.mxu0 %v3508
    %3530 = vmatprep.subr.mxu0 0.0
    %3531 = vmatpush1.msra.mxu0 %v3509
    %3532 = vmatprep.subr.mxu0 0.0
    %3533 = vmatpush1.msra.mxu0 %v3510
    %3534 = vmatprep.subr.mxu0 0.0
    %3535 = vmatpush1.msra.mxu0 %v3511
    %3536 = vmatprep.subr.mxu0 0.0
    %3537 = vmatpush1.msra.mxu0 %v3512
    %3538 = vmatprep.subr.mxu0 0.0
    %3539 = vmatpush1.msra.mxu0 %v3513
    %3540 = vmatprep.subr.mxu0 0.0
    %3541 = vmatpush1.msra.mxu0 %v3522
    %3542 = vmatprep.subr.mxu0 0.0
    %3543 = vmatpush1.msra.mxu0 0.0
    %3544 = vmatprep.subr.mxu0 0.0
    %3545 = vmatpush1.msra.mxu0 0.0
    %3546 = vmatprep.subr.mxu0 0.0
    %3547 = vmatpush1.msra.mxu0 0.0
    %3548 = vmatprep.subr.mxu0 0.0
    %3549 = vmatpush1.msra.mxu0 0.0
    %3550 = vmatprep.subr.mxu0 0.0
    %3551 = vmatpush1.msra.mxu0 0.0
    %3552 = vmatprep.subr.mxu0 0.0
    %3553 = vmatpush1.msra.mxu0 0.0
    %3554 = vmatprep.subr.mxu0 0.0
    %3555 = vmatpush1.msra.mxu0 0.0
    %3556 = vmatprep.subr.mxu0 0.0
    %3557 = vmatpush1.msra.mxu0 0.0
    %3558 = vmatprep.subr.mxu0 0.0
    %3559 = vmatpush1.msra.mxu0 0.0
    %3560 = vmatprep.subr.mxu0 0.0
    %3561 = vmatpush1.msra.mxu0 0.0
    %3562 = vmatprep.subr.mxu0 0.0
    %3563 = vmatpush1.msra.mxu0 0.0
    %3564 = vmatprep.subr.mxu0 0.0
    %3565 = vmatpush1.msra.mxu0 0.0
    %3566 = vmatprep.subr.mxu0 0.0
    %3567 = vmatpush1.msra.mxu0 0.0
    %3568 = vmatprep.subr.mxu0 0.0
    %3569 = vmatpush1.msra.mxu0 0.0
    %3570 = vmatprep.subr.mxu0 0.0
    %3571 = vmatpush1.msra.mxu0 0.0
    %3572 = vmatprep.subr.mxu0 0.0
    %3573 = vmatpush1.msra.mxu0 0.0
    %3574 = vmatprep.subr.mxu0 0.0
    %3575 = vmatpush1.msra.mxu0 0.0
    %3576 = vmatprep.subr.mxu0 0.0
    %3577 = vmatpush1.msra.mxu0 0.0
    %3578 = vmatprep.subr.mxu0 0.0
    %3579 = vmatpush1.msra.mxu0 0.0
    %3580 = vmatprep.subr.mxu0 0.0
    %3581 = vmatpush1.msra.mxu0 0.0
    %3582 = vmatprep.subr.mxu0 0.0
    %3583 = vmatpush1.msra.mxu0 0.0
    %3584 = vmatprep.subr.mxu0 0.0
    %3585 = vmatpush1.msra.mxu0 0.0
    %3586 = vmatprep.subr.mxu0 0.0
    %3587 = vmatpush1.msra.mxu0 0.0
    %3588 = vmatprep.mubr.f32.mxu0 0.0
    %3589 = vmatmul.mubr.f32.gmra.mrb[0].mxu0 %v3518
    %v3590 = vpop.f32.mrb[0].mxu0
    %v3591 = vadd.f32 0.0, %v3590
    %v3592 = vpop.f32.mrb[0].mxu0
    %3593 = vdwg.mxu0
    %3594 = vst [vmem:[#allocation5] sm:$0x1] %v3591
    // Predicated region
    $region26: #{tpu_custom_call.1} parent=1 // pred_check
      _
    $region27: #{tpu_custom_call.1} parent=1 // pred_check_branch
      %3596 = sbr.rel (0) target = $region29
    $region28: #{tpu_custom_call.1} parent=1 // pred_region
      %s3598 = ssub.s32 16, 16
      %3599 = vsyncadd [#allocation4], %s3598
      %s3601 = sshll.u32 [#allocation5], 4
      %s3602 = int_to_ptr.vmem [resolvable:$true] %s3601
      %3604 = dma.vmem_to_hbm [thread:$0]  %s3602, 16, %s5, [#allocation4]
    $region29: #{tpu_custom_call.1} parent=1 // pred_fallthru
      _
    // Predicated region
    $region30: #{tpu_custom_call.1} parent=1 // pred_check
      _
    $region31: #{tpu_custom_call.1} parent=1 // pred_check_branch
      %3606 = sbr.rel (0) target = $region33
    $region32: #{tpu_custom_call.1} parent=1 // pred_region
      %3607 = dma.done [#allocation4], 16
    $region33: #{tpu_custom_call.1} parent=1 // pred_fallthru
      _
    %3608 = vsyncpa [#allocation3], 1
    %3609 = vsyncpa [#allocation4], 1

</llo_original>
